<compile_context>
chip_gen: v7x
topology: tpu7x:2x2x1
jax: 0.10.0
libtpu: 0.0.40
codegen_flags: <defaults>
</compile_context>

<pallas_src>
import functools

import jax
import jax.numpy as jnp
from jax import lax
from jax.experimental import pallas as pl
from jax.experimental.pallas import tpu as pltpu

EPS = 2e-5  # BatchNorm2d eps from the module


def _dense_block_kernel(x_ref, scale_ref, shift_ref, w_ref, o_ref,
                        a_ref, acc_ref, col_ref=None, *,
                        W, HW, HO, WO, C_in, C_out, fuse):
    # x_ref:   (1, C_in, HW)           unpadded flattened raw image (f32)
    # scale:   (C_in, 1)               gamma / sqrt(running_var + eps)
    # shift:   (C_in, 1)               beta - running_mean * scale
    # w_ref:   (C_out, 9*C_in) bf16    [fused path]  /  (9, C_out, C_in) bf16 [tap loop]
    # o_ref:   (1, C_out+C_in, HO, WO) already-cropped output (conv rows, then passthrough)
    # a_ref:   (C_in, HWP) bf16        relu(bn(x)) with a small zero tail
    # acc_ref: (C_out, HW) f32         conv accumulator
    # col_ref: (9*C_in, HW) bf16       im2col slab (fused path only)

    # BN (eval, folded) + ReLU computed once per image on the VPU; bf16 for the MXU.
    a_ref[:, :HW] = jnp.maximum(
        x_ref[0] * scale_ref[...] + shift_ref[...], 0.0).astype(jnp.bfloat16)
    # tail only feeds window positions that are cropped away; zero it for NaN hygiene
    a_ref[:, HW:] = jnp.zeros((C_in, a_ref.shape[1] - HW), jnp.bfloat16)

    if fuse:
        # Build the (9*C_in, HW) im2col slab once, then a single K=9*C_in MXU matmul.
        for k in range(9):
            dy, dx = divmod(k, 3)
            s = dy * W + dx
            col_ref[k * C_in:(k + 1) * C_in, :] = a_ref[:, s:s + HW]
        acc_ref[...] = jnp.dot(w_ref[...], col_ref[...],
                               preferred_element_type=jnp.float32)
    else:
        # 9-tap loop for large C_in (col slab would be 9x the activation VMEM).
        acc_ref[...] = jnp.zeros_like(acc_ref)
        for k in range(9):
            dy, dx = divmod(k, 3)
            s = dy * W + dx
            acc_ref[...] += jnp.dot(w_ref[k], a_ref[:, s:s + HW],
                                    preferred_element_type=jnp.float32)

    # Write the cropped output directly (no wrapper crop pass over HBM).
    # valid-conv output row y lives at flat positions [y*W, y*W + WO);
    # passthrough x[:, :, 1:-1, 1:-1] row y is raw x row y+1, cols 1..W-2.
    for y in range(HO):
        src = y * W
        o_ref[0, :C_out, y, :] = acc_ref[:, src:src + WO]
        o_ref[0, C_out:, y, :] = x_ref[0, :, src + W + 1:src + W + 1 + WO]


def dense_block_2d(x, weight, gamma, beta, run_mean, run_var):
    """x: [B, C_in, H, W]; weight: [C_out, C_in, 3, 3] (bias-free 'valid' 3x3 conv)."""
    B, C_in, H, W = x.shape
    C_out = weight.shape[0]
    assert weight.shape == (C_out, C_in, 3, 3) and H > 2 and W > 2
    HO, WO = H - 2, W - 2
    HW = H * W
    C_tot = C_out + C_in
    # scratch length: room for the largest window shift (2*W + 2), lane-aligned to 128
    HWP = ((HW + 2 * W + 2 + 127) // 128) * 128
    K = 9 * C_in
    # fuse the 9 taps into one matmul while the im2col slab stays small in VMEM
    fuse = (K <= 256) and (K * HW * 2 <= (8 << 20))

    # --- fold eval-mode BN into per-channel scale/shift ---
    # TODO(synk): training-mode BatchNorm (batch statistics) would need an extra global
    # reduction pass; eval-mode running stats are implemented here.
    scale_c = (gamma / jnp.sqrt(run_var + EPS)).astype(jnp.float32)
    shift_c = (beta - run_mean * scale_c).astype(jnp.float32)
    scale = scale_c.reshape(C_in, 1)
    shift = shift_c.reshape(C_in, 1)

    if fuse:
        # W2[o, k*C_in + c] = weight[o, c, dy, dx] with k = dy*3 + dx (matches im2col rows)
        w_arr = weight.transpose(0, 2, 3, 1).reshape(C_out, K).astype(jnp.bfloat16)
        w_spec = pl.BlockSpec((C_out, K), lambda b: (0, 0))
    else:
        w_arr = weight.transpose(2, 3, 0, 1).reshape(9, C_out, C_in).astype(jnp.bfloat16)
        w_spec = pl.BlockSpec((9, C_out, C_in), lambda b: (0, 0, 0))

    # contiguous collapse of (H, W) -> H*W: no padding, no extra HBM pass
    x_flat = x.reshape(B, C_in, HW).astype(jnp.float32)

    scratch = [pltpu.VMEM((C_in, HWP), jnp.bfloat16),
               pltpu.VMEM((C_out, HW), jnp.float32)]
    if fuse:
        scratch.append(pltpu.VMEM((K, HW), jnp.bfloat16))

    # explicit VMEM budget: double-buffered in/out blocks + params + scratch, with headroom
    vmem_need = (2 * C_in * HW * 4 + 2 * C_tot * HO * WO * 4
                 + 2 * (int(w_arr.size) * 2 + 2 * C_in * 4)
                 + C_in * HWP * 2 + C_out * HW * 4 + (K * HW * 2 if fuse else 0))
    vmem_limit = int(min(max(2 * vmem_need, 16 << 20), 48 << 20))

    kernel = functools.partial(_dense_block_kernel, W=W, HW=HW, HO=HO, WO=WO,
                               C_in=C_in, C_out=C_out, fuse=fuse)

    # TODO(synk): for very large H*W a second (spatial) grid axis with a 2-row halo would
    # be needed to respect v7x's 64 MiB VMEM; unnecessary at these shapes.
    out = pl.pallas_call(
        kernel,
        out_shape=jax.ShapeDtypeStruct((B, C_tot, HO, WO), jnp.float32),
        grid=(B,),
        in_specs=[
            pl.BlockSpec((1, C_in, HW), lambda b: (b, 0, 0)),
            pl.BlockSpec((C_in, 1), lambda b: (0, 0)),
            pl.BlockSpec((C_in, 1), lambda b: (0, 0)),
            w_spec,
        ],
        out_specs=pl.BlockSpec((1, C_tot, HO, WO), lambda b: (b, 0, 0, 0)),
        scratch_shapes=scratch,
        compiler_params=pltpu.CompilerParams(
            dimension_semantics=("parallel",),
            vmem_limit_bytes=vmem_limit),
    )(x_flat, scale, shift, w_arr)
    return out


def _reference(x, weight, gamma, beta, run_mean, run_var):
    """Pure-JAX reference of the PyTorch forward (eval-mode BN, valid 3x3 conv, concat)."""
    scale = gamma / jnp.sqrt(run_var + EPS)
    a = x * scale[None, :, None, None] + (beta - run_mean * scale)[None, :, None, None]
    a = jnp.maximum(a, 0.0)
    h = lax.conv_general_dilated(
        a, weight, window_strides=(1, 1), padding="VALID",
        dimension_numbers=("NCHW", "OIHW", "NCHW"),
        precision=lax.Precision.HIGHEST)
    xh = x[:, :, 1:-1, 1:-1]
    return jnp.concatenate([h, xh], axis=1)


if __name__ == "__main__":
    B, C_in, C_out, H, W = 2, 4, 8, 16, 16
    key = jax.random.PRNGKey(0)
    kx, kw, kg, kb, km, kv = jax.random.split(key, 6)

    x = jax.random.normal(kx, (B, C_in, H, W), dtype=jnp.float32)
    w_std = (2.0 / (C_in * 9)) ** 0.5                      # He-style init for the 3x3 conv
    weight = w_std * jax.random.normal(kw, (C_out, C_in, 3, 3), dtype=jnp.float32)
    # BatchNorm2d parameters / running stats (deterministic synthetic values)
    gamma = 1.0 + 0.1 * jax.random.normal(kg, (C_in,), dtype=jnp.float32)
    beta = 0.1 * jax.random.normal(kb, (C_in,), dtype=jnp.float32)
    run_mean = 0.1 * jax.random.normal(km, (C_in,), dtype=jnp.float32)
    run_var = 1.0 + 0.1 * jax.random.uniform(kv, (C_in,), dtype=jnp.float32)

    out = jax.block_until_ready(
        dense_block_2d(x, weight, gamma, beta, run_mean, run_var))
    ref = _reference(x, weight, gamma, beta, run_mean, run_var)
    assert out.shape == (B, C_out + C_in, H - 2, W - 2), out.shape
    # passthrough channels are an exact f32 copy of the cropped input
    assert jnp.allclose(out[:, C_out:], x[:, :, 1:-1, 1:-1], atol=1e-6), "passthrough mismatch"
    # conv channels use bf16 matmul operands (f32 accumulation) -> loosened tolerance
    max_err = float(jnp.max(jnp.abs(out - ref)))
    assert jnp.allclose(out, ref, atol=5e-2, rtol=5e-2), max_err
    print("KERNEL_OK")
</pallas_src>

<mosaic_0001>
module attributes {stable_mosaic.version = 11 : i64} {
  func.func @_dense_block_kernel(%arg0: i32, %arg1: memref<1x4x256xf32, #tpu.memory_space<vmem>>, %arg2: memref<4x1xf32, #tpu.memory_space<vmem>>, %arg3: memref<4x1xf32, #tpu.memory_space<vmem>>, %arg4: memref<8x36xbf16, #tpu.memory_space<vmem>>, %arg5: memref<1x12x14x14xf32, #tpu.memory_space<vmem>>, %arg6: memref<4x384xbf16, #tpu.memory_space<vmem>>, %arg7: memref<8x256xf32, #tpu.memory_space<vmem>>, %arg8: memref<36x256xbf16, #tpu.memory_space<vmem>>) attributes {dimension_semantics = [#tpu.dimension_semantics<parallel>], iteration_bounds = array<i64: 2>, scalar_prefetch = 0 : i64, scratch_operands = 3 : i64, tpu.core_type = #tpu.core_type<tc>, window_params = [{transform_indices = @transform_0, window_bounds = array<i64: 1, 4, 256>}, {pipeline_mode = #tpu.pipeline_mode<synchronous>, transform_indices = @transform_1, window_bounds = array<i64: 4, 1>}, {pipeline_mode = #tpu.pipeline_mode<synchronous>, transform_indices = @transform_2, window_bounds = array<i64: 4, 1>}, {pipeline_mode = #tpu.pipeline_mode<synchronous>, transform_indices = @transform_3, window_bounds = array<i64: 8, 36>}, {transform_indices = @transform_4, window_bounds = array<i64: 1, 12, 14, 14>}]} {
    %c0 = arith.constant 0 : index
    %c0_0 = arith.constant 0 : index
    %c0_1 = arith.constant 0 : index
    %0 = vector.load %arg1[%c0, %c0_0, %c0_1] : memref<1x4x256xf32, #tpu.memory_space<vmem>>, vector<1x4x256xf32>
    %1 = vector.shape_cast %0 : vector<1x4x256xf32> to vector<4x256xf32>
    %c0_2 = arith.constant 0 : index
    %c0_3 = arith.constant 0 : index
    %2 = vector.load %arg2[%c0_2, %c0_3] : memref<4x1xf32, #tpu.memory_space<vmem>>, vector<4x1xf32>
    %3 = vector.broadcast %2 : vector<4x1xf32> to vector<4x256xf32>
    %4 = arith.mulf %1, %3 : vector<4x256xf32>
    %c0_4 = arith.constant 0 : index
    %c0_5 = arith.constant 0 : index
    %5 = vector.load %arg3[%c0_4, %c0_5] : memref<4x1xf32, #tpu.memory_space<vmem>>, vector<4x1xf32>
    %6 = vector.broadcast %5 : vector<4x1xf32> to vector<4x256xf32>
    %7 = arith.addf %4, %6 : vector<4x256xf32>
    %cst = arith.constant 0.000000e+00 : f32
    %8 = vector.broadcast %cst : f32 to vector<4x256xf32>
    %9 = arith.maximumf %7, %8 : vector<4x256xf32>
    %10 = arith.truncf %9 : vector<4x256xf32> to vector<4x256xbf16>
    %c0_6 = arith.constant 0 : index
    %c0_7 = arith.constant 0 : index
    %11 = vector.load %arg6[%c0_6, %c0_7] : memref<4x384xbf16, #tpu.memory_space<vmem>>, vector<4x256xbf16>
    tpu.vector_store %arg6[%c0_6, %c0_7], %10 {strides = array<i32>} : memref<4x384xbf16, #tpu.memory_space<vmem>>, vector<4x256xbf16>,
    %cst_8 = arith.constant 0.000000e+00 : bf16
    %12 = vector.broadcast %cst_8 : bf16 to vector<4x128xbf16>
    %c0_9 = arith.constant 0 : index
    %c256 = arith.constant 256 : index
    %13 = vector.load %arg6[%c0_9, %c256] : memref<4x384xbf16, #tpu.memory_space<vmem>>, vector<4x128xbf16>
    tpu.vector_store %arg6[%c0_9, %c256], %12 {strides = array<i32>} : memref<4x384xbf16, #tpu.memory_space<vmem>>, vector<4x128xbf16>,
    %c0_10 = arith.constant 0 : index
    %c0_11 = arith.constant 0 : index
    %14 = vector.load %arg6[%c0_10, %c0_11] : memref<4x384xbf16, #tpu.memory_space<vmem>>, vector<4x256xbf16>
    %c0_12 = arith.constant 0 : index
    %c0_13 = arith.constant 0 : index
    %15 = vector.load %arg8[%c0_12, %c0_13] : memref<36x256xbf16, #tpu.memory_space<vmem>>, vector<4x256xbf16>
    tpu.vector_store %arg8[%c0_12, %c0_13], %14 {strides = array<i32>} : memref<36x256xbf16, #tpu.memory_space<vmem>>, vector<4x256xbf16>,
    %c0_14 = arith.constant 0 : index
    %c1 = arith.constant 1 : index
    %16 = vector.load %arg6[%c0_14, %c1] : memref<4x384xbf16, #tpu.memory_space<vmem>>, vector<4x256xbf16>
    %c4 = arith.constant 4 : index
    %c0_15 = arith.constant 0 : index
    %17 = vector.load %arg8[%c4, %c0_15] : memref<36x256xbf16, #tpu.memory_space<vmem>>, vector<4x256xbf16>
    tpu.vector_store %arg8[%c4, %c0_15], %16 {strides = array<i32>} : memref<36x256xbf16, #tpu.memory_space<vmem>>, vector<4x256xbf16>,
    %c0_16 = arith.constant 0 : index
    %c2 = arith.constant 2 : index
    %18 = vector.load %arg6[%c0_16, %c2] : memref<4x384xbf16, #tpu.memory_space<vmem>>, vector<4x256xbf16>
    %c8 = arith.constant 8 : index
    %c0_17 = arith.constant 0 : index
    %19 = vector.load %arg8[%c8, %c0_17] : memref<36x256xbf16, #tpu.memory_space<vmem>>, vector<4x256xbf16>
    tpu.vector_store %arg8[%c8, %c0_17], %18 {strides = array<i32>} : memref<36x256xbf16, #tpu.memory_space<vmem>>, vector<4x256xbf16>,
    %c0_18 = arith.constant 0 : index
    %c16 = arith.constant 16 : index
    %20 = vector.load %arg6[%c0_18, %c16] : memref<4x384xbf16, #tpu.memory_space<vmem>>, vector<4x256xbf16>
    %c12 = arith.constant 12 : index
    %c0_19 = arith.constant 0 : index
    %21 = vector.load %arg8[%c12, %c0_19] : memref<36x256xbf16, #tpu.memory_space<vmem>>, vector<4x256xbf16>
    tpu.vector_store %arg8[%c12, %c0_19], %20 {strides = array<i32>} : memref<36x256xbf16, #tpu.memory_space<vmem>>, vector<4x256xbf16>,
    %c0_20 = arith.constant 0 : index
    %c17 = arith.constant 17 : index
    %22 = vector.load %arg6[%c0_20, %c17] : memref<4x384xbf16, #tpu.memory_space<vmem>>, vector<4x256xbf16>
    %c16_21 = arith.constant 16 : index
    %c0_22 = arith.constant 0 : index
    %23 = vector.load %arg8[%c16_21, %c0_22] : memref<36x256xbf16, #tpu.memory_space<vmem>>, vector<4x256xbf16>
    tpu.vector_store %arg8[%c16_21, %c0_22], %22 {strides = array<i32>} : memref<36x256xbf16, #tpu.memory_space<vmem>>, vector<4x256xbf16>,
    %c0_23 = arith.constant 0 : index
    %c18 = arith.constant 18 : index
    %24 = vector.load %arg6[%c0_23, %c18] : memref<4x384xbf16, #tpu.memory_space<vmem>>, vector<4x256xbf16>
    %c20 = arith.constant 20 : index
    %c0_24 = arith.constant 0 : index
    %25 = vector.load %arg8[%c20, %c0_24] : memref<36x256xbf16, #tpu.memory_space<vmem>>, vector<4x256xbf16>
    tpu.vector_store %arg8[%c20, %c0_24], %24 {strides = array<i32>} : memref<36x256xbf16, #tpu.memory_space<vmem>>, vector<4x256xbf16>,
    %c0_25 = arith.constant 0 : index
    %c32 = arith.constant 32 : index
    %26 = vector.load %arg6[%c0_25, %c32] : memref<4x384xbf16, #tpu.memory_space<vmem>>, vector<4x256xbf16>
    %c24 = arith.constant 24 : index
    %c0_26 = arith.constant 0 : index
    %27 = vector.load %arg8[%c24, %c0_26] : memref<36x256xbf16, #tpu.memory_space<vmem>>, vector<4x256xbf16>
    tpu.vector_store %arg8[%c24, %c0_26], %26 {strides = array<i32>} : memref<36x256xbf16, #tpu.memory_space<vmem>>, vector<4x256xbf16>,
    %c0_27 = arith.constant 0 : index
    %c33 = arith.constant 33 : index
    %28 = vector.load %arg6[%c0_27, %c33] : memref<4x384xbf16, #tpu.memory_space<vmem>>, vector<4x256xbf16>
    %c28 = arith.constant 28 : index
    %c0_28 = arith.constant 0 : index
    %29 = vector.load %arg8[%c28, %c0_28] : memref<36x256xbf16, #tpu.memory_space<vmem>>, vector<4x256xbf16>
    tpu.vector_store %arg8[%c28, %c0_28], %28 {strides = array<i32>} : memref<36x256xbf16, #tpu.memory_space<vmem>>, vector<4x256xbf16>,
    %c0_29 = arith.constant 0 : index
    %c34 = arith.constant 34 : index
    %30 = vector.load %arg6[%c0_29, %c34] : memref<4x384xbf16, #tpu.memory_space<vmem>>, vector<4x256xbf16>
    %c32_30 = arith.constant 32 : index
    %c0_31 = arith.constant 0 : index
    %31 = vector.load %arg8[%c32_30, %c0_31] : memref<36x256xbf16, #tpu.memory_space<vmem>>, vector<4x256xbf16>
    tpu.vector_store %arg8[%c32_30, %c0_31], %30 {strides = array<i32>} : memref<36x256xbf16, #tpu.memory_space<vmem>>, vector<4x256xbf16>,
    %c0_32 = arith.constant 0 : index
    %c0_33 = arith.constant 0 : index
    %32 = vector.load %arg4[%c0_32, %c0_33] : memref<8x36xbf16, #tpu.memory_space<vmem>>, vector<8x36xbf16>
    %c0_34 = arith.constant 0 : index
    %c0_35 = arith.constant 0 : index
    %33 = vector.load %arg8[%c0_34, %c0_35] : memref<36x256xbf16, #tpu.memory_space<vmem>>, vector<36x256xbf16>
    %cst_36 = arith.constant dense<0.000000e+00> : vector<8x256xf32>
    %34 = tpu.matmul %32, %33, %cst_36 {dimension_numbers = #tpu.dot_dimension_numbers<[1], [0], [0], [1], [0, 0, 1, 1], [], []>} : vector<8x36xbf16>, vector<36x256xbf16>, vector<8x256xf32> -> vector<8x256xf32>
    %c0_37 = arith.constant 0 : index
    %c0_38 = arith.constant 0 : index
    %35 = vector.load %arg7[%c0_37, %c0_38] : memref<8x256xf32, #tpu.memory_space<vmem>>, vector<8x256xf32>
    tpu.vector_store %arg7[%c0_37, %c0_38], %34 {strides = array<i32>} : memref<8x256xf32, #tpu.memory_space<vmem>>, vector<8x256xf32>,
    %c0_39 = arith.constant 0 : index
    %c0_40 = arith.constant 0 : index
    %36 = vector.load %arg7[%c0_39, %c0_40] : memref<8x256xf32, #tpu.memory_space<vmem>>, vector<8x14xf32>
    %c0_41 = arith.constant 0 : index
    %c0_42 = arith.constant 0 : index
    %c0_43 = arith.constant 0 : index
    %c0_44 = arith.constant 0 : index
    %37 = vector.load %arg5[%c0_41, %c0_42, %c0_43, %c0_44] : memref<1x12x14x14xf32, #tpu.memory_space<vmem>>, vector<1x8x1x14xf32>
    %38 = vector.shape_cast %37 : vector<1x8x1x14xf32> to vector<8x14xf32>
    %39 = vector.shape_cast %36 : vector<8x14xf32> to vector<1x8x1x14xf32>
    tpu.vector_store %arg5[%c0_41, %c0_42, %c0_43, %c0_44], %39 {strides = array<i32>} : memref<1x12x14x14xf32, #tpu.memory_space<vmem>>, vector<1x8x1x14xf32>,
    %c0_45 = arith.constant 0 : index
    %c0_46 = arith.constant 0 : index
    %c17_47 = arith.constant 17 : index
    %40 = vector.load %arg1[%c0_45, %c0_46, %c17_47] : memref<1x4x256xf32, #tpu.memory_space<vmem>>, vector<1x4x14xf32>
    %41 = vector.shape_cast %40 : vector<1x4x14xf32> to vector<4x14xf32>
    %c0_48 = arith.constant 0 : index
    %c8_49 = arith.constant 8 : index
    %c0_50 = arith.constant 0 : index
    %c0_51 = arith.constant 0 : index
    %42 = vector.load %arg5[%c0_48, %c8_49, %c0_50, %c0_51] : memref<1x12x14x14xf32, #tpu.memory_space<vmem>>, vector<1x4x1x14xf32>
    %43 = vector.shape_cast %42 : vector<1x4x1x14xf32> to vector<4x14xf32>
    %44 = vector.shape_cast %41 : vector<4x14xf32> to vector<1x4x1x14xf32>
    tpu.vector_store %arg5[%c0_48, %c8_49, %c0_50, %c0_51], %44 {strides = array<i32>} : memref<1x12x14x14xf32, #tpu.memory_space<vmem>>, vector<1x4x1x14xf32>,
    %c0_52 = arith.constant 0 : index
    %c16_53 = arith.constant 16 : index
    %45 = vector.load %arg7[%c0_52, %c16_53] : memref<8x256xf32, #tpu.memory_space<vmem>>, vector<8x14xf32>
    %c0_54 = arith.constant 0 : index
    %c0_55 = arith.constant 0 : index
    %c1_56 = arith.constant 1 : index
    %c0_57 = arith.constant 0 : index
    %46 = vector.load %arg5[%c0_54, %c0_55, %c1_56, %c0_57] : memref<1x12x14x14xf32, #tpu.memory_space<vmem>>, vector<1x8x1x14xf32>
    %47 = vector.shape_cast %46 : vector<1x8x1x14xf32> to vector<8x14xf32>
    %48 = vector.shape_cast %45 : vector<8x14xf32> to vector<1x8x1x14xf32>
    tpu.vector_store %arg5[%c0_54, %c0_55, %c1_56, %c0_57], %48 {strides = array<i32>} : memref<1x12x14x14xf32, #tpu.memory_space<vmem>>, vector<1x8x1x14xf32>,
    %c0_58 = arith.constant 0 : index
    %c0_59 = arith.constant 0 : index
    %c33_60 = arith.constant 33 : index
    %49 = vector.load %arg1[%c0_58, %c0_59, %c33_60] : memref<1x4x256xf32, #tpu.memory_space<vmem>>, vector<1x4x14xf32>
    %50 = vector.shape_cast %49 : vector<1x4x14xf32> to vector<4x14xf32>
    %c0_61 = arith.constant 0 : index
    %c8_62 = arith.constant 8 : index
    %c1_63 = arith.constant 1 : index
    %c0_64 = arith.constant 0 : index
    %51 = vector.load %arg5[%c0_61, %c8_62, %c1_63, %c0_64] : memref<1x12x14x14xf32, #tpu.memory_space<vmem>>, vector<1x4x1x14xf32>
    %52 = vector.shape_cast %51 : vector<1x4x1x14xf32> to vector<4x14xf32>
    %53 = vector.shape_cast %50 : vector<4x14xf32> to vector<1x4x1x14xf32>
    tpu.vector_store %arg5[%c0_61, %c8_62, %c1_63, %c0_64], %53 {strides = array<i32>} : memref<1x12x14x14xf32, #tpu.memory_space<vmem>>, vector<1x4x1x14xf32>,
    %c0_65 = arith.constant 0 : index
    %c32_66 = arith.constant 32 : index
    %54 = vector.load %arg7[%c0_65, %c32_66] : memref<8x256xf32, #tpu.memory_space<vmem>>, vector<8x14xf32>
    %c0_67 = arith.constant 0 : index
    %c0_68 = arith.constant 0 : index
    %c2_69 = arith.constant 2 : index
    %c0_70 = arith.constant 0 : index
    %55 = vector.load %arg5[%c0_67, %c0_68, %c2_69, %c0_70] : memref<1x12x14x14xf32, #tpu.memory_space<vmem>>, vector<1x8x1x14xf32>
    %56 = vector.shape_cast %55 : vector<1x8x1x14xf32> to vector<8x14xf32>
    %57 = vector.shape_cast %54 : vector<8x14xf32> to vector<1x8x1x14xf32>
    tpu.vector_store %arg5[%c0_67, %c0_68, %c2_69, %c0_70], %57 {strides = array<i32>} : memref<1x12x14x14xf32, #tpu.memory_space<vmem>>, vector<1x8x1x14xf32>,
    %c0_71 = arith.constant 0 : index
    %c0_72 = arith.constant 0 : index
    %c49 = arith.constant 49 : index
    %58 = vector.load %arg1[%c0_71, %c0_72, %c49] : memref<1x4x256xf32, #tpu.memory_space<vmem>>, vector<1x4x14xf32>
    %59 = vector.shape_cast %58 : vector<1x4x14xf32> to vector<4x14xf32>
    %c0_73 = arith.constant 0 : index
    %c8_74 = arith.constant 8 : index
    %c2_75 = arith.constant 2 : index
    %c0_76 = arith.constant 0 : index
    %60 = vector.load %arg5[%c0_73, %c8_74, %c2_75, %c0_76] : memref<1x12x14x14xf32, #tpu.memory_space<vmem>>, vector<1x4x1x14xf32>
    %61 = vector.shape_cast %60 : vector<1x4x1x14xf32> to vector<4x14xf32>
    %62 = vector.shape_cast %59 : vector<4x14xf32> to vector<1x4x1x14xf32>
    tpu.vector_store %arg5[%c0_73, %c8_74, %c2_75, %c0_76], %62 {strides = array<i32>} : memref<1x12x14x14xf32, #tpu.memory_space<vmem>>, vector<1x4x1x14xf32>,
    %c0_77 = arith.constant 0 : index
    %c48 = arith.constant 48 : index
    %63 = vector.load %arg7[%c0_77, %c48] : memref<8x256xf32, #tpu.memory_space<vmem>>, vector<8x14xf32>
    %c0_78 = arith.constant 0 : index
    %c0_79 = arith.constant 0 : index
    %c3 = arith.constant 3 : index
    %c0_80 = arith.constant 0 : index
    %64 = vector.load %arg5[%c0_78, %c0_79, %c3, %c0_80] : memref<1x12x14x14xf32, #tpu.memory_space<vmem>>, vector<1x8x1x14xf32>
    %65 = vector.shape_cast %64 : vector<1x8x1x14xf32> to vector<8x14xf32>
    %66 = vector.shape_cast %63 : vector<8x14xf32> to vector<1x8x1x14xf32>
    tpu.vector_store %arg5[%c0_78, %c0_79, %c3, %c0_80], %66 {strides = array<i32>} : memref<1x12x14x14xf32, #tpu.memory_space<vmem>>, vector<1x8x1x14xf32>,
    %c0_81 = arith.constant 0 : index
    %c0_82 = arith.constant 0 : index
    %c65 = arith.constant 65 : index
    %67 = vector.load %arg1[%c0_81, %c0_82, %c65] : memref<1x4x256xf32, #tpu.memory_space<vmem>>, vector<1x4x14xf32>
    %68 = vector.shape_cast %67 : vector<1x4x14xf32> to vector<4x14xf32>
    %c0_83 = arith.constant 0 : index
    %c8_84 = arith.constant 8 : index
    %c3_85 = arith.constant 3 : index
    %c0_86 = arith.constant 0 : index
    %69 = vector.load %arg5[%c0_83, %c8_84, %c3_85, %c0_86] : memref<1x12x14x14xf32, #tpu.memory_space<vmem>>, vector<1x4x1x14xf32>
    %70 = vector.shape_cast %69 : vector<1x4x1x14xf32> to vector<4x14xf32>
    %71 = vector.shape_cast %68 : vector<4x14xf32> to vector<1x4x1x14xf32>
    tpu.vector_store %arg5[%c0_83, %c8_84, %c3_85, %c0_86], %71 {strides = array<i32>} : memref<1x12x14x14xf32, #tpu.memory_space<vmem>>, vector<1x4x1x14xf32>,
    %c0_87 = arith.constant 0 : index
    %c64 = arith.constant 64 : index
    %72 = vector.load %arg7[%c0_87, %c64] : memref<8x256xf32, #tpu.memory_space<vmem>>, vector<8x14xf32>
    %c0_88 = arith.constant 0 : index
    %c0_89 = arith.constant 0 : index
    %c4_90 = arith.constant 4 : index
    %c0_91 = arith.constant 0 : index
    %73 = vector.load %arg5[%c0_88, %c0_89, %c4_90, %c0_91] : memref<1x12x14x14xf32, #tpu.memory_space<vmem>>, vector<1x8x1x14xf32>
    %74 = vector.shape_cast %73 : vector<1x8x1x14xf32> to vector<8x14xf32>
    %75 = vector.shape_cast %72 : vector<8x14xf32> to vector<1x8x1x14xf32>
    tpu.vector_store %arg5[%c0_88, %c0_89, %c4_90, %c0_91], %75 {strides = array<i32>} : memref<1x12x14x14xf32, #tpu.memory_space<vmem>>, vector<1x8x1x14xf32>,
    %c0_92 = arith.constant 0 : index
    %c0_93 = arith.constant 0 : index
    %c81 = arith.constant 81 : index
    %76 = vector.load %arg1[%c0_92, %c0_93, %c81] : memref<1x4x256xf32, #tpu.memory_space<vmem>>, vector<1x4x14xf32>
    %77 = vector.shape_cast %76 : vector<1x4x14xf32> to vector<4x14xf32>
    %c0_94 = arith.constant 0 : index
    %c8_95 = arith.constant 8 : index
    %c4_96 = arith.constant 4 : index
    %c0_97 = arith.constant 0 : index
    %78 = vector.load %arg5[%c0_94, %c8_95, %c4_96, %c0_97] : memref<1x12x14x14xf32, #tpu.memory_space<vmem>>, vector<1x4x1x14xf32>
    %79 = vector.shape_cast %78 : vector<1x4x1x14xf32> to vector<4x14xf32>
    %80 = vector.shape_cast %77 : vector<4x14xf32> to vector<1x4x1x14xf32>
    tpu.vector_store %arg5[%c0_94, %c8_95, %c4_96, %c0_97], %80 {strides = array<i32>} : memref<1x12x14x14xf32, #tpu.memory_space<vmem>>, vector<1x4x1x14xf32>,
    %c0_98 = arith.constant 0 : index
    %c80 = arith.constant 80 : index
    %81 = vector.load %arg7[%c0_98, %c80] : memref<8x256xf32, #tpu.memory_space<vmem>>, vector<8x14xf32>
    %c0_99 = arith.constant 0 : index
    %c0_100 = arith.constant 0 : index
    %c5 = arith.constant 5 : index
    %c0_101 = arith.constant 0 : index
    %82 = vector.load %arg5[%c0_99, %c0_100, %c5, %c0_101] : memref<1x12x14x14xf32, #tpu.memory_space<vmem>>, vector<1x8x1x14xf32>
    %83 = vector.shape_cast %82 : vector<1x8x1x14xf32> to vector<8x14xf32>
    %84 = vector.shape_cast %81 : vector<8x14xf32> to vector<1x8x1x14xf32>
    tpu.vector_store %arg5[%c0_99, %c0_100, %c5, %c0_101], %84 {strides = array<i32>} : memref<1x12x14x14xf32, #tpu.memory_space<vmem>>, vector<1x8x1x14xf32>,
    %c0_102 = arith.constant 0 : index
    %c0_103 = arith.constant 0 : index
    %c97 = arith.constant 97 : index
    %85 = vector.load %arg1[%c0_102, %c0_103, %c97] : memref<1x4x256xf32, #tpu.memory_space<vmem>>, vector<1x4x14xf32>
    %86 = vector.shape_cast %85 : vector<1x4x14xf32> to vector<4x14xf32>
    %c0_104 = arith.constant 0 : index
    %c8_105 = arith.constant 8 : index
    %c5_106 = arith.constant 5 : index
    %c0_107 = arith.constant 0 : index
    %87 = vector.load %arg5[%c0_104, %c8_105, %c5_106, %c0_107] : memref<1x12x14x14xf32, #tpu.memory_space<vmem>>, vector<1x4x1x14xf32>
    %88 = vector.shape_cast %87 : vector<1x4x1x14xf32> to vector<4x14xf32>
    %89 = vector.shape_cast %86 : vector<4x14xf32> to vector<1x4x1x14xf32>
    tpu.vector_store %arg5[%c0_104, %c8_105, %c5_106, %c0_107], %89 {strides = array<i32>} : memref<1x12x14x14xf32, #tpu.memory_space<vmem>>, vector<1x4x1x14xf32>,
    %c0_108 = arith.constant 0 : index
    %c96 = arith.constant 96 : index
    %90 = vector.load %arg7[%c0_108, %c96] : memref<8x256xf32, #tpu.memory_space<vmem>>, vector<8x14xf32>
    %c0_109 = arith.constant 0 : index
    %c0_110 = arith.constant 0 : index
    %c6 = arith.constant 6 : index
    %c0_111 = arith.constant 0 : index
    %91 = vector.load %arg5[%c0_109, %c0_110, %c6, %c0_111] : memref<1x12x14x14xf32, #tpu.memory_space<vmem>>, vector<1x8x1x14xf32>
    %92 = vector.shape_cast %91 : vector<1x8x1x14xf32> to vector<8x14xf32>
    %93 = vector.shape_cast %90 : vector<8x14xf32> to vector<1x8x1x14xf32>
    tpu.vector_store %arg5[%c0_109, %c0_110, %c6, %c0_111], %93 {strides = array<i32>} : memref<1x12x14x14xf32, #tpu.memory_space<vmem>>, vector<1x8x1x14xf32>,
    %c0_112 = arith.constant 0 : index
    %c0_113 = arith.constant 0 : index
    %c113 = arith.constant 113 : index
    %94 = vector.load %arg1[%c0_112, %c0_113, %c113] : memref<1x4x256xf32, #tpu.memory_space<vmem>>, vector<1x4x14xf32>
    %95 = vector.shape_cast %94 : vector<1x4x14xf32> to vector<4x14xf32>
    %c0_114 = arith.constant 0 : index
    %c8_115 = arith.constant 8 : index
    %c6_116 = arith.constant 6 : index
    %c0_117 = arith.constant 0 : index
    %96 = vector.load %arg5[%c0_114, %c8_115, %c6_116, %c0_117] : memref<1x12x14x14xf32, #tpu.memory_space<vmem>>, vector<1x4x1x14xf32>
    %97 = vector.shape_cast %96 : vector<1x4x1x14xf32> to vector<4x14xf32>
    %98 = vector.shape_cast %95 : vector<4x14xf32> to vector<1x4x1x14xf32>
    tpu.vector_store %arg5[%c0_114, %c8_115, %c6_116, %c0_117], %98 {strides = array<i32>} : memref<1x12x14x14xf32, #tpu.memory_space<vmem>>, vector<1x4x1x14xf32>,
    %c0_118 = arith.constant 0 : index
    %c112 = arith.constant 112 : index
    %99 = vector.load %arg7[%c0_118, %c112] : memref<8x256xf32, #tpu.memory_space<vmem>>, vector<8x14xf32>
    %c0_119 = arith.constant 0 : index
    %c0_120 = arith.constant 0 : index
    %c7 = arith.constant 7 : index
    %c0_121 = arith.constant 0 : index
    %100 = vector.load %arg5[%c0_119, %c0_120, %c7, %c0_121] : memref<1x12x14x14xf32, #tpu.memory_space<vmem>>, vector<1x8x1x14xf32>
    %101 = vector.shape_cast %100 : vector<1x8x1x14xf32> to vector<8x14xf32>
    %102 = vector.shape_cast %99 : vector<8x14xf32> to vector<1x8x1x14xf32>
    tpu.vector_store %arg5[%c0_119, %c0_120, %c7, %c0_121], %102 {strides = array<i32>} : memref<1x12x14x14xf32, #tpu.memory_space<vmem>>, vector<1x8x1x14xf32>,
    %c0_122 = arith.constant 0 : index
    %c0_123 = arith.constant 0 : index
    %c129 = arith.constant 129 : index
    %103 = vector.load %arg1[%c0_122, %c0_123, %c129] : memref<1x4x256xf32, #tpu.memory_space<vmem>>, vector<1x4x14xf32>
    %104 = vector.shape_cast %103 : vector<1x4x14xf32> to vector<4x14xf32>
    %c0_124 = arith.constant 0 : index
    %c8_125 = arith.constant 8 : index
    %c7_126 = arith.constant 7 : index
    %c0_127 = arith.constant 0 : index
    %105 = vector.load %arg5[%c0_124, %c8_125, %c7_126, %c0_127] : memref<1x12x14x14xf32, #tpu.memory_space<vmem>>, vector<1x4x1x14xf32>
    %106 = vector.shape_cast %105 : vector<1x4x1x14xf32> to vector<4x14xf32>
    %107 = vector.shape_cast %104 : vector<4x14xf32> to vector<1x4x1x14xf32>
    tpu.vector_store %arg5[%c0_124, %c8_125, %c7_126, %c0_127], %107 {strides = array<i32>} : memref<1x12x14x14xf32, #tpu.memory_space<vmem>>, vector<1x4x1x14xf32>,
    %c0_128 = arith.constant 0 : index
    %c128 = arith.constant 128 : index
    %108 = vector.load %arg7[%c0_128, %c128] : memref<8x256xf32, #tpu.memory_space<vmem>>, vector<8x14xf32>
    %c0_129 = arith.constant 0 : index
    %c0_130 = arith.constant 0 : index
    %c8_131 = arith.constant 8 : index
    %c0_132 = arith.constant 0 : index
    %109 = vector.load %arg5[%c0_129, %c0_130, %c8_131, %c0_132] : memref<1x12x14x14xf32, #tpu.memory_space<vmem>>, vector<1x8x1x14xf32>
    %110 = vector.shape_cast %109 : vector<1x8x1x14xf32> to vector<8x14xf32>
    %111 = vector.shape_cast %108 : vector<8x14xf32> to vector<1x8x1x14xf32>
    tpu.vector_store %arg5[%c0_129, %c0_130, %c8_131, %c0_132], %111 {strides = array<i32>} : memref<1x12x14x14xf32, #tpu.memory_space<vmem>>, vector<1x8x1x14xf32>,
    %c0_133 = arith.constant 0 : index
    %c0_134 = arith.constant 0 : index
    %c145 = arith.constant 145 : index
    %112 = vector.load %arg1[%c0_133, %c0_134, %c145] : memref<1x4x256xf32, #tpu.memory_space<vmem>>, vector<1x4x14xf32>
    %113 = vector.shape_cast %112 : vector<1x4x14xf32> to vector<4x14xf32>
    %c0_135 = arith.constant 0 : index
    %c8_136 = arith.constant 8 : index
    %c8_137 = arith.constant 8 : index
    %c0_138 = arith.constant 0 : index
    %114 = vector.load %arg5[%c0_135, %c8_136, %c8_137, %c0_138] : memref<1x12x14x14xf32, #tpu.memory_space<vmem>>, vector<1x4x1x14xf32>
    %115 = vector.shape_cast %114 : vector<1x4x1x14xf32> to vector<4x14xf32>
    %116 = vector.shape_cast %113 : vector<4x14xf32> to vector<1x4x1x14xf32>
    tpu.vector_store %arg5[%c0_135, %c8_136, %c8_137, %c0_138], %116 {strides = array<i32>} : memref<1x12x14x14xf32, #tpu.memory_space<vmem>>, vector<1x4x1x14xf32>,
    %c0_139 = arith.constant 0 : index
    %c144 = arith.constant 144 : index
    %117 = vector.load %arg7[%c0_139, %c144] : memref<8x256xf32, #tpu.memory_space<vmem>>, vector<8x14xf32>
    %c0_140 = arith.constant 0 : index
    %c0_141 = arith.constant 0 : index
    %c9 = arith.constant 9 : index
    %c0_142 = arith.constant 0 : index
    %118 = vector.load %arg5[%c0_140, %c0_141, %c9, %c0_142] : memref<1x12x14x14xf32, #tpu.memory_space<vmem>>, vector<1x8x1x14xf32>
    %119 = vector.shape_cast %118 : vector<1x8x1x14xf32> to vector<8x14xf32>
    %120 = vector.shape_cast %117 : vector<8x14xf32> to vector<1x8x1x14xf32>
    tpu.vector_store %arg5[%c0_140, %c0_141, %c9, %c0_142], %120 {strides = array<i32>} : memref<1x12x14x14xf32, #tpu.memory_space<vmem>>, vector<1x8x1x14xf32>,
    %c0_143 = arith.constant 0 : index
    %c0_144 = arith.constant 0 : index
    %c161 = arith.constant 161 : index
    %121 = vector.load %arg1[%c0_143, %c0_144, %c161] : memref<1x4x256xf32, #tpu.memory_space<vmem>>, vector<1x4x14xf32>
    %122 = vector.shape_cast %121 : vector<1x4x14xf32> to vector<4x14xf32>
    %c0_145 = arith.constant 0 : index
    %c8_146 = arith.constant 8 : index
    %c9_147 = arith.constant 9 : index
    %c0_148 = arith.constant 0 : index
    %123 = vector.load %arg5[%c0_145, %c8_146, %c9_147, %c0_148] : memref<1x12x14x14xf32, #tpu.memory_space<vmem>>, vector<1x4x1x14xf32>
    %124 = vector.shape_cast %123 : vector<1x4x1x14xf32> to vector<4x14xf32>
    %125 = vector.shape_cast %122 : vector<4x14xf32> to vector<1x4x1x14xf32>
    tpu.vector_store %arg5[%c0_145, %c8_146, %c9_147, %c0_148], %125 {strides = array<i32>} : memref<1x12x14x14xf32, #tpu.memory_space<vmem>>, vector<1x4x1x14xf32>,
    %c0_149 = arith.constant 0 : index
    %c160 = arith.constant 160 : index
    %126 = vector.load %arg7[%c0_149, %c160] : memref<8x256xf32, #tpu.memory_space<vmem>>, vector<8x14xf32>
    %c0_150 = arith.constant 0 : index
    %c0_151 = arith.constant 0 : index
    %c10 = arith.constant 10 : index
    %c0_152 = arith.constant 0 : index
    %127 = vector.load %arg5[%c0_150, %c0_151, %c10, %c0_152] : memref<1x12x14x14xf32, #tpu.memory_space<vmem>>, vector<1x8x1x14xf32>
    %128 = vector.shape_cast %127 : vector<1x8x1x14xf32> to vector<8x14xf32>
    %129 = vector.shape_cast %126 : vector<8x14xf32> to vector<1x8x1x14xf32>
    tpu.vector_store %arg5[%c0_150, %c0_151, %c10, %c0_152], %129 {strides = array<i32>} : memref<1x12x14x14xf32, #tpu.memory_space<vmem>>, vector<1x8x1x14xf32>,
    %c0_153 = arith.constant 0 : index
    %c0_154 = arith.constant 0 : index
    %c177 = arith.constant 177 : index
    %130 = vector.load %arg1[%c0_153, %c0_154, %c177] : memref<1x4x256xf32, #tpu.memory_space<vmem>>, vector<1x4x14xf32>
    %131 = vector.shape_cast %130 : vector<1x4x14xf32> to vector<4x14xf32>
    %c0_155 = arith.constant 0 : index
    %c8_156 = arith.constant 8 : index
    %c10_157 = arith.constant 10 : index
    %c0_158 = arith.constant 0 : index
    %132 = vector.load %arg5[%c0_155, %c8_156, %c10_157, %c0_158] : memref<1x12x14x14xf32, #tpu.memory_space<vmem>>, vector<1x4x1x14xf32>
    %133 = vector.shape_cast %132 : vector<1x4x1x14xf32> to vector<4x14xf32>
    %134 = vector.shape_cast %131 : vector<4x14xf32> to vector<1x4x1x14xf32>
    tpu.vector_store %arg5[%c0_155, %c8_156, %c10_157, %c0_158], %134 {strides = array<i32>} : memref<1x12x14x14xf32, #tpu.memory_space<vmem>>, vector<1x4x1x14xf32>,
    %c0_159 = arith.constant 0 : index
    %c176 = arith.constant 176 : index
    %135 = vector.load %arg7[%c0_159, %c176] : memref<8x256xf32, #tpu.memory_space<vmem>>, vector<8x14xf32>
    %c0_160 = arith.constant 0 : index
    %c0_161 = arith.constant 0 : index
    %c11 = arith.constant 11 : index
    %c0_162 = arith.constant 0 : index
    %136 = vector.load %arg5[%c0_160, %c0_161, %c11, %c0_162] : memref<1x12x14x14xf32, #tpu.memory_space<vmem>>, vector<1x8x1x14xf32>
    %137 = vector.shape_cast %136 : vector<1x8x1x14xf32> to vector<8x14xf32>
    %138 = vector.shape_cast %135 : vector<8x14xf32> to vector<1x8x1x14xf32>
    tpu.vector_store %arg5[%c0_160, %c0_161, %c11, %c0_162], %138 {strides = array<i32>} : memref<1x12x14x14xf32, #tpu.memory_space<vmem>>, vector<1x8x1x14xf32>,
    %c0_163 = arith.constant 0 : index
    %c0_164 = arith.constant 0 : index
    %c193 = arith.constant 193 : index
    %139 = vector.load %arg1[%c0_163, %c0_164, %c193] : memref<1x4x256xf32, #tpu.memory_space<vmem>>, vector<1x4x14xf32>
    %140 = vector.shape_cast %139 : vector<1x4x14xf32> to vector<4x14xf32>
    %c0_165 = arith.constant 0 : index
    %c8_166 = arith.constant 8 : index
    %c11_167 = arith.constant 11 : index
    %c0_168 = arith.constant 0 : index
    %141 = vector.load %arg5[%c0_165, %c8_166, %c11_167, %c0_168] : memref<1x12x14x14xf32, #tpu.memory_space<vmem>>, vector<1x4x1x14xf32>
    %142 = vector.shape_cast %141 : vector<1x4x1x14xf32> to vector<4x14xf32>
    %143 = vector.shape_cast %140 : vector<4x14xf32> to vector<1x4x1x14xf32>
    tpu.vector_store %arg5[%c0_165, %c8_166, %c11_167, %c0_168], %143 {strides = array<i32>} : memref<1x12x14x14xf32, #tpu.memory_space<vmem>>, vector<1x4x1x14xf32>,
    %c0_169 = arith.constant 0 : index
    %c192 = arith.constant 192 : index
    %144 = vector.load %arg7[%c0_169, %c192] : memref<8x256xf32, #tpu.memory_space<vmem>>, vector<8x14xf32>
    %c0_170 = arith.constant 0 : index
    %c0_171 = arith.constant 0 : index
    %c12_172 = arith.constant 12 : index
    %c0_173 = arith.constant 0 : index
    %145 = vector.load %arg5[%c0_170, %c0_171, %c12_172, %c0_173] : memref<1x12x14x14xf32, #tpu.memory_space<vmem>>, vector<1x8x1x14xf32>
    %146 = vector.shape_cast %145 : vector<1x8x1x14xf32> to vector<8x14xf32>
    %147 = vector.shape_cast %144 : vector<8x14xf32> to vector<1x8x1x14xf32>
    tpu.vector_store %arg5[%c0_170, %c0_171, %c12_172, %c0_173], %147 {strides = array<i32>} : memref<1x12x14x14xf32, #tpu.memory_space<vmem>>, vector<1x8x1x14xf32>,
    %c0_174 = arith.constant 0 : index
    %c0_175 = arith.constant 0 : index
    %c209 = arith.constant 209 : index
    %148 = vector.load %arg1[%c0_174, %c0_175, %c209] : memref<1x4x256xf32, #tpu.memory_space<vmem>>, vector<1x4x14xf32>
    %149 = vector.shape_cast %148 : vector<1x4x14xf32> to vector<4x14xf32>
    %c0_176 = arith.constant 0 : index
    %c8_177 = arith.constant 8 : index
    %c12_178 = arith.constant 12 : index
    %c0_179 = arith.constant 0 : index
    %150 = vector.load %arg5[%c0_176, %c8_177, %c12_178, %c0_179] : memref<1x12x14x14xf32, #tpu.memory_space<vmem>>, vector<1x4x1x14xf32>
    %151 = vector.shape_cast %150 : vector<1x4x1x14xf32> to vector<4x14xf32>
    %152 = vector.shape_cast %149 : vector<4x14xf32> to vector<1x4x1x14xf32>
    tpu.vector_store %arg5[%c0_176, %c8_177, %c12_178, %c0_179], %152 {strides = array<i32>} : memref<1x12x14x14xf32, #tpu.memory_space<vmem>>, vector<1x4x1x14xf32>,
    %c0_180 = arith.constant 0 : index
    %c208 = arith.constant 208 : index
    %153 = vector.load %arg7[%c0_180, %c208] : memref<8x256xf32, #tpu.memory_space<vmem>>, vector<8x14xf32>
    %c0_181 = arith.constant 0 : index
    %c0_182 = arith.constant 0 : index
    %c13 = arith.constant 13 : index
    %c0_183 = arith.constant 0 : index
    %154 = vector.load %arg5[%c0_181, %c0_182, %c13, %c0_183] : memref<1x12x14x14xf32, #tpu.memory_space<vmem>>, vector<1x8x1x14xf32>
    %155 = vector.shape_cast %154 : vector<1x8x1x14xf32> to vector<8x14xf32>
    %156 = vector.shape_cast %153 : vector<8x14xf32> to vector<1x8x1x14xf32>
    tpu.vector_store %arg5[%c0_181, %c0_182, %c13, %c0_183], %156 {strides = array<i32>} : memref<1x12x14x14xf32, #tpu.memory_space<vmem>>, vector<1x8x1x14xf32>,
    %c0_184 = arith.constant 0 : index
    %c0_185 = arith.constant 0 : index
    %c225 = arith.constant 225 : index
    %157 = vector.load %arg1[%c0_184, %c0_185, %c225] : memref<1x4x256xf32, #tpu.memory_space<vmem>>, vector<1x4x14xf32>
    %158 = vector.shape_cast %157 : vector<1x4x14xf32> to vector<4x14xf32>
    %c0_186 = arith.constant 0 : index
    %c8_187 = arith.constant 8 : index
    %c13_188 = arith.constant 13 : index
    %c0_189 = arith.constant 0 : index
    %159 = vector.load %arg5[%c0_186, %c8_187, %c13_188, %c0_189] : memref<1x12x14x14xf32, #tpu.memory_space<vmem>>, vector<1x4x1x14xf32>
    %160 = vector.shape_cast %159 : vector<1x4x1x14xf32> to vector<4x14xf32>
    %161 = vector.shape_cast %158 : vector<4x14xf32> to vector<1x4x1x14xf32>
    tpu.vector_store %arg5[%c0_186, %c8_187, %c13_188, %c0_189], %161 {strides = array<i32>} : memref<1x12x14x14xf32, #tpu.memory_space<vmem>>, vector<1x4x1x14xf32>,
    return
  }
  func.func @transform_0(%arg0: i32) -> (i32, i32, i32) {
    %c0_i32 = arith.constant 0 : i32
    %c0_i32_0 = arith.constant 0 : i32
    %c0_i32_1 = arith.constant 0 : i32
    return %arg0, %c0_i32, %c0_i32_0 : i32, i32, i32
  }
  func.func @transform_1(%arg0: i32) -> (i32, i32) {
    %c0_i32 = arith.constant 0 : i32
    %c0_i32_0 = arith.constant 0 : i32
    %c0_i32_1 = arith.constant 0 : i32
    return %c0_i32, %c0_i32_0 : i32, i32
  }
  func.func @transform_2(%arg0: i32) -> (i32, i32) {
    %c0_i32 = arith.constant 0 : i32
    %c0_i32_0 = arith.constant 0 : i32
    %c0_i32_1 = arith.constant 0 : i32
    return %c0_i32, %c0_i32_0 : i32, i32
  }
  func.func @transform_3(%arg0: i32) -> (i32, i32) {
    %c0_i32 = arith.constant 0 : i32
    %c0_i32_0 = arith.constant 0 : i32
    %c0_i32_1 = arith.constant 0 : i32
    return %c0_i32, %c0_i32_0 : i32, i32
  }
  func.func @transform_4(%arg0: i32) -> (i32, i32, i32, i32) {
    %c0_i32 = arith.constant 0 : i32
    %c0_i32_0 = arith.constant 0 : i32
    %c0_i32_1 = arith.constant 0 : i32
    %c0_i32_2 = arith.constant 0 : i32
    return %arg0, %c0_i32, %c0_i32_0, %c0_i32_1 : i32, i32, i32, i32
  }
}

</mosaic_0001>

<llo_original>
// kernel: tpu_custom_call.1
$region0: #{tpu_custom_call.1}
  #allocation0 [shape = 'u32[]', space=smem, size = 0x4, offset = 0x4, fixed_abs, tag = 'smem constant byte address 0x4 - core index']
  #allocation1 [shape = 'u32[144,128]{1,0:T(1,128)}', space=vmem, size = 0x12000, scoped, tag = 'internal scratch']
  #allocation2 [shape = 'bf16[4,384]{1,0:T(4,128)(2,1)}', space=vmem, size = 0xc00, scoped, tag = 'scratch operand']
  #allocation3 [shape = 'f32[8,256]{1,0:T(8,128)}', space=vmem, size = 0x2000, scoped, tag = 'scratch operand']
  #allocation4 [shape = 'bf16[36,256]{1,0:T(8,128)(2,1)}', space=vmem, size = 0x5000, scoped, tag = 'scratch operand']
  %s0 = inlined_call_operand.hbm [shape: f32[2,4,256], index: 0, kind: input, shape index: {}]
  %s1 = inlined_call_operand.vmem [shape: f32[4,1], index: 1, kind: input, shape index: {}]
  %s2 = inlined_call_operand.vmem [shape: f32[4,1], index: 2, kind: input, shape index: {}]
  %s3 = inlined_call_operand.vmem [shape: bf16[8,36], index: 3, kind: input, shape index: {}]
  %s4 = inlined_call_operand.vmem [shape: f32[2,12,14,14], index: 4, kind: output, shape index: {}]
  %s5 = sld [smem:[#allocation0]]
  $region53: #{tpu_custom_call.1} parent=0
    _
  %s7 = ssub.s32 1, %s5
  %s8 = scalar_select 0, %s7, %s5
  $region1: #{tpu_custom_call.1} parent=0
    #allocation5 [shape = 'u8[8192]{0}', space=vmem, size = 0x2000, scoped, tag = 'input window, operand 0']
    #allocation6 [shape = 's32[2]{0}', space=sflag, size = 0x8, scoped, tag = 'scoped memory for tpu_custom_call.1']
    %9 = vsyncpa [#allocation6], 0
    %s10 = scalar_lea.sflag [#allocation6], 1
    %11 = vsyncpa %s10, 0
    loop: start=0, step=1, limit=4
    $region2: #{tpu_custom_call.1} parent=1 // loop_pre_header
      _
    $region3: #{tpu_custom_call.1} parent=1 // loop_header
      %s13 = sphi 0, %s17
      %p14 = scmp.ge.s32.totalorder %s13, 4
      %s23 = sphi 0, %s25
      %s26 = sphi 0, %s23
      %s27 = sphi 0, %s26
      %s43 = sphi 0, %s27
      %s47 = sphi 0, %s47
      %s49 = sphi 0, %s47
      %s50 = sphi 0, %s49
      %s64 = sphi 0, %s50
      %s68 = sphi 0, %s68
      %s70 = sphi 0, %s68
      %s71 = sphi 0, %s70
      %s85 = sphi 0, %s71
      %s89 = sphi 0, %s89
      %s91 = sphi 0, %s89
      %s92 = sphi 0, %s91
      %s106 = sphi 0, %s92
      %s112 = sphi 0, %s114
      %s115 = sphi 0, %s112
      %s116 = sphi 0, %s115
      %s132 = sphi 0, %s116
    $region4: #{tpu_custom_call.1} parent=1 // loop_header_branch
      %16 = sbr.rel (%p14) target = $region8
    $region5: #{tpu_custom_call.1} parent=1 // loop_body
      %s18 = ssub.s32 %s13, 1
      %s19 = ssub.s32 %s13, 2
      %s20 = sadd.s32 %s13, 1
      %s21 = ssub.s32 %s13, %s20
      %p22 = scmp.eq.s32.totalorder %s21, 0
      %s24 = sadd.s32 %s23, 1
      %s25 = scalar_select %p22, %s23, %s24
      %p28 = pneg %p22
      %p29 = scmp.eq.s32.totalorder %s13, 1
      %p30 = por %p28, %p29
      %p31 = scmp.ne.s32.totalorder %s23, %s26
      %p32 = scmp.eq.s32.totalorder %s13, 0
      %p33 = por %p31, %p32
      %p34 = scmp.ne.s32.totalorder %s23, %s26
      %p35 = scmp.eq.s32.totalorder %s18, 1
      %p36 = por %p34, %p35
      %p37 = scmp.ne.s32.totalorder %s26, %s27
      %p38 = scmp.eq.s32.totalorder %s18, 0
      %p39 = por %p37, %p38
      %p40 = scmp.ne.s32.totalorder %s26, %s27
      %p41 = scmp.eq.s32.totalorder %s19, 1
      %p42 = por %p40, %p41
      %p44 = scmp.ne.s32.totalorder %s27, %s43
      %p45 = scmp.eq.s32.totalorder %s19, 0
      %p46 = por %p44, %p45
      %s48 = sadd.s32 %s47, 1
      %p51 = scmp.eq.s32.totalorder %s13, 1
      %p52 = scmp.ne.s32.totalorder %s47, %s49
      %p53 = scmp.eq.s32.totalorder %s13, 0
      %p54 = por %p52, %p53
      %p55 = scmp.ne.s32.totalorder %s47, %s49
      %p56 = scmp.eq.s32.totalorder %s18, 1
      %p57 = por %p55, %p56
      %p58 = scmp.ne.s32.totalorder %s49, %s50
      %p59 = scmp.eq.s32.totalorder %s18, 0
      %p60 = por %p58, %p59
      %p61 = scmp.ne.s32.totalorder %s49, %s50
      %p62 = scmp.eq.s32.totalorder %s19, 1
      %p63 = por %p61, %p62
      %p65 = scmp.ne.s32.totalorder %s50, %s64
      %p66 = scmp.eq.s32.totalorder %s19, 0
      %p67 = por %p65, %p66
      %s69 = sadd.s32 %s68, 1
      %p72 = scmp.eq.s32.totalorder %s13, 1
      %p73 = scmp.ne.s32.totalorder %s68, %s70
      %p74 = scmp.eq.s32.totalorder %s13, 0
      %p75 = por %p73, %p74
      %p76 = scmp.ne.s32.totalorder %s68, %s70
      %p77 = scmp.eq.s32.totalorder %s18, 1
      %p78 = por %p76, %p77
      %p79 = scmp.ne.s32.totalorder %s70, %s71
      %p80 = scmp.eq.s32.totalorder %s18, 0
      %p81 = por %p79, %p80
      %p82 = scmp.ne.s32.totalorder %s70, %s71
      %p83 = scmp.eq.s32.totalorder %s19, 1
      %p84 = por %p82, %p83
      %p86 = scmp.ne.s32.totalorder %s71, %s85
      %p87 = scmp.eq.s32.totalorder %s19, 0
      %p88 = por %p86, %p87
      %s90 = sadd.s32 %s89, 1
      %p93 = scmp.eq.s32.totalorder %s13, 1
      %p94 = scmp.ne.s32.totalorder %s89, %s91
      %p95 = scmp.eq.s32.totalorder %s13, 0
      %p96 = por %p94, %p95
      %p97 = scmp.ne.s32.totalorder %s89, %s91
      %p98 = scmp.eq.s32.totalorder %s18, 1
      %p99 = por %p97, %p98
      %p100 = scmp.ne.s32.totalorder %s91, %s92
      %p101 = scmp.eq.s32.totalorder %s18, 0
      %p102 = por %p100, %p101
      %p103 = scmp.ne.s32.totalorder %s91, %s92
      %p104 = scmp.eq.s32.totalorder %s19, 1
      %p105 = por %p103, %p104
      %p107 = scmp.ne.s32.totalorder %s92, %s106
      %p108 = scmp.eq.s32.totalorder %s19, 0
      %p109 = por %p107, %p108
      %s110 = ssub.s32 %s13, %s20
      %p111 = scmp.eq.s32.totalorder %s110, 0
      %s113 = sadd.s32 %s112, 1
      %s114 = scalar_select %p111, %s112, %s113
      %p117 = pneg %p111
      %p118 = scmp.eq.s32.totalorder %s13, 1
      %p119 = por %p117, %p118
      %p120 = scmp.ne.s32.totalorder %s112, %s115
      %p121 = scmp.eq.s32.totalorder %s13, 0
      %p122 = por %p120, %p121
      %p123 = scmp.ne.s32.totalorder %s112, %s115
      %p124 = scmp.eq.s32.totalorder %s18, 1
      %p125 = por %p123, %p124
      %p126 = scmp.ne.s32.totalorder %s115, %s116
      %p127 = scmp.eq.s32.totalorder %s18, 0
      %p128 = por %p126, %p127
      %p129 = scmp.ne.s32.totalorder %s115, %s116
      %p130 = scmp.eq.s32.totalorder %s19, 1
      %p131 = por %p129, %p130
      %p133 = scmp.ne.s32.totalorder %s116, %s132
      %p134 = scmp.eq.s32.totalorder %s19, 0
      %p135 = por %p133, %p134
      %p136 = scmp.le.s32.totalorder 1, %s13
      %p137 = scmp.lt.s32.totalorder %s13, 3
      %p138 = pnand %p136, %p137
      %p139 = pneg %p138
      // Predicated region
      $region9: #{tpu_custom_call.1} parent=5 // pred_check
        _
      $region10: #{tpu_custom_call.1} parent=5 // pred_check_branch
        %141 = sbr.rel (%p138) target = $region12
      $region11: #{tpu_custom_call.1} parent=5 // pred_region
        %s142 = ssub.s32 %s13, 1
        // Predicated region
        $region13: #{tpu_custom_call.1} parent=11 // pred_check
          %p143 = pneg %p60
        $region14: #{tpu_custom_call.1} parent=11 // pred_check_branch
          %145 = sbr.rel (%p143) target = $region16
        $region15: #{tpu_custom_call.1} parent=11 // pred_region
          _
        $region16: #{tpu_custom_call.1} parent=11 // pred_fallthru
          _
        // Predicated region
        $region17: #{tpu_custom_call.1} parent=11 // pred_check
          %p146 = pneg %p81
        $region18: #{tpu_custom_call.1} parent=11 // pred_check_branch
          %148 = sbr.rel (%p146) target = $region20
        $region19: #{tpu_custom_call.1} parent=11 // pred_region
          _
        $region20: #{tpu_custom_call.1} parent=11 // pred_fallthru
          _
        // Predicated region
        $region21: #{tpu_custom_call.1} parent=11 // pred_check
          %p149 = pneg %p102
        $region22: #{tpu_custom_call.1} parent=11 // pred_check_branch
          %151 = sbr.rel (%p149) target = $region24
        $region23: #{tpu_custom_call.1} parent=11 // pred_region
          _
        $region24: #{tpu_custom_call.1} parent=11 // pred_fallthru
          _
      $region12: #{tpu_custom_call.1} parent=5 // pred_fallthru
        _
      %p152 = scmp.lt.s32.totalorder %s13, 2
      // Predicated region
      $region25: #{tpu_custom_call.1} parent=5 // pred_check
        %p153 = pneg %p152
      $region26: #{tpu_custom_call.1} parent=5 // pred_check_branch
        %155 = sbr.rel (%p153) target = $region28
      $region27: #{tpu_custom_call.1} parent=5 // pred_region
        // Predicated region
        $region29: #{tpu_custom_call.1} parent=27 // pred_check
          %p156 = pneg %p33
        $region30: #{tpu_custom_call.1} parent=27 // pred_check_branch
          %158 = sbr.rel (%p156) target = $region32
        $region31: #{tpu_custom_call.1} parent=27 // pred_region
          %s159 = sand.u32 %s23, 1
          %s160 = scalar_lea.sflag [#allocation6], %s159
          %s161 = sand.u32 %s23, 1
          %s162 = smul.addr %s161, 8
          %s163 = scalar_lea.vmem [#allocation5], %s162
          %s165 = ssub.s32 128, 128
          %166 = vsyncadd %s160, %s165
          %s167 = smul.addr %s13, 2
          %s168 = smul.addr %s167, 64
          %s169 = scalar_lea.hbm %s0, %s168
          %s171 = sshll.u32 %s163, 4
          %s172 = int_to_ptr.vmem [resolvable:$true] %s171
          %174 = dma.hbm_to_vmem [thread:$0]  %s169, 128, %s172, %s160
        $region32: #{tpu_custom_call.1} parent=27 // pred_fallthru
          _
      $region28: #{tpu_custom_call.1} parent=5 // pred_fallthru
        _
      %p175 = scmp.le.s32.totalorder 1, %s13
      %p176 = scmp.lt.s32.totalorder %s13, 3
      %p177 = pnand %p175, %p176
      %p178 = pneg %p177
      // Predicated region
      $region33: #{tpu_custom_call.1} parent=5 // pred_check
        _
      $region34: #{tpu_custom_call.1} parent=5 // pred_check_branch
        %180 = sbr.rel (%p177) target = $region36
      $region35: #{tpu_custom_call.1} parent=5 // pred_region
        %s181 = ssub.s32 %s13, 1
        %s182 = sand.u32 %s26, 1
        %s183 = scalar_lea.sflag [#allocation6], %s182
        %s184 = sand.u32 %s26, 1
        %s185 = smul.addr %s184, 8
        %s186 = scalar_lea.vmem [#allocation5], %s185
        // Predicated region
        $region37: #{tpu_custom_call.1} parent=35 // pred_check
          %p187 = pneg %p39
        $region38: #{tpu_custom_call.1} parent=35 // pred_check_branch
          %189 = sbr.rel (%p187) target = $region40
        $region39: #{tpu_custom_call.1} parent=35 // pred_region
          %190 = dma.done %s183, 128
        $region40: #{tpu_custom_call.1} parent=35 // pred_fallthru
          _
        %s191 = sand.u32 %s26, 1
        %s192 = scalar_lea.sflag [#allocation6], %s191
        %s193 = sand.u32 %s26, 1
        %s194 = smul.addr %s193, 8
        %s195 = scalar_lea.vmem [#allocation5], %s194
        %p196 = pneg %p39
        %p197 = pneg %p36
        %p198 = pneg %p60
        %p199 = pneg %p57
        %p200 = pneg %p81
        %p201 = pneg %p78
        %p202 = pneg %p102
        %p203 = pneg %p99
        %p204 = pneg %p128
        %p205 = pneg %p125
        %p206 = scmp.lt.s32.totalorder %s18, 1
        %s207 = scalar_select %p206, %s18, 1
        %s208 = smul.addr %s207, 24
        %s209 = smul.addr %s208, 8
        %s210 = scalar_lea.vmem %s4, %s209
        %p211 = scmp.lt.s32.totalorder %s18, 1
        %s212 = scalar_select %p211, %s18, 1
        %s213 = smul.addr %s212, 24
        %s214 = smul.addr %s213, 8
        %s215 = scalar_lea.vmem %s4, %s214
        %v217 = vld [vmem:[%s186] sm:$0xff]
        %v218 = vld [vmem:[%s1] sm:$0xf]
        %220 = vset.pattern.permute.xlu0 0
        %221 = vperm.xlu0 %220, %v218
        %v222 = vpop.permute.xlu0 %221
        %v224 = vunpack.c.l.s4 839922192
        %v225 = vunpack.c.0.s8 %v224
        %v226 = vlaneseq
        %v227 = vshrl.u32 %v226, 7
        %v228 = vsub.s32 %v225, %v227
        %v229 = vrot.slane %v222, %v228
        %v231 = vmul.f32 %v217, %v229
        %v232 = vld [vmem:[%s2] sm:$0xf]
        %234 = vset.pattern.permute.xlu0 0
        %235 = vperm.xlu0 %234, %v232
        %v236 = vpop.permute.xlu0 %235
        %v238 = vunpack.c.l.s4 839922192
        %v239 = vunpack.c.0.s8 %v238
        %v240 = vlaneseq
        %v241 = vshrl.u32 %v240, 7
        %v242 = vsub.s32 %v239, %v241
        %v243 = vrot.slane %v236, %v242
        %v245 = vadd.f32 %v231, %v243
        %v246 = vmax.f32 %v245, 0.0
        %v248 = vcombine.high %v246, %v246
        %v250 = vpack.c.bf16 %v246, %v246
        %v251 = vpack.c.bf16 %v248, %v248
        %v254 = vcombine.low %v250, %v251
        %v256 = vunpack.c.l.s4 1983009808
        %v257 = vunpack.c.0.s8 %v256
        %v258 = vlaneseq
        %v259 = vshrl.u32 %v258, 7
        %v260 = vsub.s32 %v257, %v259
        %v261 = vrot.slane %v254, %v260
        %263 = vst [vmem:[#allocation2] sm:$0xf] %v261
        %264 = vst [vmem:[#allocation2 + $0x4] sm:$0x3] 0
        %v265 = vld [vmem:[#allocation2] sm:$0xf]
        %v268 = vunpack.c.l.s4 1983009808
        %v269 = vunpack.c.0.s8 %v268
        %v270 = vlaneseq
        %v271 = vshrl.u32 %v270, 7
        %v272 = vsub.s32 %v269, %v271
        %v273 = vrot.slane %v265, %v272
        %275 = vst [vmem:[#allocation4] sm:$0x33] %v273
        %v276 = vld [vmem:[#allocation2] sm:$0x3f]
        %v278 = vcombine.low %v276, %v276
        %v280 = vunpack.c.l.s4 1983009808
        %v281 = vunpack.c.0.s8 %v280
        %v282 = vlaneseq
        %v283 = vshrl.u32 %v282, 7
        %v284 = vsub.s32 %v281, %v283
        %v285 = vrot.slane %v278, %v284
        %v287 = vunpack.c.l.s4 1983009808
        %v288 = vunpack.c.0.s8 %v287
        %v289 = vlaneseq
        %v290 = vshrl.u32 %v289, 7
        %v291 = vsub.s32 %v288, %v290
        %v292 = vrot.slane %v276, %v291
        %293 = vrot.lane.b32.xlu0 %v285, 127
        %v294 = vpop.permute.xlu0 %293
        %295 = vrot.lane.b32.xlu0 %v292, 127
        %v296 = vpop.permute.xlu0 %295
        %v297 = vrot.slane %v294, 4
        %v298 = vrot.slane %v296, 4
        %vm299 = vcmask 1043456
        %v300 = vsel %vm299, %v297, %v298
        %vm301 = vcmask 1039360
        %v302 = vsel %vm301, %v294, %v300
        %304 = vst [vmem:[#allocation4] sm:$0xcc] %v302
        %v305 = vld [vmem:[#allocation2] sm:$0x3f]
        %v307 = vcombine.high %v305, %v305
        %v309 = vunpack.c.l.s4 1983009808
        %v310 = vunpack.c.0.s8 %v309
        %v311 = vlaneseq
        %v312 = vshrl.u32 %v311, 7
        %v313 = vsub.s32 %v310, %v312
        %v314 = vrot.slane %v305, %v313
        %v316 = vunpack.c.l.s4 1983009808
        %v317 = vunpack.c.0.s8 %v316
        %v318 = vlaneseq
        %v319 = vshrl.u32 %v318, 7
        %v320 = vsub.s32 %v317, %v319
        %v321 = vrot.slane %v307, %v320
        %322 = vrot.lane.b32.xlu0 %v314, 126
        %v323 = vpop.permute.xlu0 %322
        %324 = vrot.lane.b32.xlu0 %v321, 126
        %v325 = vpop.permute.xlu0 %324
        %v326 = vrot.slane %v323, 4
        %v327 = vrot.slane %v325, 4
        %v328 = vsel %vm299, %v326, %v327
        %vm329 = vcmask 1031168
        %v330 = vsel %vm329, %v323, %v328
        %332 = vst [vmem:[#allocation4 + $0x8] sm:$0x33] %v330
        %v333 = vld [vmem:[#allocation2] sm:$0x3f]
        %v335 = vcombine.low %v333, %v333
        %v337 = vunpack.c.l.s4 1983009808
        %v338 = vunpack.c.0.s8 %v337
        %v339 = vlaneseq
        %v340 = vshrl.u32 %v339, 7
        %v341 = vsub.s32 %v338, %v340
        %v342 = vrot.slane %v335, %v341
        %v344 = vunpack.c.l.s4 1983009808
        %v345 = vunpack.c.0.s8 %v344
        %v346 = vlaneseq
        %v347 = vshrl.u32 %v346, 7
        %v348 = vsub.s32 %v345, %v347
        %v349 = vrot.slane %v333, %v348
        %350 = vrot.lane.b32.xlu0 %v342, 112
        %v351 = vpop.permute.xlu0 %350
        %352 = vrot.lane.b32.xlu0 %v349, 112
        %v353 = vpop.permute.xlu0 %352
        %v354 = vrot.slane %v351, 4
        %v355 = vrot.slane %v353, 4
        %v356 = vsel %vm299, %v354, %v355
        %vm357 = vcmask 916480
        %v358 = vsel %vm357, %v351, %v356
        %360 = vst [vmem:[#allocation4 + $0x8] sm:$0xcc] %v358
        %v361 = vld [vmem:[#allocation2] sm:$0x3f]
        %v363 = vcombine.high %v361, %v361
        %v365 = vunpack.c.l.s4 1983009808
        %v366 = vunpack.c.0.s8 %v365
        %v367 = vlaneseq
        %v368 = vshrl.u32 %v367, 7
        %v369 = vsub.s32 %v366, %v368
        %v370 = vrot.slane %v361, %v369
        %v372 = vunpack.c.l.s4 1983009808
        %v373 = vunpack.c.0.s8 %v372
        %v374 = vlaneseq
        %v375 = vshrl.u32 %v374, 7
        %v376 = vsub.s32 %v373, %v375
        %v377 = vrot.slane %v363, %v376
        %378 = vrot.lane.b32.xlu0 %v370, 111
        %v379 = vpop.permute.xlu0 %378
        %380 = vrot.lane.b32.xlu0 %v377, 111
        %v381 = vpop.permute.xlu0 %380
        %v382 = vrot.slane %v379, 4
        %v383 = vrot.slane %v381, 4
        %v384 = vsel %vm299, %v382, %v383
        %vm385 = vcmask 908288
        %v386 = vsel %vm385, %v379, %v384
        %388 = vst [vmem:[#allocation4 + $0x10] sm:$0x33] %v386
        %v389 = vld [vmem:[#allocation2] sm:$0x3f]
        %v391 = vcombine.low %v389, %v389
        %v393 = vunpack.c.l.s4 1983009808
        %v394 = vunpack.c.0.s8 %v393
        %v395 = vlaneseq
        %v396 = vshrl.u32 %v395, 7
        %v397 = vsub.s32 %v394, %v396
        %v398 = vrot.slane %v391, %v397
        %v400 = vunpack.c.l.s4 1983009808
        %v401 = vunpack.c.0.s8 %v400
        %v402 = vlaneseq
        %v403 = vshrl.u32 %v402, 7
        %v404 = vsub.s32 %v401, %v403
        %v405 = vrot.slane %v389, %v404
        %406 = vrot.lane.b32.xlu0 %v398, 110
        %v407 = vpop.permute.xlu0 %406
        %408 = vrot.lane.b32.xlu0 %v405, 110
        %v409 = vpop.permute.xlu0 %408
        %v410 = vrot.slane %v407, 4
        %v411 = vrot.slane %v409, 4
        %v412 = vsel %vm299, %v410, %v411
        %vm413 = vcmask 900096
        %v414 = vsel %vm413, %v407, %v412
        %416 = vst [vmem:[#allocation4 + $0x10] sm:$0xcc] %v414
        %v417 = vld [vmem:[#allocation2] sm:$0x3f]
        %v419 = vcombine.high %v417, %v417
        %v421 = vunpack.c.l.s4 1983009808
        %v422 = vunpack.c.0.s8 %v421
        %v423 = vlaneseq
        %v424 = vshrl.u32 %v423, 7
        %v425 = vsub.s32 %v422, %v424
        %v426 = vrot.slane %v417, %v425
        %v428 = vunpack.c.l.s4 1983009808
        %v429 = vunpack.c.0.s8 %v428
        %v430 = vlaneseq
        %v431 = vshrl.u32 %v430, 7
        %v432 = vsub.s32 %v429, %v431
        %v433 = vrot.slane %v419, %v432
        %434 = vrot.lane.b32.xlu0 %v426, 96
        %v435 = vpop.permute.xlu0 %434
        %436 = vrot.lane.b32.xlu0 %v433, 96
        %v437 = vpop.permute.xlu0 %436
        %v438 = vrot.slane %v435, 4
        %v439 = vrot.slane %v437, 4
        %v440 = vsel %vm299, %v438, %v439
        %vm441 = vcmask 785408
        %v442 = vsel %vm441, %v435, %v440
        %444 = vst [vmem:[#allocation4 + $0x18] sm:$0x33] %v442
        %v445 = vld [vmem:[#allocation2] sm:$0x3f]
        %v447 = vcombine.low %v445, %v445
        %v449 = vunpack.c.l.s4 1983009808
        %v450 = vunpack.c.0.s8 %v449
        %v451 = vlaneseq
        %v452 = vshrl.u32 %v451, 7
        %v453 = vsub.s32 %v450, %v452
        %v454 = vrot.slane %v447, %v453
        %v456 = vunpack.c.l.s4 1983009808
        %v457 = vunpack.c.0.s8 %v456
        %v458 = vlaneseq
        %v459 = vshrl.u32 %v458, 7
        %v460 = vsub.s32 %v457, %v459
        %v461 = vrot.slane %v445, %v460
        %462 = vrot.lane.b32.xlu0 %v454, 95
        %v463 = vpop.permute.xlu0 %462
        %464 = vrot.lane.b32.xlu0 %v461, 95
        %v465 = vpop.permute.xlu0 %464
        %v466 = vrot.slane %v463, 4
        %v467 = vrot.slane %v465, 4
        %v468 = vsel %vm299, %v466, %v467
        %vm469 = vcmask 777216
        %v470 = vsel %vm469, %v463, %v468
        %472 = vst [vmem:[#allocation4 + $0x18] sm:$0xcc] %v470
        %v473 = vld [vmem:[#allocation2] sm:$0x3f]
        %v475 = vcombine.high %v473, %v473
        %v477 = vunpack.c.l.s4 1983009808
        %v478 = vunpack.c.0.s8 %v477
        %v479 = vlaneseq
        %v480 = vshrl.u32 %v479, 7
        %v481 = vsub.s32 %v478, %v480
        %v482 = vrot.slane %v473, %v481
        %v484 = vunpack.c.l.s4 1983009808
        %v485 = vunpack.c.0.s8 %v484
        %v486 = vlaneseq
        %v487 = vshrl.u32 %v486, 7
        %v488 = vsub.s32 %v485, %v487
        %v489 = vrot.slane %v475, %v488
        %490 = vrot.lane.b32.xlu0 %v482, 94
        %v491 = vpop.permute.xlu0 %490
        %492 = vrot.lane.b32.xlu0 %v489, 94
        %v493 = vpop.permute.xlu0 %492
        %v494 = vrot.slane %v491, 4
        %v495 = vrot.slane %v493, 4
        %v496 = vsel %vm299, %v494, %v495
        %vm497 = vcmask 769024
        %v498 = vsel %vm497, %v491, %v496
        %500 = vst [vmem:[#allocation4 + $0x20] sm:$0x33] %v498
        %v501 = vld [vmem:[%s3] sm:$0xf]
        %v502 = vld [vmem:[#allocation4] sm:$0xff]
        %v503 = vld [vmem:[#allocation4 + $0x8] sm:$0xff]
        %v504 = vld [vmem:[#allocation4 + $0x10] sm:$0xff]
        %v505 = vld [vmem:[#allocation4 + $0x18] sm:$0xff]
        %v506 = vld [vmem:[#allocation4 + $0x20] sm:$0x33]
        %v512 = vunpack.c.l.b16 %v502
        %v513 = vunpack.c.h.b16 %v502
        %v514 = vunpack.c.l.b16 %v503
        %v515 = vunpack.c.h.b16 %v503
        %v516 = vunpack.c.l.b16 %v504
        %v517 = vunpack.c.h.b16 %v504
        %v518 = vunpack.c.l.b16 %v505
        %v519 = vunpack.c.h.b16 %v505
        %v520 = vunpack.c.l.b16 %v506
        %v521 = vunpack.c.h.b16 %v506
        %v522 = vpack.c.b16 %v514, %v512
        %v523 = vpack.c.b16 %v515, %v513
        %v524 = vpack.c.b16 %v518, %v516
        %v525 = vpack.c.b16 %v519, %v517
        %v526 = vpack.c.b16 %v520, %v520
        %v527 = vpack.c.b16 %v521, %v521
        %vm532 = vcmask 293888
        %v534 = vsel %vm532, %v501, 0
        %vm536 = vcmask 1041408
        %v538 = vsel %vm536, %v526, 0
        %v541 = vsel %vm536, %v527, 0
        %543 = vmatprep.subr.bf16.mxu0 %v523
        %544 = vmatpush1.bf16.msra.mxu0 %v522
        %545 = vmatprep.subr.bf16.mxu0 %v525
        %546 = vmatpush1.bf16.msra.mxu0 %v524
        %547 = vmatprep.subr.bf16.mxu0 %v541
        %548 = vmatpush1.bf16.msra.mxu0 %v538
        %549 = vmatprep.subr.bf16.mxu0 0
        %550 = vmatpush1.bf16.msra.mxu0 0
        %551 = vmatprep.subr.bf16.mxu0 0
        %552 = vmatpush1.bf16.msra.mxu0 0
        %553 = vmatprep.subr.bf16.mxu0 0
        %554 = vmatpush1.bf16.msra.mxu0 0
        %555 = vmatprep.subr.bf16.mxu0 0
        %556 = vmatpush1.bf16.msra.mxu0 0
        %557 = vmatprep.subr.bf16.mxu0 0
        %558 = vmatpush1.bf16.msra.mxu0 0
        %559 = vmatprep.subr.bf16.mxu0 0
        %560 = vmatpush1.bf16.msra.mxu0 0
        %561 = vmatprep.subr.bf16.mxu0 0
        %562 = vmatpush1.bf16.msra.mxu0 0
        %563 = vmatprep.subr.bf16.mxu0 0
        %564 = vmatpush1.bf16.msra.mxu0 0
        %565 = vmatprep.subr.bf16.mxu0 0
        %566 = vmatpush1.bf16.msra.mxu0 0
        %567 = vmatprep.subr.bf16.mxu0 0
        %568 = vmatpush1.bf16.msra.mxu0 0
        %569 = vmatprep.subr.bf16.mxu0 0
        %570 = vmatpush1.bf16.msra.mxu0 0
        %571 = vmatprep.subr.bf16.mxu0 0
        %572 = vmatpush1.bf16.msra.mxu0 0
        %573 = vmatprep.subr.bf16.mxu0 0
        %574 = vmatpush1.bf16.msra.mxu0 0
        %575 = vmatprep.mubr.bf16.mxu0 0
        %576 = vmatmul.mubr.bf16.gmra.mrb[0].mxu0 %v534
        %v577 = vpop.f32.mrb[0].mxu0
        %v578 = vadd.f32 0.0, %v577
        %v579 = vpop.f32.mrb[0].mxu0
        %v580 = vadd.f32 0.0, %v579
        %v581 = vpop.f32.mrb[0].mxu0
        %v582 = vpop.f32.mrb[0].mxu0
        %583 = vdwg.mxu0
        %584 = vst [vmem:[#allocation3] sm:$0xff] %v578
        %585 = vst [vmem:[#allocation3 + $0x8] sm:$0xff] %v580
        %v586 = vld [vmem:[#allocation3] sm:$0xff]
        %v588 = vcombine.high %v586, %v586
        %v590 = vunpack.c.l.s4 1966171168
        %v591 = vunpack.c.0.s8 %v590
        %v592 = vlaneseq
        %v593 = vshrl.u32 %v592, 7
        %v594 = vsub.s32 %v591, %v593
        %v595 = vrot.slane %v586, %v594
        %v597 = vunpack.c.l.s4 1966171168
        %v598 = vunpack.c.0.s8 %v597
        %v599 = vlaneseq
        %v600 = vshrl.u32 %v599, 7
        %v601 = vsub.s32 %v598, %v600
        %v602 = vrot.slane %v588, %v601
        %v603 = vcombine.high %v595, %v595
        %v604 = vcombine.high %v602, %v602
        %v606 = vunpack.c.l.s4 1966171168
        %v607 = vunpack.c.0.s8 %v606
        %v608 = vlaneseq
        %v609 = vshrl.u32 %v608, 7
        %v610 = vsub.s32 %v607, %v609
        %v611 = vrot.slane %v595, %v610
        %v613 = vunpack.c.l.s4 1966171168
        %v614 = vunpack.c.0.s8 %v613
        %v615 = vlaneseq
        %v616 = vshrl.u32 %v615, 7
        %v617 = vsub.s32 %v614, %v616
        %v618 = vrot.slane %v602, %v617
        %v620 = vunpack.c.l.s4 1966171168
        %v621 = vunpack.c.0.s8 %v620
        %v622 = vlaneseq
        %v623 = vshrl.u32 %v622, 7
        %v624 = vsub.s32 %v621, %v623
        %v625 = vrot.slane %v603, %v624
        %v627 = vunpack.c.l.s4 1966171168
        %v628 = vunpack.c.0.s8 %v627
        %v629 = vlaneseq
        %v630 = vshrl.u32 %v629, 7
        %v631 = vsub.s32 %v628, %v630
        %v632 = vrot.slane %v604, %v631
        %v633 = vcombine.high %v611, %v611
        %v634 = vcombine.high %v618, %v618
        %v635 = vcombine.high %v625, %v625
        %v636 = vcombine.high %v632, %v632
        %vm645 = vcmask 106496
        %646 = vst.msk [vmem:[%s215] sm:$0x1] %vm645, %v611
        %647 = vst.msk [vmem:[%s215 + $0x10] sm:$0x1] %vm645, %v625
        %648 = vst.msk [vmem:[%s215 + $0x20] sm:$0x1] %vm645, %v633
        %649 = vst.msk [vmem:[%s215 + $0x30] sm:$0x1] %vm645, %v635
        %650 = vst.msk [vmem:[%s215 + $0x40] sm:$0x1] %vm645, %v618
        %651 = vst.msk [vmem:[%s215 + $0x50] sm:$0x1] %vm645, %v632
        %652 = vst.msk [vmem:[%s215 + $0x60] sm:$0x1] %vm645, %v634
        %653 = vst.msk [vmem:[%s215 + $0x70] sm:$0x1] %vm645, %v636
        %v654 = vld [vmem:[%s186] sm:$0xf]
        %v657 = vunpack.c.l.s4 1966171168
        %v658 = vunpack.c.0.s8 %v657
        %v659 = vlaneseq
        %v660 = vshrl.u32 %v659, 7
        %v661 = vsub.s32 %v658, %v660
        %v662 = vrot.slane %v654, %v661
        %v663 = vcombine.high %v662, %v662
        %v665 = vunpack.c.l.s4 1966171168
        %v666 = vunpack.c.0.s8 %v665
        %v667 = vlaneseq
        %v668 = vshrl.u32 %v667, 7
        %v669 = vsub.s32 %v666, %v668
        %v670 = vrot.slane %v662, %v669
        %v672 = vunpack.c.l.s4 1966171168
        %v673 = vunpack.c.0.s8 %v672
        %v674 = vlaneseq
        %v675 = vshrl.u32 %v674, 7
        %v676 = vsub.s32 %v673, %v675
        %v677 = vrot.slane %v663, %v676
        %v678 = vcombine.high %v670, %v670
        %v679 = vcombine.high %v677, %v677
        %v680 = vlaneseq
        %v681 = vshrl.u32 %v680, 7
        %v682 = vsub.s32 0, %v681
        %v683 = vrot.slane %v670, %v682
        %v684 = vlaneseq
        %v685 = vshrl.u32 %v684, 7
        %v686 = vsub.s32 0, %v685
        %v687 = vrot.slane %v677, %v686
        %v688 = vlaneseq
        %v689 = vshrl.u32 %v688, 7
        %v690 = vsub.s32 0, %v689
        %v691 = vrot.slane %v678, %v690
        %v692 = vlaneseq
        %v693 = vshrl.u32 %v692, 7
        %v694 = vsub.s32 0, %v693
        %v695 = vrot.slane %v679, %v694
        %696 = vrot.lane.b32.xlu0 %v683, 111
        %v697 = vpop.permute.xlu0 %696
        %698 = vrot.lane.b32.xlu0 %v687, 111
        %v699 = vpop.permute.xlu0 %698
        %700 = vrot.lane.b32.xlu0 %v691, 111
        %v701 = vpop.permute.xlu0 %700
        %702 = vrot.lane.b32.xlu0 %v695, 111
        %v703 = vpop.permute.xlu0 %702
        %s708 = scalar_lea.vmem %s215, 128
        %709 = vst.msk [vmem:[%s708] sm:$0x1] %vm645, %v697
        %710 = vst.msk [vmem:[%s708 + $0x10] sm:$0x1] %vm645, %v699
        %711 = vst.msk [vmem:[%s708 + $0x20] sm:$0x1] %vm645, %v701
        %712 = vst.msk [vmem:[%s708 + $0x30] sm:$0x1] %vm645, %v703
        %v713 = vld [vmem:[#allocation3] sm:$0xff]
        %v715 = vcombine.high %v713, %v713
        %v717 = vunpack.c.l.s4 1966171168
        %v718 = vunpack.c.0.s8 %v717
        %v719 = vlaneseq
        %v720 = vshrl.u32 %v719, 7
        %v721 = vsub.s32 %v718, %v720
        %v722 = vrot.slane %v713, %v721
        %v724 = vunpack.c.l.s4 1966171168
        %v725 = vunpack.c.0.s8 %v724
        %v726 = vlaneseq
        %v727 = vshrl.u32 %v726, 7
        %v728 = vsub.s32 %v725, %v727
        %v729 = vrot.slane %v715, %v728
        %v730 = vcombine.high %v722, %v722
        %v731 = vcombine.high %v729, %v729
        %v733 = vunpack.c.l.s4 1966171168
        %v734 = vunpack.c.0.s8 %v733
        %v735 = vlaneseq
        %v736 = vshrl.u32 %v735, 7
        %v737 = vsub.s32 %v734, %v736
        %v738 = vrot.slane %v722, %v737
        %v740 = vunpack.c.l.s4 1966171168
        %v741 = vunpack.c.0.s8 %v740
        %v742 = vlaneseq
        %v743 = vshrl.u32 %v742, 7
        %v744 = vsub.s32 %v741, %v743
        %v745 = vrot.slane %v729, %v744
        %v747 = vunpack.c.l.s4 1966171168
        %v748 = vunpack.c.0.s8 %v747
        %v749 = vlaneseq
        %v750 = vshrl.u32 %v749, 7
        %v751 = vsub.s32 %v748, %v750
        %v752 = vrot.slane %v730, %v751
        %v754 = vunpack.c.l.s4 1966171168
        %v755 = vunpack.c.0.s8 %v754
        %v756 = vlaneseq
        %v757 = vshrl.u32 %v756, 7
        %v758 = vsub.s32 %v755, %v757
        %v759 = vrot.slane %v731, %v758
        %v760 = vcombine.high %v738, %v738
        %v761 = vcombine.high %v745, %v745
        %v762 = vcombine.high %v752, %v752
        %v763 = vcombine.high %v759, %v759
        %v764 = vlaneseq
        %v765 = vshrl.u32 %v764, 7
        %v766 = vsub.s32 0, %v765
        %v767 = vrot.slane %v738, %v766
        %v768 = vlaneseq
        %v769 = vshrl.u32 %v768, 7
        %v770 = vsub.s32 0, %v769
        %v771 = vrot.slane %v752, %v770
        %v772 = vlaneseq
        %v773 = vshrl.u32 %v772, 7
        %v774 = vsub.s32 0, %v773
        %v775 = vrot.slane %v760, %v774
        %v776 = vlaneseq
        %v777 = vshrl.u32 %v776, 7
        %v778 = vsub.s32 0, %v777
        %v779 = vrot.slane %v762, %v778
        %v780 = vlaneseq
        %v781 = vshrl.u32 %v780, 7
        %v782 = vsub.s32 0, %v781
        %v783 = vrot.slane %v745, %v782
        %v784 = vlaneseq
        %v785 = vshrl.u32 %v784, 7
        %v786 = vsub.s32 0, %v785
        %v787 = vrot.slane %v759, %v786
        %v788 = vlaneseq
        %v789 = vshrl.u32 %v788, 7
        %v790 = vsub.s32 0, %v789
        %v791 = vrot.slane %v761, %v790
        %v792 = vlaneseq
        %v793 = vshrl.u32 %v792, 7
        %v794 = vsub.s32 0, %v793
        %v795 = vrot.slane %v763, %v794
        %796 = vrot.lane.b32.xlu0 %v767, 112
        %v797 = vpop.permute.xlu0 %796
        %798 = vrot.lane.b32.xlu0 %v771, 112
        %v799 = vpop.permute.xlu0 %798
        %800 = vrot.lane.b32.xlu0 %v775, 112
        %v801 = vpop.permute.xlu0 %800
        %802 = vrot.lane.b32.xlu0 %v779, 112
        %v803 = vpop.permute.xlu0 %802
        %804 = vrot.lane.b32.xlu0 %v783, 112
        %v805 = vpop.permute.xlu0 %804
        %806 = vrot.lane.b32.xlu0 %v787, 112
        %v807 = vpop.permute.xlu0 %806
        %808 = vrot.lane.b32.xlu0 %v791, 112
        %v809 = vpop.permute.xlu0 %808
        %810 = vrot.lane.b32.xlu0 %v795, 112
        %v811 = vpop.permute.xlu0 %810
        %820 = vst.msk [vmem:[%s215 + $0x1] sm:$0x1] %vm645, %v797
        %821 = vst.msk [vmem:[%s215 + $0x11] sm:$0x1] %vm645, %v799
        %822 = vst.msk [vmem:[%s215 + $0x21] sm:$0x1] %vm645, %v801
        %823 = vst.msk [vmem:[%s215 + $0x31] sm:$0x1] %vm645, %v803
        %824 = vst.msk [vmem:[%s215 + $0x41] sm:$0x1] %vm645, %v805
        %825 = vst.msk [vmem:[%s215 + $0x51] sm:$0x1] %vm645, %v807
        %826 = vst.msk [vmem:[%s215 + $0x61] sm:$0x1] %vm645, %v809
        %827 = vst.msk [vmem:[%s215 + $0x71] sm:$0x1] %vm645, %v811
        %v828 = vld [vmem:[%s186] sm:$0xf]
        %v831 = vunpack.c.l.s4 1966171168
        %v832 = vunpack.c.0.s8 %v831
        %v833 = vlaneseq
        %v834 = vshrl.u32 %v833, 7
        %v835 = vsub.s32 %v832, %v834
        %v836 = vrot.slane %v828, %v835
        %v837 = vcombine.high %v836, %v836
        %v839 = vunpack.c.l.s4 1966171168
        %v840 = vunpack.c.0.s8 %v839
        %v841 = vlaneseq
        %v842 = vshrl.u32 %v841, 7
        %v843 = vsub.s32 %v840, %v842
        %v844 = vrot.slane %v836, %v843
        %v846 = vunpack.c.l.s4 1966171168
        %v847 = vunpack.c.0.s8 %v846
        %v848 = vlaneseq
        %v849 = vshrl.u32 %v848, 7
        %v850 = vsub.s32 %v847, %v849
        %v851 = vrot.slane %v837, %v850
        %v852 = vcombine.high %v844, %v844
        %v853 = vcombine.high %v851, %v851
        %v854 = vlaneseq
        %v855 = vshrl.u32 %v854, 7
        %v856 = vsub.s32 0, %v855
        %v857 = vrot.slane %v844, %v856
        %v858 = vlaneseq
        %v859 = vshrl.u32 %v858, 7
        %v860 = vsub.s32 0, %v859
        %v861 = vrot.slane %v851, %v860
        %v862 = vlaneseq
        %v863 = vshrl.u32 %v862, 7
        %v864 = vsub.s32 0, %v863
        %v865 = vrot.slane %v852, %v864
        %v866 = vlaneseq
        %v867 = vshrl.u32 %v866, 7
        %v868 = vsub.s32 0, %v867
        %v869 = vrot.slane %v853, %v868
        %870 = vrot.lane.b32.xlu0 %v857, 95
        %v871 = vpop.permute.xlu0 %870
        %872 = vrot.lane.b32.xlu0 %v861, 95
        %v873 = vpop.permute.xlu0 %872
        %874 = vrot.lane.b32.xlu0 %v865, 95
        %v875 = vpop.permute.xlu0 %874
        %876 = vrot.lane.b32.xlu0 %v869, 95
        %v877 = vpop.permute.xlu0 %876
        %882 = vst.msk [vmem:[%s708 + $0x1] sm:$0x1] %vm645, %v871
        %883 = vst.msk [vmem:[%s708 + $0x11] sm:$0x1] %vm645, %v873
        %884 = vst.msk [vmem:[%s708 + $0x21] sm:$0x1] %vm645, %v875
        %885 = vst.msk [vmem:[%s708 + $0x31] sm:$0x1] %vm645, %v877
        %v886 = vld [vmem:[#allocation3] sm:$0xff]
        %v888 = vcombine.high %v886, %v886
        %v890 = vunpack.c.l.s4 1966171168
        %v891 = vunpack.c.0.s8 %v890
        %v892 = vlaneseq
        %v893 = vshrl.u32 %v892, 7
        %v894 = vsub.s32 %v891, %v893
        %v895 = vrot.slane %v886, %v894
        %v897 = vunpack.c.l.s4 1966171168
        %v898 = vunpack.c.0.s8 %v897
        %v899 = vlaneseq
        %v900 = vshrl.u32 %v899, 7
        %v901 = vsub.s32 %v898, %v900
        %v902 = vrot.slane %v888, %v901
        %v903 = vcombine.high %v895, %v895
        %v904 = vcombine.high %v902, %v902
        %v906 = vunpack.c.l.s4 1966171168
        %v907 = vunpack.c.0.s8 %v906
        %v908 = vlaneseq
        %v909 = vshrl.u32 %v908, 7
        %v910 = vsub.s32 %v907, %v909
        %v911 = vrot.slane %v895, %v910
        %v913 = vunpack.c.l.s4 1966171168
        %v914 = vunpack.c.0.s8 %v913
        %v915 = vlaneseq
        %v916 = vshrl.u32 %v915, 7
        %v917 = vsub.s32 %v914, %v916
        %v918 = vrot.slane %v902, %v917
        %v920 = vunpack.c.l.s4 1966171168
        %v921 = vunpack.c.0.s8 %v920
        %v922 = vlaneseq
        %v923 = vshrl.u32 %v922, 7
        %v924 = vsub.s32 %v921, %v923
        %v925 = vrot.slane %v903, %v924
        %v927 = vunpack.c.l.s4 1966171168
        %v928 = vunpack.c.0.s8 %v927
        %v929 = vlaneseq
        %v930 = vshrl.u32 %v929, 7
        %v931 = vsub.s32 %v928, %v930
        %v932 = vrot.slane %v904, %v931
        %v933 = vcombine.high %v911, %v911
        %v934 = vcombine.high %v918, %v918
        %v935 = vcombine.high %v925, %v925
        %v936 = vcombine.high %v932, %v932
        %v937 = vlaneseq
        %v938 = vshrl.u32 %v937, 7
        %v939 = vsub.s32 0, %v938
        %v940 = vrot.slane %v911, %v939
        %v941 = vlaneseq
        %v942 = vshrl.u32 %v941, 7
        %v943 = vsub.s32 0, %v942
        %v944 = vrot.slane %v925, %v943
        %v945 = vlaneseq
        %v946 = vshrl.u32 %v945, 7
        %v947 = vsub.s32 0, %v946
        %v948 = vrot.slane %v933, %v947
        %v949 = vlaneseq
        %v950 = vshrl.u32 %v949, 7
        %v951 = vsub.s32 0, %v950
        %v952 = vrot.slane %v935, %v951
        %v953 = vlaneseq
        %v954 = vshrl.u32 %v953, 7
        %v955 = vsub.s32 0, %v954
        %v956 = vrot.slane %v918, %v955
        %v957 = vlaneseq
        %v958 = vshrl.u32 %v957, 7
        %v959 = vsub.s32 0, %v958
        %v960 = vrot.slane %v932, %v959
        %v961 = vlaneseq
        %v962 = vshrl.u32 %v961, 7
        %v963 = vsub.s32 0, %v962
        %v964 = vrot.slane %v934, %v963
        %v965 = vlaneseq
        %v966 = vshrl.u32 %v965, 7
        %v967 = vsub.s32 0, %v966
        %v968 = vrot.slane %v936, %v967
        %969 = vrot.lane.b32.xlu0 %v940, 96
        %v970 = vpop.permute.xlu0 %969
        %971 = vrot.lane.b32.xlu0 %v944, 96
        %v972 = vpop.permute.xlu0 %971
        %973 = vrot.lane.b32.xlu0 %v948, 96
        %v974 = vpop.permute.xlu0 %973
        %975 = vrot.lane.b32.xlu0 %v952, 96
        %v976 = vpop.permute.xlu0 %975
        %977 = vrot.lane.b32.xlu0 %v956, 96
        %v978 = vpop.permute.xlu0 %977
        %979 = vrot.lane.b32.xlu0 %v960, 96
        %v980 = vpop.permute.xlu0 %979
        %981 = vrot.lane.b32.xlu0 %v964, 96
        %v982 = vpop.permute.xlu0 %981
        %983 = vrot.lane.b32.xlu0 %v968, 96
        %v984 = vpop.permute.xlu0 %983
        %993 = vst.msk [vmem:[%s215 + $0x2] sm:$0x1] %vm645, %v970
        %994 = vst.msk [vmem:[%s215 + $0x12] sm:$0x1] %vm645, %v972
        %995 = vst.msk [vmem:[%s215 + $0x22] sm:$0x1] %vm645, %v974
        %996 = vst.msk [vmem:[%s215 + $0x32] sm:$0x1] %vm645, %v976
        %997 = vst.msk [vmem:[%s215 + $0x42] sm:$0x1] %vm645, %v978
        %998 = vst.msk [vmem:[%s215 + $0x52] sm:$0x1] %vm645, %v980
        %999 = vst.msk [vmem:[%s215 + $0x62] sm:$0x1] %vm645, %v982
        %1000 = vst.msk [vmem:[%s215 + $0x72] sm:$0x1] %vm645, %v984
        %v1001 = vld [vmem:[%s186] sm:$0xf]
        %v1004 = vunpack.c.l.s4 1966171168
        %v1005 = vunpack.c.0.s8 %v1004
        %v1006 = vlaneseq
        %v1007 = vshrl.u32 %v1006, 7
        %v1008 = vsub.s32 %v1005, %v1007
        %v1009 = vrot.slane %v1001, %v1008
        %v1010 = vcombine.high %v1009, %v1009
        %v1012 = vunpack.c.l.s4 1966171168
        %v1013 = vunpack.c.0.s8 %v1012
        %v1014 = vlaneseq
        %v1015 = vshrl.u32 %v1014, 7
        %v1016 = vsub.s32 %v1013, %v1015
        %v1017 = vrot.slane %v1009, %v1016
        %v1019 = vunpack.c.l.s4 1966171168
        %v1020 = vunpack.c.0.s8 %v1019
        %v1021 = vlaneseq
        %v1022 = vshrl.u32 %v1021, 7
        %v1023 = vsub.s32 %v1020, %v1022
        %v1024 = vrot.slane %v1010, %v1023
        %v1025 = vcombine.high %v1017, %v1017
        %v1026 = vcombine.high %v1024, %v1024
        %v1027 = vlaneseq
        %v1028 = vshrl.u32 %v1027, 7
        %v1029 = vsub.s32 0, %v1028
        %v1030 = vrot.slane %v1017, %v1029
        %v1031 = vlaneseq
        %v1032 = vshrl.u32 %v1031, 7
        %v1033 = vsub.s32 0, %v1032
        %v1034 = vrot.slane %v1024, %v1033
        %v1035 = vlaneseq
        %v1036 = vshrl.u32 %v1035, 7
        %v1037 = vsub.s32 0, %v1036
        %v1038 = vrot.slane %v1025, %v1037
        %v1039 = vlaneseq
        %v1040 = vshrl.u32 %v1039, 7
        %v1041 = vsub.s32 0, %v1040
        %v1042 = vrot.slane %v1026, %v1041
        %1043 = vrot.lane.b32.xlu0 %v1030, 79
        %v1044 = vpop.permute.xlu0 %1043
        %1045 = vrot.lane.b32.xlu0 %v1034, 79
        %v1046 = vpop.permute.xlu0 %1045
        %1047 = vrot.lane.b32.xlu0 %v1038, 79
        %v1048 = vpop.permute.xlu0 %1047
        %1049 = vrot.lane.b32.xlu0 %v1042, 79
        %v1050 = vpop.permute.xlu0 %1049
        %1055 = vst.msk [vmem:[%s708 + $0x2] sm:$0x1] %vm645, %v1044
        %1056 = vst.msk [vmem:[%s708 + $0x12] sm:$0x1] %vm645, %v1046
        %1057 = vst.msk [vmem:[%s708 + $0x22] sm:$0x1] %vm645, %v1048
        %1058 = vst.msk [vmem:[%s708 + $0x32] sm:$0x1] %vm645, %v1050
        %v1059 = vld [vmem:[#allocation3] sm:$0xff]
        %v1061 = vcombine.high %v1059, %v1059
        %v1063 = vunpack.c.l.s4 1966171168
        %v1064 = vunpack.c.0.s8 %v1063
        %v1065 = vlaneseq
        %v1066 = vshrl.u32 %v1065, 7
        %v1067 = vsub.s32 %v1064, %v1066
        %v1068 = vrot.slane %v1059, %v1067
        %v1070 = vunpack.c.l.s4 1966171168
        %v1071 = vunpack.c.0.s8 %v1070
        %v1072 = vlaneseq
        %v1073 = vshrl.u32 %v1072, 7
        %v1074 = vsub.s32 %v1071, %v1073
        %v1075 = vrot.slane %v1061, %v1074
        %v1076 = vcombine.high %v1068, %v1068
        %v1077 = vcombine.high %v1075, %v1075
        %v1079 = vunpack.c.l.s4 1966171168
        %v1080 = vunpack.c.0.s8 %v1079
        %v1081 = vlaneseq
        %v1082 = vshrl.u32 %v1081, 7
        %v1083 = vsub.s32 %v1080, %v1082
        %v1084 = vrot.slane %v1068, %v1083
        %v1086 = vunpack.c.l.s4 1966171168
        %v1087 = vunpack.c.0.s8 %v1086
        %v1088 = vlaneseq
        %v1089 = vshrl.u32 %v1088, 7
        %v1090 = vsub.s32 %v1087, %v1089
        %v1091 = vrot.slane %v1075, %v1090
        %v1093 = vunpack.c.l.s4 1966171168
        %v1094 = vunpack.c.0.s8 %v1093
        %v1095 = vlaneseq
        %v1096 = vshrl.u32 %v1095, 7
        %v1097 = vsub.s32 %v1094, %v1096
        %v1098 = vrot.slane %v1076, %v1097
        %v1100 = vunpack.c.l.s4 1966171168
        %v1101 = vunpack.c.0.s8 %v1100
        %v1102 = vlaneseq
        %v1103 = vshrl.u32 %v1102, 7
        %v1104 = vsub.s32 %v1101, %v1103
        %v1105 = vrot.slane %v1077, %v1104
        %v1106 = vcombine.high %v1084, %v1084
        %v1107 = vcombine.high %v1091, %v1091
        %v1108 = vcombine.high %v1098, %v1098
        %v1109 = vcombine.high %v1105, %v1105
        %v1110 = vlaneseq
        %v1111 = vshrl.u32 %v1110, 7
        %v1112 = vsub.s32 0, %v1111
        %v1113 = vrot.slane %v1084, %v1112
        %v1114 = vlaneseq
        %v1115 = vshrl.u32 %v1114, 7
        %v1116 = vsub.s32 0, %v1115
        %v1117 = vrot.slane %v1098, %v1116
        %v1118 = vlaneseq
        %v1119 = vshrl.u32 %v1118, 7
        %v1120 = vsub.s32 0, %v1119
        %v1121 = vrot.slane %v1106, %v1120
        %v1122 = vlaneseq
        %v1123 = vshrl.u32 %v1122, 7
        %v1124 = vsub.s32 0, %v1123
        %v1125 = vrot.slane %v1108, %v1124
        %v1126 = vlaneseq
        %v1127 = vshrl.u32 %v1126, 7
        %v1128 = vsub.s32 0, %v1127
        %v1129 = vrot.slane %v1091, %v1128
        %v1130 = vlaneseq
        %v1131 = vshrl.u32 %v1130, 7
        %v1132 = vsub.s32 0, %v1131
        %v1133 = vrot.slane %v1105, %v1132
        %v1134 = vlaneseq
        %v1135 = vshrl.u32 %v1134, 7
        %v1136 = vsub.s32 0, %v1135
        %v1137 = vrot.slane %v1107, %v1136
        %v1138 = vlaneseq
        %v1139 = vshrl.u32 %v1138, 7
        %v1140 = vsub.s32 0, %v1139
        %v1141 = vrot.slane %v1109, %v1140
        %1142 = vrot.lane.b32.xlu0 %v1113, 80
        %v1143 = vpop.permute.xlu0 %1142
        %1144 = vrot.lane.b32.xlu0 %v1117, 80
        %v1145 = vpop.permute.xlu0 %1144
        %1146 = vrot.lane.b32.xlu0 %v1121, 80
        %v1147 = vpop.permute.xlu0 %1146
        %1148 = vrot.lane.b32.xlu0 %v1125, 80
        %v1149 = vpop.permute.xlu0 %1148
        %1150 = vrot.lane.b32.xlu0 %v1129, 80
        %v1151 = vpop.permute.xlu0 %1150
        %1152 = vrot.lane.b32.xlu0 %v1133, 80
        %v1153 = vpop.permute.xlu0 %1152
        %1154 = vrot.lane.b32.xlu0 %v1137, 80
        %v1155 = vpop.permute.xlu0 %1154
        %1156 = vrot.lane.b32.xlu0 %v1141, 80
        %v1157 = vpop.permute.xlu0 %1156
        %1166 = vst.msk [vmem:[%s215 + $0x3] sm:$0x1] %vm645, %v1143
        %1167 = vst.msk [vmem:[%s215 + $0x13] sm:$0x1] %vm645, %v1145
        %1168 = vst.msk [vmem:[%s215 + $0x23] sm:$0x1] %vm645, %v1147
        %1169 = vst.msk [vmem:[%s215 + $0x33] sm:$0x1] %vm645, %v1149
        %1170 = vst.msk [vmem:[%s215 + $0x43] sm:$0x1] %vm645, %v1151
        %1171 = vst.msk [vmem:[%s215 + $0x53] sm:$0x1] %vm645, %v1153
        %1172 = vst.msk [vmem:[%s215 + $0x63] sm:$0x1] %vm645, %v1155
        %1173 = vst.msk [vmem:[%s215 + $0x73] sm:$0x1] %vm645, %v1157
        %v1174 = vld [vmem:[%s186] sm:$0xf]
        %v1177 = vunpack.c.l.s4 1966171168
        %v1178 = vunpack.c.0.s8 %v1177
        %v1179 = vlaneseq
        %v1180 = vshrl.u32 %v1179, 7
        %v1181 = vsub.s32 %v1178, %v1180
        %v1182 = vrot.slane %v1174, %v1181
        %v1183 = vcombine.high %v1182, %v1182
        %v1185 = vunpack.c.l.s4 1966171168
        %v1186 = vunpack.c.0.s8 %v1185
        %v1187 = vlaneseq
        %v1188 = vshrl.u32 %v1187, 7
        %v1189 = vsub.s32 %v1186, %v1188
        %v1190 = vrot.slane %v1182, %v1189
        %v1192 = vunpack.c.l.s4 1966171168
        %v1193 = vunpack.c.0.s8 %v1192
        %v1194 = vlaneseq
        %v1195 = vshrl.u32 %v1194, 7
        %v1196 = vsub.s32 %v1193, %v1195
        %v1197 = vrot.slane %v1183, %v1196
        %v1198 = vcombine.high %v1190, %v1190
        %v1199 = vcombine.high %v1197, %v1197
        %v1200 = vlaneseq
        %v1201 = vshrl.u32 %v1200, 7
        %v1202 = vsub.s32 0, %v1201
        %v1203 = vrot.slane %v1190, %v1202
        %v1204 = vlaneseq
        %v1205 = vshrl.u32 %v1204, 7
        %v1206 = vsub.s32 0, %v1205
        %v1207 = vrot.slane %v1197, %v1206
        %v1208 = vlaneseq
        %v1209 = vshrl.u32 %v1208, 7
        %v1210 = vsub.s32 0, %v1209
        %v1211 = vrot.slane %v1198, %v1210
        %v1212 = vlaneseq
        %v1213 = vshrl.u32 %v1212, 7
        %v1214 = vsub.s32 0, %v1213
        %v1215 = vrot.slane %v1199, %v1214
        %1216 = vrot.lane.b32.xlu0 %v1203, 63
        %v1217 = vpop.permute.xlu0 %1216
        %1218 = vrot.lane.b32.xlu0 %v1207, 63
        %v1219 = vpop.permute.xlu0 %1218
        %1220 = vrot.lane.b32.xlu0 %v1211, 63
        %v1221 = vpop.permute.xlu0 %1220
        %1222 = vrot.lane.b32.xlu0 %v1215, 63
        %v1223 = vpop.permute.xlu0 %1222
        %1228 = vst.msk [vmem:[%s708 + $0x3] sm:$0x1] %vm645, %v1217
        %1229 = vst.msk [vmem:[%s708 + $0x13] sm:$0x1] %vm645, %v1219
        %1230 = vst.msk [vmem:[%s708 + $0x23] sm:$0x1] %vm645, %v1221
        %1231 = vst.msk [vmem:[%s708 + $0x33] sm:$0x1] %vm645, %v1223
        %v1232 = vld [vmem:[#allocation3] sm:$0xff]
        %v1234 = vcombine.high %v1232, %v1232
        %v1236 = vunpack.c.l.s4 1966171168
        %v1237 = vunpack.c.0.s8 %v1236
        %v1238 = vlaneseq
        %v1239 = vshrl.u32 %v1238, 7
        %v1240 = vsub.s32 %v1237, %v1239
        %v1241 = vrot.slane %v1232, %v1240
        %v1243 = vunpack.c.l.s4 1966171168
        %v1244 = vunpack.c.0.s8 %v1243
        %v1245 = vlaneseq
        %v1246 = vshrl.u32 %v1245, 7
        %v1247 = vsub.s32 %v1244, %v1246
        %v1248 = vrot.slane %v1234, %v1247
        %v1249 = vcombine.high %v1241, %v1241
        %v1250 = vcombine.high %v1248, %v1248
        %v1252 = vunpack.c.l.s4 1966171168
        %v1253 = vunpack.c.0.s8 %v1252
        %v1254 = vlaneseq
        %v1255 = vshrl.u32 %v1254, 7
        %v1256 = vsub.s32 %v1253, %v1255
        %v1257 = vrot.slane %v1241, %v1256
        %v1259 = vunpack.c.l.s4 1966171168
        %v1260 = vunpack.c.0.s8 %v1259
        %v1261 = vlaneseq
        %v1262 = vshrl.u32 %v1261, 7
        %v1263 = vsub.s32 %v1260, %v1262
        %v1264 = vrot.slane %v1248, %v1263
        %v1266 = vunpack.c.l.s4 1966171168
        %v1267 = vunpack.c.0.s8 %v1266
        %v1268 = vlaneseq
        %v1269 = vshrl.u32 %v1268, 7
        %v1270 = vsub.s32 %v1267, %v1269
        %v1271 = vrot.slane %v1249, %v1270
        %v1273 = vunpack.c.l.s4 1966171168
        %v1274 = vunpack.c.0.s8 %v1273
        %v1275 = vlaneseq
        %v1276 = vshrl.u32 %v1275, 7
        %v1277 = vsub.s32 %v1274, %v1276
        %v1278 = vrot.slane %v1250, %v1277
        %v1279 = vcombine.high %v1257, %v1257
        %v1280 = vcombine.high %v1264, %v1264
        %v1281 = vcombine.high %v1271, %v1271
        %v1282 = vcombine.high %v1278, %v1278
        %v1283 = vlaneseq
        %v1284 = vshrl.u32 %v1283, 7
        %v1285 = vsub.s32 0, %v1284
        %v1286 = vrot.slane %v1257, %v1285
        %v1287 = vlaneseq
        %v1288 = vshrl.u32 %v1287, 7
        %v1289 = vsub.s32 0, %v1288
        %v1290 = vrot.slane %v1271, %v1289
        %v1291 = vlaneseq
        %v1292 = vshrl.u32 %v1291, 7
        %v1293 = vsub.s32 0, %v1292
        %v1294 = vrot.slane %v1279, %v1293
        %v1295 = vlaneseq
        %v1296 = vshrl.u32 %v1295, 7
        %v1297 = vsub.s32 0, %v1296
        %v1298 = vrot.slane %v1281, %v1297
        %v1299 = vlaneseq
        %v1300 = vshrl.u32 %v1299, 7
        %v1301 = vsub.s32 0, %v1300
        %v1302 = vrot.slane %v1264, %v1301
        %v1303 = vlaneseq
        %v1304 = vshrl.u32 %v1303, 7
        %v1305 = vsub.s32 0, %v1304
        %v1306 = vrot.slane %v1278, %v1305
        %v1307 = vlaneseq
        %v1308 = vshrl.u32 %v1307, 7
        %v1309 = vsub.s32 0, %v1308
        %v1310 = vrot.slane %v1280, %v1309
        %v1311 = vlaneseq
        %v1312 = vshrl.u32 %v1311, 7
        %v1313 = vsub.s32 0, %v1312
        %v1314 = vrot.slane %v1282, %v1313
        %1315 = vrot.lane.b32.xlu0 %v1286, 64
        %v1316 = vpop.permute.xlu0 %1315
        %1317 = vrot.lane.b32.xlu0 %v1290, 64
        %v1318 = vpop.permute.xlu0 %1317
        %1319 = vrot.lane.b32.xlu0 %v1294, 64
        %v1320 = vpop.permute.xlu0 %1319
        %1321 = vrot.lane.b32.xlu0 %v1298, 64
        %v1322 = vpop.permute.xlu0 %1321
        %1323 = vrot.lane.b32.xlu0 %v1302, 64
        %v1324 = vpop.permute.xlu0 %1323
        %1325 = vrot.lane.b32.xlu0 %v1306, 64
        %v1326 = vpop.permute.xlu0 %1325
        %1327 = vrot.lane.b32.xlu0 %v1310, 64
        %v1328 = vpop.permute.xlu0 %1327
        %1329 = vrot.lane.b32.xlu0 %v1314, 64
        %v1330 = vpop.permute.xlu0 %1329
        %1339 = vst.msk [vmem:[%s215 + $0x4] sm:$0x1] %vm645, %v1316
        %1340 = vst.msk [vmem:[%s215 + $0x14] sm:$0x1] %vm645, %v1318
        %1341 = vst.msk [vmem:[%s215 + $0x24] sm:$0x1] %vm645, %v1320
        %1342 = vst.msk [vmem:[%s215 + $0x34] sm:$0x1] %vm645, %v1322
        %1343 = vst.msk [vmem:[%s215 + $0x44] sm:$0x1] %vm645, %v1324
        %1344 = vst.msk [vmem:[%s215 + $0x54] sm:$0x1] %vm645, %v1326
        %1345 = vst.msk [vmem:[%s215 + $0x64] sm:$0x1] %vm645, %v1328
        %1346 = vst.msk [vmem:[%s215 + $0x74] sm:$0x1] %vm645, %v1330
        %v1347 = vld [vmem:[%s186] sm:$0xf]
        %v1350 = vunpack.c.l.s4 1966171168
        %v1351 = vunpack.c.0.s8 %v1350
        %v1352 = vlaneseq
        %v1353 = vshrl.u32 %v1352, 7
        %v1354 = vsub.s32 %v1351, %v1353
        %v1355 = vrot.slane %v1347, %v1354
        %v1356 = vcombine.high %v1355, %v1355
        %v1358 = vunpack.c.l.s4 1966171168
        %v1359 = vunpack.c.0.s8 %v1358
        %v1360 = vlaneseq
        %v1361 = vshrl.u32 %v1360, 7
        %v1362 = vsub.s32 %v1359, %v1361
        %v1363 = vrot.slane %v1355, %v1362
        %v1365 = vunpack.c.l.s4 1966171168
        %v1366 = vunpack.c.0.s8 %v1365
        %v1367 = vlaneseq
        %v1368 = vshrl.u32 %v1367, 7
        %v1369 = vsub.s32 %v1366, %v1368
        %v1370 = vrot.slane %v1356, %v1369
        %v1371 = vcombine.high %v1363, %v1363
        %v1372 = vcombine.high %v1370, %v1370
        %v1373 = vlaneseq
        %v1374 = vshrl.u32 %v1373, 7
        %v1375 = vsub.s32 0, %v1374
        %v1376 = vrot.slane %v1363, %v1375
        %v1377 = vlaneseq
        %v1378 = vshrl.u32 %v1377, 7
        %v1379 = vsub.s32 0, %v1378
        %v1380 = vrot.slane %v1370, %v1379
        %v1381 = vlaneseq
        %v1382 = vshrl.u32 %v1381, 7
        %v1383 = vsub.s32 0, %v1382
        %v1384 = vrot.slane %v1371, %v1383
        %v1385 = vlaneseq
        %v1386 = vshrl.u32 %v1385, 7
        %v1387 = vsub.s32 0, %v1386
        %v1388 = vrot.slane %v1372, %v1387
        %1389 = vrot.lane.b32.xlu0 %v1376, 47
        %v1390 = vpop.permute.xlu0 %1389
        %1391 = vrot.lane.b32.xlu0 %v1380, 47
        %v1392 = vpop.permute.xlu0 %1391
        %1393 = vrot.lane.b32.xlu0 %v1384, 47
        %v1394 = vpop.permute.xlu0 %1393
        %1395 = vrot.lane.b32.xlu0 %v1388, 47
        %v1396 = vpop.permute.xlu0 %1395
        %1401 = vst.msk [vmem:[%s708 + $0x4] sm:$0x1] %vm645, %v1390
        %1402 = vst.msk [vmem:[%s708 + $0x14] sm:$0x1] %vm645, %v1392
        %1403 = vst.msk [vmem:[%s708 + $0x24] sm:$0x1] %vm645, %v1394
        %1404 = vst.msk [vmem:[%s708 + $0x34] sm:$0x1] %vm645, %v1396
        %v1405 = vld [vmem:[#allocation3] sm:$0xff]
        %v1407 = vcombine.high %v1405, %v1405
        %v1409 = vunpack.c.l.s4 1966171168
        %v1410 = vunpack.c.0.s8 %v1409
        %v1411 = vlaneseq
        %v1412 = vshrl.u32 %v1411, 7
        %v1413 = vsub.s32 %v1410, %v1412
        %v1414 = vrot.slane %v1405, %v1413
        %v1416 = vunpack.c.l.s4 1966171168
        %v1417 = vunpack.c.0.s8 %v1416
        %v1418 = vlaneseq
        %v1419 = vshrl.u32 %v1418, 7
        %v1420 = vsub.s32 %v1417, %v1419
        %v1421 = vrot.slane %v1407, %v1420
        %v1422 = vcombine.high %v1414, %v1414
        %v1423 = vcombine.high %v1421, %v1421
        %v1425 = vunpack.c.l.s4 1966171168
        %v1426 = vunpack.c.0.s8 %v1425
        %v1427 = vlaneseq
        %v1428 = vshrl.u32 %v1427, 7
        %v1429 = vsub.s32 %v1426, %v1428
        %v1430 = vrot.slane %v1414, %v1429
        %v1432 = vunpack.c.l.s4 1966171168
        %v1433 = vunpack.c.0.s8 %v1432
        %v1434 = vlaneseq
        %v1435 = vshrl.u32 %v1434, 7
        %v1436 = vsub.s32 %v1433, %v1435
        %v1437 = vrot.slane %v1421, %v1436
        %v1439 = vunpack.c.l.s4 1966171168
        %v1440 = vunpack.c.0.s8 %v1439
        %v1441 = vlaneseq
        %v1442 = vshrl.u32 %v1441, 7
        %v1443 = vsub.s32 %v1440, %v1442
        %v1444 = vrot.slane %v1422, %v1443
        %v1446 = vunpack.c.l.s4 1966171168
        %v1447 = vunpack.c.0.s8 %v1446
        %v1448 = vlaneseq
        %v1449 = vshrl.u32 %v1448, 7
        %v1450 = vsub.s32 %v1447, %v1449
        %v1451 = vrot.slane %v1423, %v1450
        %v1452 = vcombine.high %v1430, %v1430
        %v1453 = vcombine.high %v1437, %v1437
        %v1454 = vcombine.high %v1444, %v1444
        %v1455 = vcombine.high %v1451, %v1451
        %v1456 = vlaneseq
        %v1457 = vshrl.u32 %v1456, 7
        %v1458 = vsub.s32 0, %v1457
        %v1459 = vrot.slane %v1430, %v1458
        %v1460 = vlaneseq
        %v1461 = vshrl.u32 %v1460, 7
        %v1462 = vsub.s32 0, %v1461
        %v1463 = vrot.slane %v1444, %v1462
        %v1464 = vlaneseq
        %v1465 = vshrl.u32 %v1464, 7
        %v1466 = vsub.s32 0, %v1465
        %v1467 = vrot.slane %v1452, %v1466
        %v1468 = vlaneseq
        %v1469 = vshrl.u32 %v1468, 7
        %v1470 = vsub.s32 0, %v1469
        %v1471 = vrot.slane %v1454, %v1470
        %v1472 = vlaneseq
        %v1473 = vshrl.u32 %v1472, 7
        %v1474 = vsub.s32 0, %v1473
        %v1475 = vrot.slane %v1437, %v1474
        %v1476 = vlaneseq
        %v1477 = vshrl.u32 %v1476, 7
        %v1478 = vsub.s32 0, %v1477
        %v1479 = vrot.slane %v1451, %v1478
        %v1480 = vlaneseq
        %v1481 = vshrl.u32 %v1480, 7
        %v1482 = vsub.s32 0, %v1481
        %v1483 = vrot.slane %v1453, %v1482
        %v1484 = vlaneseq
        %v1485 = vshrl.u32 %v1484, 7
        %v1486 = vsub.s32 0, %v1485
        %v1487 = vrot.slane %v1455, %v1486
        %1488 = vrot.lane.b32.xlu0 %v1459, 48
        %v1489 = vpop.permute.xlu0 %1488
        %1490 = vrot.lane.b32.xlu0 %v1463, 48
        %v1491 = vpop.permute.xlu0 %1490
        %1492 = vrot.lane.b32.xlu0 %v1467, 48
        %v1493 = vpop.permute.xlu0 %1492
        %1494 = vrot.lane.b32.xlu0 %v1471, 48
        %v1495 = vpop.permute.xlu0 %1494
        %1496 = vrot.lane.b32.xlu0 %v1475, 48
        %v1497 = vpop.permute.xlu0 %1496
        %1498 = vrot.lane.b32.xlu0 %v1479, 48
        %v1499 = vpop.permute.xlu0 %1498
        %1500 = vrot.lane.b32.xlu0 %v1483, 48
        %v1501 = vpop.permute.xlu0 %1500
        %1502 = vrot.lane.b32.xlu0 %v1487, 48
        %v1503 = vpop.permute.xlu0 %1502
        %1512 = vst.msk [vmem:[%s215 + $0x5] sm:$0x1] %vm645, %v1489
        %1513 = vst.msk [vmem:[%s215 + $0x15] sm:$0x1] %vm645, %v1491
        %1514 = vst.msk [vmem:[%s215 + $0x25] sm:$0x1] %vm645, %v1493
        %1515 = vst.msk [vmem:[%s215 + $0x35] sm:$0x1] %vm645, %v1495
        %1516 = vst.msk [vmem:[%s215 + $0x45] sm:$0x1] %vm645, %v1497
        %1517 = vst.msk [vmem:[%s215 + $0x55] sm:$0x1] %vm645, %v1499
        %1518 = vst.msk [vmem:[%s215 + $0x65] sm:$0x1] %vm645, %v1501
        %1519 = vst.msk [vmem:[%s215 + $0x75] sm:$0x1] %vm645, %v1503
        %v1520 = vld [vmem:[%s186] sm:$0xf]
        %v1523 = vunpack.c.l.s4 1966171168
        %v1524 = vunpack.c.0.s8 %v1523
        %v1525 = vlaneseq
        %v1526 = vshrl.u32 %v1525, 7
        %v1527 = vsub.s32 %v1524, %v1526
        %v1528 = vrot.slane %v1520, %v1527
        %v1529 = vcombine.high %v1528, %v1528
        %v1531 = vunpack.c.l.s4 1966171168
        %v1532 = vunpack.c.0.s8 %v1531
        %v1533 = vlaneseq
        %v1534 = vshrl.u32 %v1533, 7
        %v1535 = vsub.s32 %v1532, %v1534
        %v1536 = vrot.slane %v1528, %v1535
        %v1538 = vunpack.c.l.s4 1966171168
        %v1539 = vunpack.c.0.s8 %v1538
        %v1540 = vlaneseq
        %v1541 = vshrl.u32 %v1540, 7
        %v1542 = vsub.s32 %v1539, %v1541
        %v1543 = vrot.slane %v1529, %v1542
        %v1544 = vcombine.high %v1536, %v1536
        %v1545 = vcombine.high %v1543, %v1543
        %v1546 = vlaneseq
        %v1547 = vshrl.u32 %v1546, 7
        %v1548 = vsub.s32 0, %v1547
        %v1549 = vrot.slane %v1536, %v1548
        %v1550 = vlaneseq
        %v1551 = vshrl.u32 %v1550, 7
        %v1552 = vsub.s32 0, %v1551
        %v1553 = vrot.slane %v1543, %v1552
        %v1554 = vlaneseq
        %v1555 = vshrl.u32 %v1554, 7
        %v1556 = vsub.s32 0, %v1555
        %v1557 = vrot.slane %v1544, %v1556
        %v1558 = vlaneseq
        %v1559 = vshrl.u32 %v1558, 7
        %v1560 = vsub.s32 0, %v1559
        %v1561 = vrot.slane %v1545, %v1560
        %1562 = vrot.lane.b32.xlu0 %v1549, 31
        %v1563 = vpop.permute.xlu0 %1562
        %1564 = vrot.lane.b32.xlu0 %v1553, 31
        %v1565 = vpop.permute.xlu0 %1564
        %1566 = vrot.lane.b32.xlu0 %v1557, 31
        %v1567 = vpop.permute.xlu0 %1566
        %1568 = vrot.lane.b32.xlu0 %v1561, 31
        %v1569 = vpop.permute.xlu0 %1568
        %1574 = vst.msk [vmem:[%s708 + $0x5] sm:$0x1] %vm645, %v1563
        %1575 = vst.msk [vmem:[%s708 + $0x15] sm:$0x1] %vm645, %v1565
        %1576 = vst.msk [vmem:[%s708 + $0x25] sm:$0x1] %vm645, %v1567
        %1577 = vst.msk [vmem:[%s708 + $0x35] sm:$0x1] %vm645, %v1569
        %v1578 = vld [vmem:[#allocation3] sm:$0xff]
        %v1580 = vcombine.high %v1578, %v1578
        %v1582 = vunpack.c.l.s4 1966171168
        %v1583 = vunpack.c.0.s8 %v1582
        %v1584 = vlaneseq
        %v1585 = vshrl.u32 %v1584, 7
        %v1586 = vsub.s32 %v1583, %v1585
        %v1587 = vrot.slane %v1578, %v1586
        %v1589 = vunpack.c.l.s4 1966171168
        %v1590 = vunpack.c.0.s8 %v1589
        %v1591 = vlaneseq
        %v1592 = vshrl.u32 %v1591, 7
        %v1593 = vsub.s32 %v1590, %v1592
        %v1594 = vrot.slane %v1580, %v1593
        %v1595 = vcombine.high %v1587, %v1587
        %v1596 = vcombine.high %v1594, %v1594
        %v1598 = vunpack.c.l.s4 1966171168
        %v1599 = vunpack.c.0.s8 %v1598
        %v1600 = vlaneseq
        %v1601 = vshrl.u32 %v1600, 7
        %v1602 = vsub.s32 %v1599, %v1601
        %v1603 = vrot.slane %v1587, %v1602
        %v1605 = vunpack.c.l.s4 1966171168
        %v1606 = vunpack.c.0.s8 %v1605
        %v1607 = vlaneseq
        %v1608 = vshrl.u32 %v1607, 7
        %v1609 = vsub.s32 %v1606, %v1608
        %v1610 = vrot.slane %v1594, %v1609
        %v1612 = vunpack.c.l.s4 1966171168
        %v1613 = vunpack.c.0.s8 %v1612
        %v1614 = vlaneseq
        %v1615 = vshrl.u32 %v1614, 7
        %v1616 = vsub.s32 %v1613, %v1615
        %v1617 = vrot.slane %v1595, %v1616
        %v1619 = vunpack.c.l.s4 1966171168
        %v1620 = vunpack.c.0.s8 %v1619
        %v1621 = vlaneseq
        %v1622 = vshrl.u32 %v1621, 7
        %v1623 = vsub.s32 %v1620, %v1622
        %v1624 = vrot.slane %v1596, %v1623
        %v1625 = vcombine.high %v1603, %v1603
        %v1626 = vcombine.high %v1610, %v1610
        %v1627 = vcombine.high %v1617, %v1617
        %v1628 = vcombine.high %v1624, %v1624
        %v1629 = vlaneseq
        %v1630 = vshrl.u32 %v1629, 7
        %v1631 = vsub.s32 0, %v1630
        %v1632 = vrot.slane %v1603, %v1631
        %v1633 = vlaneseq
        %v1634 = vshrl.u32 %v1633, 7
        %v1635 = vsub.s32 0, %v1634
        %v1636 = vrot.slane %v1617, %v1635
        %v1637 = vlaneseq
        %v1638 = vshrl.u32 %v1637, 7
        %v1639 = vsub.s32 0, %v1638
        %v1640 = vrot.slane %v1625, %v1639
        %v1641 = vlaneseq
        %v1642 = vshrl.u32 %v1641, 7
        %v1643 = vsub.s32 0, %v1642
        %v1644 = vrot.slane %v1627, %v1643
        %v1645 = vlaneseq
        %v1646 = vshrl.u32 %v1645, 7
        %v1647 = vsub.s32 0, %v1646
        %v1648 = vrot.slane %v1610, %v1647
        %v1649 = vlaneseq
        %v1650 = vshrl.u32 %v1649, 7
        %v1651 = vsub.s32 0, %v1650
        %v1652 = vrot.slane %v1624, %v1651
        %v1653 = vlaneseq
        %v1654 = vshrl.u32 %v1653, 7
        %v1655 = vsub.s32 0, %v1654
        %v1656 = vrot.slane %v1626, %v1655
        %v1657 = vlaneseq
        %v1658 = vshrl.u32 %v1657, 7
        %v1659 = vsub.s32 0, %v1658
        %v1660 = vrot.slane %v1628, %v1659
        %1661 = vrot.lane.b32.xlu0 %v1632, 32
        %v1662 = vpop.permute.xlu0 %1661
        %1663 = vrot.lane.b32.xlu0 %v1636, 32
        %v1664 = vpop.permute.xlu0 %1663
        %1665 = vrot.lane.b32.xlu0 %v1640, 32
        %v1666 = vpop.permute.xlu0 %1665
        %1667 = vrot.lane.b32.xlu0 %v1644, 32
        %v1668 = vpop.permute.xlu0 %1667
        %1669 = vrot.lane.b32.xlu0 %v1648, 32
        %v1670 = vpop.permute.xlu0 %1669
        %1671 = vrot.lane.b32.xlu0 %v1652, 32
        %v1672 = vpop.permute.xlu0 %1671
        %1673 = vrot.lane.b32.xlu0 %v1656, 32
        %v1674 = vpop.permute.xlu0 %1673
        %1675 = vrot.lane.b32.xlu0 %v1660, 32
        %v1676 = vpop.permute.xlu0 %1675
        %1685 = vst.msk [vmem:[%s215 + $0x6] sm:$0x1] %vm645, %v1662
        %1686 = vst.msk [vmem:[%s215 + $0x16] sm:$0x1] %vm645, %v1664
        %1687 = vst.msk [vmem:[%s215 + $0x26] sm:$0x1] %vm645, %v1666
        %1688 = vst.msk [vmem:[%s215 + $0x36] sm:$0x1] %vm645, %v1668
        %1689 = vst.msk [vmem:[%s215 + $0x46] sm:$0x1] %vm645, %v1670
        %1690 = vst.msk [vmem:[%s215 + $0x56] sm:$0x1] %vm645, %v1672
        %1691 = vst.msk [vmem:[%s215 + $0x66] sm:$0x1] %vm645, %v1674
        %1692 = vst.msk [vmem:[%s215 + $0x76] sm:$0x1] %vm645, %v1676
        %v1693 = vld [vmem:[%s186] sm:$0xf]
        %v1696 = vunpack.c.l.s4 1966171168
        %v1697 = vunpack.c.0.s8 %v1696
        %v1698 = vlaneseq
        %v1699 = vshrl.u32 %v1698, 7
        %v1700 = vsub.s32 %v1697, %v1699
        %v1701 = vrot.slane %v1693, %v1700
        %v1702 = vcombine.high %v1701, %v1701
        %v1704 = vunpack.c.l.s4 1966171168
        %v1705 = vunpack.c.0.s8 %v1704
        %v1706 = vlaneseq
        %v1707 = vshrl.u32 %v1706, 7
        %v1708 = vsub.s32 %v1705, %v1707
        %v1709 = vrot.slane %v1701, %v1708
        %v1711 = vunpack.c.l.s4 1966171168
        %v1712 = vunpack.c.0.s8 %v1711
        %v1713 = vlaneseq
        %v1714 = vshrl.u32 %v1713, 7
        %v1715 = vsub.s32 %v1712, %v1714
        %v1716 = vrot.slane %v1702, %v1715
        %v1717 = vcombine.high %v1709, %v1709
        %v1718 = vcombine.high %v1716, %v1716
        %v1719 = vlaneseq
        %v1720 = vshrl.u32 %v1719, 7
        %v1721 = vsub.s32 0, %v1720
        %v1722 = vrot.slane %v1709, %v1721
        %v1723 = vlaneseq
        %v1724 = vshrl.u32 %v1723, 7
        %v1725 = vsub.s32 0, %v1724
        %v1726 = vrot.slane %v1716, %v1725
        %v1727 = vlaneseq
        %v1728 = vshrl.u32 %v1727, 7
        %v1729 = vsub.s32 0, %v1728
        %v1730 = vrot.slane %v1717, %v1729
        %v1731 = vlaneseq
        %v1732 = vshrl.u32 %v1731, 7
        %v1733 = vsub.s32 0, %v1732
        %v1734 = vrot.slane %v1718, %v1733
        %1735 = vrot.lane.b32.xlu0 %v1722, 15
        %v1736 = vpop.permute.xlu0 %1735
        %1737 = vrot.lane.b32.xlu0 %v1726, 15
        %v1738 = vpop.permute.xlu0 %1737
        %1739 = vrot.lane.b32.xlu0 %v1730, 15
        %v1740 = vpop.permute.xlu0 %1739
        %1741 = vrot.lane.b32.xlu0 %v1734, 15
        %v1742 = vpop.permute.xlu0 %1741
        %1747 = vst.msk [vmem:[%s708 + $0x6] sm:$0x1] %vm645, %v1736
        %1748 = vst.msk [vmem:[%s708 + $0x16] sm:$0x1] %vm645, %v1738
        %1749 = vst.msk [vmem:[%s708 + $0x26] sm:$0x1] %vm645, %v1740
        %1750 = vst.msk [vmem:[%s708 + $0x36] sm:$0x1] %vm645, %v1742
        %v1751 = vld [vmem:[#allocation3] sm:$0xff]
        %v1753 = vcombine.high %v1751, %v1751
        %v1755 = vunpack.c.l.s4 1966171168
        %v1756 = vunpack.c.0.s8 %v1755
        %v1757 = vlaneseq
        %v1758 = vshrl.u32 %v1757, 7
        %v1759 = vsub.s32 %v1756, %v1758
        %v1760 = vrot.slane %v1751, %v1759
        %v1762 = vunpack.c.l.s4 1966171168
        %v1763 = vunpack.c.0.s8 %v1762
        %v1764 = vlaneseq
        %v1765 = vshrl.u32 %v1764, 7
        %v1766 = vsub.s32 %v1763, %v1765
        %v1767 = vrot.slane %v1753, %v1766
        %v1768 = vcombine.high %v1760, %v1760
        %v1769 = vcombine.high %v1767, %v1767
        %v1771 = vunpack.c.l.s4 1966171168
        %v1772 = vunpack.c.0.s8 %v1771
        %v1773 = vlaneseq
        %v1774 = vshrl.u32 %v1773, 7
        %v1775 = vsub.s32 %v1772, %v1774
        %v1776 = vrot.slane %v1760, %v1775
        %v1778 = vunpack.c.l.s4 1966171168
        %v1779 = vunpack.c.0.s8 %v1778
        %v1780 = vlaneseq
        %v1781 = vshrl.u32 %v1780, 7
        %v1782 = vsub.s32 %v1779, %v1781
        %v1783 = vrot.slane %v1767, %v1782
        %v1785 = vunpack.c.l.s4 1966171168
        %v1786 = vunpack.c.0.s8 %v1785
        %v1787 = vlaneseq
        %v1788 = vshrl.u32 %v1787, 7
        %v1789 = vsub.s32 %v1786, %v1788
        %v1790 = vrot.slane %v1768, %v1789
        %v1792 = vunpack.c.l.s4 1966171168
        %v1793 = vunpack.c.0.s8 %v1792
        %v1794 = vlaneseq
        %v1795 = vshrl.u32 %v1794, 7
        %v1796 = vsub.s32 %v1793, %v1795
        %v1797 = vrot.slane %v1769, %v1796
        %v1798 = vcombine.high %v1776, %v1776
        %v1799 = vcombine.high %v1783, %v1783
        %v1800 = vcombine.high %v1790, %v1790
        %v1801 = vcombine.high %v1797, %v1797
        %v1802 = vlaneseq
        %v1803 = vshrl.u32 %v1802, 7
        %v1804 = vsub.s32 0, %v1803
        %v1805 = vrot.slane %v1776, %v1804
        %v1806 = vlaneseq
        %v1807 = vshrl.u32 %v1806, 7
        %v1808 = vsub.s32 0, %v1807
        %v1809 = vrot.slane %v1790, %v1808
        %v1810 = vlaneseq
        %v1811 = vshrl.u32 %v1810, 7
        %v1812 = vsub.s32 0, %v1811
        %v1813 = vrot.slane %v1798, %v1812
        %v1814 = vlaneseq
        %v1815 = vshrl.u32 %v1814, 7
        %v1816 = vsub.s32 0, %v1815
        %v1817 = vrot.slane %v1800, %v1816
        %v1818 = vlaneseq
        %v1819 = vshrl.u32 %v1818, 7
        %v1820 = vsub.s32 0, %v1819
        %v1821 = vrot.slane %v1783, %v1820
        %v1822 = vlaneseq
        %v1823 = vshrl.u32 %v1822, 7
        %v1824 = vsub.s32 0, %v1823
        %v1825 = vrot.slane %v1797, %v1824
        %v1826 = vlaneseq
        %v1827 = vshrl.u32 %v1826, 7
        %v1828 = vsub.s32 0, %v1827
        %v1829 = vrot.slane %v1799, %v1828
        %v1830 = vlaneseq
        %v1831 = vshrl.u32 %v1830, 7
        %v1832 = vsub.s32 0, %v1831
        %v1833 = vrot.slane %v1801, %v1832
        %1834 = vrot.lane.b32.xlu0 %v1805, 16
        %v1835 = vpop.permute.xlu0 %1834
        %1836 = vrot.lane.b32.xlu0 %v1809, 16
        %v1837 = vpop.permute.xlu0 %1836
        %1838 = vrot.lane.b32.xlu0 %v1813, 16
        %v1839 = vpop.permute.xlu0 %1838
        %1840 = vrot.lane.b32.xlu0 %v1817, 16
        %v1841 = vpop.permute.xlu0 %1840
        %1842 = vrot.lane.b32.xlu0 %v1821, 16
        %v1843 = vpop.permute.xlu0 %1842
        %1844 = vrot.lane.b32.xlu0 %v1825, 16
        %v1845 = vpop.permute.xlu0 %1844
        %1846 = vrot.lane.b32.xlu0 %v1829, 16
        %v1847 = vpop.permute.xlu0 %1846
        %1848 = vrot.lane.b32.xlu0 %v1833, 16
        %v1849 = vpop.permute.xlu0 %1848
        %1858 = vst.msk [vmem:[%s215 + $0x7] sm:$0x1] %vm645, %v1835
        %1859 = vst.msk [vmem:[%s215 + $0x17] sm:$0x1] %vm645, %v1837
        %1860 = vst.msk [vmem:[%s215 + $0x27] sm:$0x1] %vm645, %v1839
        %1861 = vst.msk [vmem:[%s215 + $0x37] sm:$0x1] %vm645, %v1841
        %1862 = vst.msk [vmem:[%s215 + $0x47] sm:$0x1] %vm645, %v1843
        %1863 = vst.msk [vmem:[%s215 + $0x57] sm:$0x1] %vm645, %v1845
        %1864 = vst.msk [vmem:[%s215 + $0x67] sm:$0x1] %vm645, %v1847
        %1865 = vst.msk [vmem:[%s215 + $0x77] sm:$0x1] %vm645, %v1849
        %v1866 = vld [vmem:[%s186 + $0x4] sm:$0xf]
        %v1869 = vunpack.c.l.s4 1966171168
        %v1870 = vunpack.c.0.s8 %v1869
        %v1871 = vlaneseq
        %v1872 = vshrl.u32 %v1871, 7
        %v1873 = vsub.s32 %v1870, %v1872
        %v1874 = vrot.slane %v1866, %v1873
        %v1875 = vcombine.high %v1874, %v1874
        %v1877 = vunpack.c.l.s4 1966171168
        %v1878 = vunpack.c.0.s8 %v1877
        %v1879 = vlaneseq
        %v1880 = vshrl.u32 %v1879, 7
        %v1881 = vsub.s32 %v1878, %v1880
        %v1882 = vrot.slane %v1874, %v1881
        %v1884 = vunpack.c.l.s4 1966171168
        %v1885 = vunpack.c.0.s8 %v1884
        %v1886 = vlaneseq
        %v1887 = vshrl.u32 %v1886, 7
        %v1888 = vsub.s32 %v1885, %v1887
        %v1889 = vrot.slane %v1875, %v1888
        %v1890 = vcombine.high %v1882, %v1882
        %v1891 = vcombine.high %v1889, %v1889
        %v1892 = vlaneseq
        %v1893 = vshrl.u32 %v1892, 7
        %v1894 = vsub.s32 0, %v1893
        %v1895 = vrot.slane %v1882, %v1894
        %v1896 = vlaneseq
        %v1897 = vshrl.u32 %v1896, 7
        %v1898 = vsub.s32 0, %v1897
        %v1899 = vrot.slane %v1889, %v1898
        %v1900 = vlaneseq
        %v1901 = vshrl.u32 %v1900, 7
        %v1902 = vsub.s32 0, %v1901
        %v1903 = vrot.slane %v1890, %v1902
        %v1904 = vlaneseq
        %v1905 = vshrl.u32 %v1904, 7
        %v1906 = vsub.s32 0, %v1905
        %v1907 = vrot.slane %v1891, %v1906
        %1908 = vrot.lane.b32.xlu0 %v1895, 127
        %v1909 = vpop.permute.xlu0 %1908
        %1910 = vrot.lane.b32.xlu0 %v1899, 127
        %v1911 = vpop.permute.xlu0 %1910
        %1912 = vrot.lane.b32.xlu0 %v1903, 127
        %v1913 = vpop.permute.xlu0 %1912
        %1914 = vrot.lane.b32.xlu0 %v1907, 127
        %v1915 = vpop.permute.xlu0 %1914
        %1920 = vst.msk [vmem:[%s708 + $0x7] sm:$0x1] %vm645, %v1909
        %1921 = vst.msk [vmem:[%s708 + $0x17] sm:$0x1] %vm645, %v1911
        %1922 = vst.msk [vmem:[%s708 + $0x27] sm:$0x1] %vm645, %v1913
        %1923 = vst.msk [vmem:[%s708 + $0x37] sm:$0x1] %vm645, %v1915
        %v1924 = vld [vmem:[#allocation3 + $0x8] sm:$0xff]
        %v1926 = vcombine.high %v1924, %v1924
        %v1928 = vunpack.c.l.s4 1966171168
        %v1929 = vunpack.c.0.s8 %v1928
        %v1930 = vlaneseq
        %v1931 = vshrl.u32 %v1930, 7
        %v1932 = vsub.s32 %v1929, %v1931
        %v1933 = vrot.slane %v1924, %v1932
        %v1935 = vunpack.c.l.s4 1966171168
        %v1936 = vunpack.c.0.s8 %v1935
        %v1937 = vlaneseq
        %v1938 = vshrl.u32 %v1937, 7
        %v1939 = vsub.s32 %v1936, %v1938
        %v1940 = vrot.slane %v1926, %v1939
        %v1941 = vcombine.high %v1933, %v1933
        %v1942 = vcombine.high %v1940, %v1940
        %v1944 = vunpack.c.l.s4 1966171168
        %v1945 = vunpack.c.0.s8 %v1944
        %v1946 = vlaneseq
        %v1947 = vshrl.u32 %v1946, 7
        %v1948 = vsub.s32 %v1945, %v1947
        %v1949 = vrot.slane %v1933, %v1948
        %v1951 = vunpack.c.l.s4 1966171168
        %v1952 = vunpack.c.0.s8 %v1951
        %v1953 = vlaneseq
        %v1954 = vshrl.u32 %v1953, 7
        %v1955 = vsub.s32 %v1952, %v1954
        %v1956 = vrot.slane %v1940, %v1955
        %v1958 = vunpack.c.l.s4 1966171168
        %v1959 = vunpack.c.0.s8 %v1958
        %v1960 = vlaneseq
        %v1961 = vshrl.u32 %v1960, 7
        %v1962 = vsub.s32 %v1959, %v1961
        %v1963 = vrot.slane %v1941, %v1962
        %v1965 = vunpack.c.l.s4 1966171168
        %v1966 = vunpack.c.0.s8 %v1965
        %v1967 = vlaneseq
        %v1968 = vshrl.u32 %v1967, 7
        %v1969 = vsub.s32 %v1966, %v1968
        %v1970 = vrot.slane %v1942, %v1969
        %v1971 = vcombine.high %v1949, %v1949
        %v1972 = vcombine.high %v1956, %v1956
        %v1973 = vcombine.high %v1963, %v1963
        %v1974 = vcombine.high %v1970, %v1970
        %1983 = vst.msk [vmem:[%s215 + $0x8] sm:$0x1] %vm645, %v1949
        %1984 = vst.msk [vmem:[%s215 + $0x18] sm:$0x1] %vm645, %v1963
        %1985 = vst.msk [vmem:[%s215 + $0x28] sm:$0x1] %vm645, %v1971
        %1986 = vst.msk [vmem:[%s215 + $0x38] sm:$0x1] %vm645, %v1973
        %1987 = vst.msk [vmem:[%s215 + $0x48] sm:$0x1] %vm645, %v1956
        %1988 = vst.msk [vmem:[%s215 + $0x58] sm:$0x1] %vm645, %v1970
        %1989 = vst.msk [vmem:[%s215 + $0x68] sm:$0x1] %vm645, %v1972
        %1990 = vst.msk [vmem:[%s215 + $0x78] sm:$0x1] %vm645, %v1974
        %v1991 = vld [vmem:[%s186 + $0x4] sm:$0xf]
        %v1994 = vunpack.c.l.s4 1966171168
        %v1995 = vunpack.c.0.s8 %v1994
        %v1996 = vlaneseq
        %v1997 = vshrl.u32 %v1996, 7
        %v1998 = vsub.s32 %v1995, %v1997
        %v1999 = vrot.slane %v1991, %v1998
        %v2000 = vcombine.high %v1999, %v1999
        %v2002 = vunpack.c.l.s4 1966171168
        %v2003 = vunpack.c.0.s8 %v2002
        %v2004 = vlaneseq
        %v2005 = vshrl.u32 %v2004, 7
        %v2006 = vsub.s32 %v2003, %v2005
        %v2007 = vrot.slane %v1999, %v2006
        %v2009 = vunpack.c.l.s4 1966171168
        %v2010 = vunpack.c.0.s8 %v2009
        %v2011 = vlaneseq
        %v2012 = vshrl.u32 %v2011, 7
        %v2013 = vsub.s32 %v2010, %v2012
        %v2014 = vrot.slane %v2000, %v2013
        %v2015 = vcombine.high %v2007, %v2007
        %v2016 = vcombine.high %v2014, %v2014
        %v2017 = vlaneseq
        %v2018 = vshrl.u32 %v2017, 7
        %v2019 = vsub.s32 0, %v2018
        %v2020 = vrot.slane %v2007, %v2019
        %v2021 = vlaneseq
        %v2022 = vshrl.u32 %v2021, 7
        %v2023 = vsub.s32 0, %v2022
        %v2024 = vrot.slane %v2014, %v2023
        %v2025 = vlaneseq
        %v2026 = vshrl.u32 %v2025, 7
        %v2027 = vsub.s32 0, %v2026
        %v2028 = vrot.slane %v2015, %v2027
        %v2029 = vlaneseq
        %v2030 = vshrl.u32 %v2029, 7
        %v2031 = vsub.s32 0, %v2030
        %v2032 = vrot.slane %v2016, %v2031
        %2033 = vrot.lane.b32.xlu0 %v2020, 111
        %v2034 = vpop.permute.xlu0 %2033
        %2035 = vrot.lane.b32.xlu0 %v2024, 111
        %v2036 = vpop.permute.xlu0 %2035
        %2037 = vrot.lane.b32.xlu0 %v2028, 111
        %v2038 = vpop.permute.xlu0 %2037
        %2039 = vrot.lane.b32.xlu0 %v2032, 111
        %v2040 = vpop.permute.xlu0 %2039
        %2045 = vst.msk [vmem:[%s708 + $0x8] sm:$0x1] %vm645, %v2034
        %2046 = vst.msk [vmem:[%s708 + $0x18] sm:$0x1] %vm645, %v2036
        %2047 = vst.msk [vmem:[%s708 + $0x28] sm:$0x1] %vm645, %v2038
        %2048 = vst.msk [vmem:[%s708 + $0x38] sm:$0x1] %vm645, %v2040
        %v2049 = vld [vmem:[#allocation3 + $0x8] sm:$0xff]
        %v2051 = vcombine.high %v2049, %v2049
        %v2053 = vunpack.c.l.s4 1966171168
        %v2054 = vunpack.c.0.s8 %v2053
        %v2055 = vlaneseq
        %v2056 = vshrl.u32 %v2055, 7
        %v2057 = vsub.s32 %v2054, %v2056
        %v2058 = vrot.slane %v2049, %v2057
        %v2060 = vunpack.c.l.s4 1966171168
        %v2061 = vunpack.c.0.s8 %v2060
        %v2062 = vlaneseq
        %v2063 = vshrl.u32 %v2062, 7
        %v2064 = vsub.s32 %v2061, %v2063
        %v2065 = vrot.slane %v2051, %v2064
        %v2066 = vcombine.high %v2058, %v2058
        %v2067 = vcombine.high %v2065, %v2065
        %v2069 = vunpack.c.l.s4 1966171168
        %v2070 = vunpack.c.0.s8 %v2069
        %v2071 = vlaneseq
        %v2072 = vshrl.u32 %v2071, 7
        %v2073 = vsub.s32 %v2070, %v2072
        %v2074 = vrot.slane %v2058, %v2073
        %v2076 = vunpack.c.l.s4 1966171168
        %v2077 = vunpack.c.0.s8 %v2076
        %v2078 = vlaneseq
        %v2079 = vshrl.u32 %v2078, 7
        %v2080 = vsub.s32 %v2077, %v2079
        %v2081 = vrot.slane %v2065, %v2080
        %v2083 = vunpack.c.l.s4 1966171168
        %v2084 = vunpack.c.0.s8 %v2083
        %v2085 = vlaneseq
        %v2086 = vshrl.u32 %v2085, 7
        %v2087 = vsub.s32 %v2084, %v2086
        %v2088 = vrot.slane %v2066, %v2087
        %v2090 = vunpack.c.l.s4 1966171168
        %v2091 = vunpack.c.0.s8 %v2090
        %v2092 = vlaneseq
        %v2093 = vshrl.u32 %v2092, 7
        %v2094 = vsub.s32 %v2091, %v2093
        %v2095 = vrot.slane %v2067, %v2094
        %v2096 = vcombine.high %v2074, %v2074
        %v2097 = vcombine.high %v2081, %v2081
        %v2098 = vcombine.high %v2088, %v2088
        %v2099 = vcombine.high %v2095, %v2095
        %v2100 = vlaneseq
        %v2101 = vshrl.u32 %v2100, 7
        %v2102 = vsub.s32 0, %v2101
        %v2103 = vrot.slane %v2074, %v2102
        %v2104 = vlaneseq
        %v2105 = vshrl.u32 %v2104, 7
        %v2106 = vsub.s32 0, %v2105
        %v2107 = vrot.slane %v2088, %v2106
        %v2108 = vlaneseq
        %v2109 = vshrl.u32 %v2108, 7
        %v2110 = vsub.s32 0, %v2109
        %v2111 = vrot.slane %v2096, %v2110
        %v2112 = vlaneseq
        %v2113 = vshrl.u32 %v2112, 7
        %v2114 = vsub.s32 0, %v2113
        %v2115 = vrot.slane %v2098, %v2114
        %v2116 = vlaneseq
        %v2117 = vshrl.u32 %v2116, 7
        %v2118 = vsub.s32 0, %v2117
        %v2119 = vrot.slane %v2081, %v2118
        %v2120 = vlaneseq
        %v2121 = vshrl.u32 %v2120, 7
        %v2122 = vsub.s32 0, %v2121
        %v2123 = vrot.slane %v2095, %v2122
        %v2124 = vlaneseq
        %v2125 = vshrl.u32 %v2124, 7
        %v2126 = vsub.s32 0, %v2125
        %v2127 = vrot.slane %v2097, %v2126
        %v2128 = vlaneseq
        %v2129 = vshrl.u32 %v2128, 7
        %v2130 = vsub.s32 0, %v2129
        %v2131 = vrot.slane %v2099, %v2130
        %2132 = vrot.lane.b32.xlu0 %v2103, 112
        %v2133 = vpop.permute.xlu0 %2132
        %2134 = vrot.lane.b32.xlu0 %v2107, 112
        %v2135 = vpop.permute.xlu0 %2134
        %2136 = vrot.lane.b32.xlu0 %v2111, 112
        %v2137 = vpop.permute.xlu0 %2136
        %2138 = vrot.lane.b32.xlu0 %v2115, 112
        %v2139 = vpop.permute.xlu0 %2138
        %2140 = vrot.lane.b32.xlu0 %v2119, 112
        %v2141 = vpop.permute.xlu0 %2140
        %2142 = vrot.lane.b32.xlu0 %v2123, 112
        %v2143 = vpop.permute.xlu0 %2142
        %2144 = vrot.lane.b32.xlu0 %v2127, 112
        %v2145 = vpop.permute.xlu0 %2144
        %2146 = vrot.lane.b32.xlu0 %v2131, 112
        %v2147 = vpop.permute.xlu0 %2146
        %2156 = vst.msk [vmem:[%s215 + $0x9] sm:$0x1] %vm645, %v2133
        %2157 = vst.msk [vmem:[%s215 + $0x19] sm:$0x1] %vm645, %v2135
        %2158 = vst.msk [vmem:[%s215 + $0x29] sm:$0x1] %vm645, %v2137
        %2159 = vst.msk [vmem:[%s215 + $0x39] sm:$0x1] %vm645, %v2139
        %2160 = vst.msk [vmem:[%s215 + $0x49] sm:$0x1] %vm645, %v2141
        %2161 = vst.msk [vmem:[%s215 + $0x59] sm:$0x1] %vm645, %v2143
        %2162 = vst.msk [vmem:[%s215 + $0x69] sm:$0x1] %vm645, %v2145
        %2163 = vst.msk [vmem:[%s215 + $0x79] sm:$0x1] %vm645, %v2147
        %v2164 = vld [vmem:[%s186 + $0x4] sm:$0xf]
        %v2167 = vunpack.c.l.s4 1966171168
        %v2168 = vunpack.c.0.s8 %v2167
        %v2169 = vlaneseq
        %v2170 = vshrl.u32 %v2169, 7
        %v2171 = vsub.s32 %v2168, %v2170
        %v2172 = vrot.slane %v2164, %v2171
        %v2173 = vcombine.high %v2172, %v2172
        %v2175 = vunpack.c.l.s4 1966171168
        %v2176 = vunpack.c.0.s8 %v2175
        %v2177 = vlaneseq
        %v2178 = vshrl.u32 %v2177, 7
        %v2179 = vsub.s32 %v2176, %v2178
        %v2180 = vrot.slane %v2172, %v2179
        %v2182 = vunpack.c.l.s4 1966171168
        %v2183 = vunpack.c.0.s8 %v2182
        %v2184 = vlaneseq
        %v2185 = vshrl.u32 %v2184, 7
        %v2186 = vsub.s32 %v2183, %v2185
        %v2187 = vrot.slane %v2173, %v2186
        %v2188 = vcombine.high %v2180, %v2180
        %v2189 = vcombine.high %v2187, %v2187
        %v2190 = vlaneseq
        %v2191 = vshrl.u32 %v2190, 7
        %v2192 = vsub.s32 0, %v2191
        %v2193 = vrot.slane %v2180, %v2192
        %v2194 = vlaneseq
        %v2195 = vshrl.u32 %v2194, 7
        %v2196 = vsub.s32 0, %v2195
        %v2197 = vrot.slane %v2187, %v2196
        %v2198 = vlaneseq
        %v2199 = vshrl.u32 %v2198, 7
        %v2200 = vsub.s32 0, %v2199
        %v2201 = vrot.slane %v2188, %v2200
        %v2202 = vlaneseq
        %v2203 = vshrl.u32 %v2202, 7
        %v2204 = vsub.s32 0, %v2203
        %v2205 = vrot.slane %v2189, %v2204
        %2206 = vrot.lane.b32.xlu0 %v2193, 95
        %v2207 = vpop.permute.xlu0 %2206
        %2208 = vrot.lane.b32.xlu0 %v2197, 95
        %v2209 = vpop.permute.xlu0 %2208
        %2210 = vrot.lane.b32.xlu0 %v2201, 95
        %v2211 = vpop.permute.xlu0 %2210
        %2212 = vrot.lane.b32.xlu0 %v2205, 95
        %v2213 = vpop.permute.xlu0 %2212
        %2218 = vst.msk [vmem:[%s708 + $0x9] sm:$0x1] %vm645, %v2207
        %2219 = vst.msk [vmem:[%s708 + $0x19] sm:$0x1] %vm645, %v2209
        %2220 = vst.msk [vmem:[%s708 + $0x29] sm:$0x1] %vm645, %v2211
        %2221 = vst.msk [vmem:[%s708 + $0x39] sm:$0x1] %vm645, %v2213
        %v2222 = vld [vmem:[#allocation3 + $0x8] sm:$0xff]
        %v2224 = vcombine.high %v2222, %v2222
        %v2226 = vunpack.c.l.s4 1966171168
        %v2227 = vunpack.c.0.s8 %v2226
        %v2228 = vlaneseq
        %v2229 = vshrl.u32 %v2228, 7
        %v2230 = vsub.s32 %v2227, %v2229
        %v2231 = vrot.slane %v2222, %v2230
        %v2233 = vunpack.c.l.s4 1966171168
        %v2234 = vunpack.c.0.s8 %v2233
        %v2235 = vlaneseq
        %v2236 = vshrl.u32 %v2235, 7
        %v2237 = vsub.s32 %v2234, %v2236
        %v2238 = vrot.slane %v2224, %v2237
        %v2239 = vcombine.high %v2231, %v2231
        %v2240 = vcombine.high %v2238, %v2238
        %v2242 = vunpack.c.l.s4 1966171168
        %v2243 = vunpack.c.0.s8 %v2242
        %v2244 = vlaneseq
        %v2245 = vshrl.u32 %v2244, 7
        %v2246 = vsub.s32 %v2243, %v2245
        %v2247 = vrot.slane %v2231, %v2246
        %v2249 = vunpack.c.l.s4 1966171168
        %v2250 = vunpack.c.0.s8 %v2249
        %v2251 = vlaneseq
        %v2252 = vshrl.u32 %v2251, 7
        %v2253 = vsub.s32 %v2250, %v2252
        %v2254 = vrot.slane %v2238, %v2253
        %v2256 = vunpack.c.l.s4 1966171168
        %v2257 = vunpack.c.0.s8 %v2256
        %v2258 = vlaneseq
        %v2259 = vshrl.u32 %v2258, 7
        %v2260 = vsub.s32 %v2257, %v2259
        %v2261 = vrot.slane %v2239, %v2260
        %v2263 = vunpack.c.l.s4 1966171168
        %v2264 = vunpack.c.0.s8 %v2263
        %v2265 = vlaneseq
        %v2266 = vshrl.u32 %v2265, 7
        %v2267 = vsub.s32 %v2264, %v2266
        %v2268 = vrot.slane %v2240, %v2267
        %v2269 = vcombine.high %v2247, %v2247
        %v2270 = vcombine.high %v2254, %v2254
        %v2271 = vcombine.high %v2261, %v2261
        %v2272 = vcombine.high %v2268, %v2268
        %v2273 = vlaneseq
        %v2274 = vshrl.u32 %v2273, 7
        %v2275 = vsub.s32 0, %v2274
        %v2276 = vrot.slane %v2247, %v2275
        %v2277 = vlaneseq
        %v2278 = vshrl.u32 %v2277, 7
        %v2279 = vsub.s32 0, %v2278
        %v2280 = vrot.slane %v2261, %v2279
        %v2281 = vlaneseq
        %v2282 = vshrl.u32 %v2281, 7
        %v2283 = vsub.s32 0, %v2282
        %v2284 = vrot.slane %v2269, %v2283
        %v2285 = vlaneseq
        %v2286 = vshrl.u32 %v2285, 7
        %v2287 = vsub.s32 0, %v2286
        %v2288 = vrot.slane %v2271, %v2287
        %v2289 = vlaneseq
        %v2290 = vshrl.u32 %v2289, 7
        %v2291 = vsub.s32 0, %v2290
        %v2292 = vrot.slane %v2254, %v2291
        %v2293 = vlaneseq
        %v2294 = vshrl.u32 %v2293, 7
        %v2295 = vsub.s32 0, %v2294
        %v2296 = vrot.slane %v2268, %v2295
        %v2297 = vlaneseq
        %v2298 = vshrl.u32 %v2297, 7
        %v2299 = vsub.s32 0, %v2298
        %v2300 = vrot.slane %v2270, %v2299
        %v2301 = vlaneseq
        %v2302 = vshrl.u32 %v2301, 7
        %v2303 = vsub.s32 0, %v2302
        %v2304 = vrot.slane %v2272, %v2303
        %2305 = vrot.lane.b32.xlu0 %v2276, 96
        %v2306 = vpop.permute.xlu0 %2305
        %2307 = vrot.lane.b32.xlu0 %v2280, 96
        %v2308 = vpop.permute.xlu0 %2307
        %2309 = vrot.lane.b32.xlu0 %v2284, 96
        %v2310 = vpop.permute.xlu0 %2309
        %2311 = vrot.lane.b32.xlu0 %v2288, 96
        %v2312 = vpop.permute.xlu0 %2311
        %2313 = vrot.lane.b32.xlu0 %v2292, 96
        %v2314 = vpop.permute.xlu0 %2313
        %2315 = vrot.lane.b32.xlu0 %v2296, 96
        %v2316 = vpop.permute.xlu0 %2315
        %2317 = vrot.lane.b32.xlu0 %v2300, 96
        %v2318 = vpop.permute.xlu0 %2317
        %2319 = vrot.lane.b32.xlu0 %v2304, 96
        %v2320 = vpop.permute.xlu0 %2319
        %2329 = vst.msk [vmem:[%s215 + $0xa] sm:$0x1] %vm645, %v2306
        %2330 = vst.msk [vmem:[%s215 + $0x1a] sm:$0x1] %vm645, %v2308
        %2331 = vst.msk [vmem:[%s215 + $0x2a] sm:$0x1] %vm645, %v2310
        %2332 = vst.msk [vmem:[%s215 + $0x3a] sm:$0x1] %vm645, %v2312
        %2333 = vst.msk [vmem:[%s215 + $0x4a] sm:$0x1] %vm645, %v2314
        %2334 = vst.msk [vmem:[%s215 + $0x5a] sm:$0x1] %vm645, %v2316
        %2335 = vst.msk [vmem:[%s215 + $0x6a] sm:$0x1] %vm645, %v2318
        %2336 = vst.msk [vmem:[%s215 + $0x7a] sm:$0x1] %vm645, %v2320
        %v2337 = vld [vmem:[%s186 + $0x4] sm:$0xf]
        %v2340 = vunpack.c.l.s4 1966171168
        %v2341 = vunpack.c.0.s8 %v2340
        %v2342 = vlaneseq
        %v2343 = vshrl.u32 %v2342, 7
        %v2344 = vsub.s32 %v2341, %v2343
        %v2345 = vrot.slane %v2337, %v2344
        %v2346 = vcombine.high %v2345, %v2345
        %v2348 = vunpack.c.l.s4 1966171168
        %v2349 = vunpack.c.0.s8 %v2348
        %v2350 = vlaneseq
        %v2351 = vshrl.u32 %v2350, 7
        %v2352 = vsub.s32 %v2349, %v2351
        %v2353 = vrot.slane %v2345, %v2352
        %v2355 = vunpack.c.l.s4 1966171168
        %v2356 = vunpack.c.0.s8 %v2355
        %v2357 = vlaneseq
        %v2358 = vshrl.u32 %v2357, 7
        %v2359 = vsub.s32 %v2356, %v2358
        %v2360 = vrot.slane %v2346, %v2359
        %v2361 = vcombine.high %v2353, %v2353
        %v2362 = vcombine.high %v2360, %v2360
        %v2363 = vlaneseq
        %v2364 = vshrl.u32 %v2363, 7
        %v2365 = vsub.s32 0, %v2364
        %v2366 = vrot.slane %v2353, %v2365
        %v2367 = vlaneseq
        %v2368 = vshrl.u32 %v2367, 7
        %v2369 = vsub.s32 0, %v2368
        %v2370 = vrot.slane %v2360, %v2369
        %v2371 = vlaneseq
        %v2372 = vshrl.u32 %v2371, 7
        %v2373 = vsub.s32 0, %v2372
        %v2374 = vrot.slane %v2361, %v2373
        %v2375 = vlaneseq
        %v2376 = vshrl.u32 %v2375, 7
        %v2377 = vsub.s32 0, %v2376
        %v2378 = vrot.slane %v2362, %v2377
        %2379 = vrot.lane.b32.xlu0 %v2366, 79
        %v2380 = vpop.permute.xlu0 %2379
        %2381 = vrot.lane.b32.xlu0 %v2370, 79
        %v2382 = vpop.permute.xlu0 %2381
        %2383 = vrot.lane.b32.xlu0 %v2374, 79
        %v2384 = vpop.permute.xlu0 %2383
        %2385 = vrot.lane.b32.xlu0 %v2378, 79
        %v2386 = vpop.permute.xlu0 %2385
        %2391 = vst.msk [vmem:[%s708 + $0xa] sm:$0x1] %vm645, %v2380
        %2392 = vst.msk [vmem:[%s708 + $0x1a] sm:$0x1] %vm645, %v2382
        %2393 = vst.msk [vmem:[%s708 + $0x2a] sm:$0x1] %vm645, %v2384
        %2394 = vst.msk [vmem:[%s708 + $0x3a] sm:$0x1] %vm645, %v2386
        %v2395 = vld [vmem:[#allocation3 + $0x8] sm:$0xff]
        %v2397 = vcombine.high %v2395, %v2395
        %v2399 = vunpack.c.l.s4 1966171168
        %v2400 = vunpack.c.0.s8 %v2399
        %v2401 = vlaneseq
        %v2402 = vshrl.u32 %v2401, 7
        %v2403 = vsub.s32 %v2400, %v2402
        %v2404 = vrot.slane %v2395, %v2403
        %v2406 = vunpack.c.l.s4 1966171168
        %v2407 = vunpack.c.0.s8 %v2406
        %v2408 = vlaneseq
        %v2409 = vshrl.u32 %v2408, 7
        %v2410 = vsub.s32 %v2407, %v2409
        %v2411 = vrot.slane %v2397, %v2410
        %v2412 = vcombine.high %v2404, %v2404
        %v2413 = vcombine.high %v2411, %v2411
        %v2415 = vunpack.c.l.s4 1966171168
        %v2416 = vunpack.c.0.s8 %v2415
        %v2417 = vlaneseq
        %v2418 = vshrl.u32 %v2417, 7
        %v2419 = vsub.s32 %v2416, %v2418
        %v2420 = vrot.slane %v2404, %v2419
        %v2422 = vunpack.c.l.s4 1966171168
        %v2423 = vunpack.c.0.s8 %v2422
        %v2424 = vlaneseq
        %v2425 = vshrl.u32 %v2424, 7
        %v2426 = vsub.s32 %v2423, %v2425
        %v2427 = vrot.slane %v2411, %v2426
        %v2429 = vunpack.c.l.s4 1966171168
        %v2430 = vunpack.c.0.s8 %v2429
        %v2431 = vlaneseq
        %v2432 = vshrl.u32 %v2431, 7
        %v2433 = vsub.s32 %v2430, %v2432
        %v2434 = vrot.slane %v2412, %v2433
        %v2436 = vunpack.c.l.s4 1966171168
        %v2437 = vunpack.c.0.s8 %v2436
        %v2438 = vlaneseq
        %v2439 = vshrl.u32 %v2438, 7
        %v2440 = vsub.s32 %v2437, %v2439
        %v2441 = vrot.slane %v2413, %v2440
        %v2442 = vcombine.high %v2420, %v2420
        %v2443 = vcombine.high %v2427, %v2427
        %v2444 = vcombine.high %v2434, %v2434
        %v2445 = vcombine.high %v2441, %v2441
        %v2446 = vlaneseq
        %v2447 = vshrl.u32 %v2446, 7
        %v2448 = vsub.s32 0, %v2447
        %v2449 = vrot.slane %v2420, %v2448
        %v2450 = vlaneseq
        %v2451 = vshrl.u32 %v2450, 7
        %v2452 = vsub.s32 0, %v2451
        %v2453 = vrot.slane %v2434, %v2452
        %v2454 = vlaneseq
        %v2455 = vshrl.u32 %v2454, 7
        %v2456 = vsub.s32 0, %v2455
        %v2457 = vrot.slane %v2442, %v2456
        %v2458 = vlaneseq
        %v2459 = vshrl.u32 %v2458, 7
        %v2460 = vsub.s32 0, %v2459
        %v2461 = vrot.slane %v2444, %v2460
        %v2462 = vlaneseq
        %v2463 = vshrl.u32 %v2462, 7
        %v2464 = vsub.s32 0, %v2463
        %v2465 = vrot.slane %v2427, %v2464
        %v2466 = vlaneseq
        %v2467 = vshrl.u32 %v2466, 7
        %v2468 = vsub.s32 0, %v2467
        %v2469 = vrot.slane %v2441, %v2468
        %v2470 = vlaneseq
        %v2471 = vshrl.u32 %v2470, 7
        %v2472 = vsub.s32 0, %v2471
        %v2473 = vrot.slane %v2443, %v2472
        %v2474 = vlaneseq
        %v2475 = vshrl.u32 %v2474, 7
        %v2476 = vsub.s32 0, %v2475
        %v2477 = vrot.slane %v2445, %v2476
        %2478 = vrot.lane.b32.xlu0 %v2449, 80
        %v2479 = vpop.permute.xlu0 %2478
        %2480 = vrot.lane.b32.xlu0 %v2453, 80
        %v2481 = vpop.permute.xlu0 %2480
        %2482 = vrot.lane.b32.xlu0 %v2457, 80
        %v2483 = vpop.permute.xlu0 %2482
        %2484 = vrot.lane.b32.xlu0 %v2461, 80
        %v2485 = vpop.permute.xlu0 %2484
        %2486 = vrot.lane.b32.xlu0 %v2465, 80
        %v2487 = vpop.permute.xlu0 %2486
        %2488 = vrot.lane.b32.xlu0 %v2469, 80
        %v2489 = vpop.permute.xlu0 %2488
        %2490 = vrot.lane.b32.xlu0 %v2473, 80
        %v2491 = vpop.permute.xlu0 %2490
        %2492 = vrot.lane.b32.xlu0 %v2477, 80
        %v2493 = vpop.permute.xlu0 %2492
        %2502 = vst.msk [vmem:[%s215 + $0xb] sm:$0x1] %vm645, %v2479
        %2503 = vst.msk [vmem:[%s215 + $0x1b] sm:$0x1] %vm645, %v2481
        %2504 = vst.msk [vmem:[%s215 + $0x2b] sm:$0x1] %vm645, %v2483
        %2505 = vst.msk [vmem:[%s215 + $0x3b] sm:$0x1] %vm645, %v2485
        %2506 = vst.msk [vmem:[%s215 + $0x4b] sm:$0x1] %vm645, %v2487
        %2507 = vst.msk [vmem:[%s215 + $0x5b] sm:$0x1] %vm645, %v2489
        %2508 = vst.msk [vmem:[%s215 + $0x6b] sm:$0x1] %vm645, %v2491
        %2509 = vst.msk [vmem:[%s215 + $0x7b] sm:$0x1] %vm645, %v2493
        %v2510 = vld [vmem:[%s186 + $0x4] sm:$0xf]
        %v2513 = vunpack.c.l.s4 1966171168
        %v2514 = vunpack.c.0.s8 %v2513
        %v2515 = vlaneseq
        %v2516 = vshrl.u32 %v2515, 7
        %v2517 = vsub.s32 %v2514, %v2516
        %v2518 = vrot.slane %v2510, %v2517
        %v2519 = vcombine.high %v2518, %v2518
        %v2521 = vunpack.c.l.s4 1966171168
        %v2522 = vunpack.c.0.s8 %v2521
        %v2523 = vlaneseq
        %v2524 = vshrl.u32 %v2523, 7
        %v2525 = vsub.s32 %v2522, %v2524
        %v2526 = vrot.slane %v2518, %v2525
        %v2528 = vunpack.c.l.s4 1966171168
        %v2529 = vunpack.c.0.s8 %v2528
        %v2530 = vlaneseq
        %v2531 = vshrl.u32 %v2530, 7
        %v2532 = vsub.s32 %v2529, %v2531
        %v2533 = vrot.slane %v2519, %v2532
        %v2534 = vcombine.high %v2526, %v2526
        %v2535 = vcombine.high %v2533, %v2533
        %v2536 = vlaneseq
        %v2537 = vshrl.u32 %v2536, 7
        %v2538 = vsub.s32 0, %v2537
        %v2539 = vrot.slane %v2526, %v2538
        %v2540 = vlaneseq
        %v2541 = vshrl.u32 %v2540, 7
        %v2542 = vsub.s32 0, %v2541
        %v2543 = vrot.slane %v2533, %v2542
        %v2544 = vlaneseq
        %v2545 = vshrl.u32 %v2544, 7
        %v2546 = vsub.s32 0, %v2545
        %v2547 = vrot.slane %v2534, %v2546
        %v2548 = vlaneseq
        %v2549 = vshrl.u32 %v2548, 7
        %v2550 = vsub.s32 0, %v2549
        %v2551 = vrot.slane %v2535, %v2550
        %2552 = vrot.lane.b32.xlu0 %v2539, 63
        %v2553 = vpop.permute.xlu0 %2552
        %2554 = vrot.lane.b32.xlu0 %v2543, 63
        %v2555 = vpop.permute.xlu0 %2554
        %2556 = vrot.lane.b32.xlu0 %v2547, 63
        %v2557 = vpop.permute.xlu0 %2556
        %2558 = vrot.lane.b32.xlu0 %v2551, 63
        %v2559 = vpop.permute.xlu0 %2558
        %2564 = vst.msk [vmem:[%s708 + $0xb] sm:$0x1] %vm645, %v2553
        %2565 = vst.msk [vmem:[%s708 + $0x1b] sm:$0x1] %vm645, %v2555
        %2566 = vst.msk [vmem:[%s708 + $0x2b] sm:$0x1] %vm645, %v2557
        %2567 = vst.msk [vmem:[%s708 + $0x3b] sm:$0x1] %vm645, %v2559
        %v2568 = vld [vmem:[#allocation3 + $0x8] sm:$0xff]
        %v2570 = vcombine.high %v2568, %v2568
        %v2572 = vunpack.c.l.s4 1966171168
        %v2573 = vunpack.c.0.s8 %v2572
        %v2574 = vlaneseq
        %v2575 = vshrl.u32 %v2574, 7
        %v2576 = vsub.s32 %v2573, %v2575
        %v2577 = vrot.slane %v2568, %v2576
        %v2579 = vunpack.c.l.s4 1966171168
        %v2580 = vunpack.c.0.s8 %v2579
        %v2581 = vlaneseq
        %v2582 = vshrl.u32 %v2581, 7
        %v2583 = vsub.s32 %v2580, %v2582
        %v2584 = vrot.slane %v2570, %v2583
        %v2585 = vcombine.high %v2577, %v2577
        %v2586 = vcombine.high %v2584, %v2584
        %v2588 = vunpack.c.l.s4 1966171168
        %v2589 = vunpack.c.0.s8 %v2588
        %v2590 = vlaneseq
        %v2591 = vshrl.u32 %v2590, 7
        %v2592 = vsub.s32 %v2589, %v2591
        %v2593 = vrot.slane %v2577, %v2592
        %v2595 = vunpack.c.l.s4 1966171168
        %v2596 = vunpack.c.0.s8 %v2595
        %v2597 = vlaneseq
        %v2598 = vshrl.u32 %v2597, 7
        %v2599 = vsub.s32 %v2596, %v2598
        %v2600 = vrot.slane %v2584, %v2599
        %v2602 = vunpack.c.l.s4 1966171168
        %v2603 = vunpack.c.0.s8 %v2602
        %v2604 = vlaneseq
        %v2605 = vshrl.u32 %v2604, 7
        %v2606 = vsub.s32 %v2603, %v2605
        %v2607 = vrot.slane %v2585, %v2606
        %v2609 = vunpack.c.l.s4 1966171168
        %v2610 = vunpack.c.0.s8 %v2609
        %v2611 = vlaneseq
        %v2612 = vshrl.u32 %v2611, 7
        %v2613 = vsub.s32 %v2610, %v2612
        %v2614 = vrot.slane %v2586, %v2613
        %v2615 = vcombine.high %v2593, %v2593
        %v2616 = vcombine.high %v2600, %v2600
        %v2617 = vcombine.high %v2607, %v2607
        %v2618 = vcombine.high %v2614, %v2614
        %v2619 = vlaneseq
        %v2620 = vshrl.u32 %v2619, 7
        %v2621 = vsub.s32 0, %v2620
        %v2622 = vrot.slane %v2593, %v2621
        %v2623 = vlaneseq
        %v2624 = vshrl.u32 %v2623, 7
        %v2625 = vsub.s32 0, %v2624
        %v2626 = vrot.slane %v2607, %v2625
        %v2627 = vlaneseq
        %v2628 = vshrl.u32 %v2627, 7
        %v2629 = vsub.s32 0, %v2628
        %v2630 = vrot.slane %v2615, %v2629
        %v2631 = vlaneseq
        %v2632 = vshrl.u32 %v2631, 7
        %v2633 = vsub.s32 0, %v2632
        %v2634 = vrot.slane %v2617, %v2633
        %v2635 = vlaneseq
        %v2636 = vshrl.u32 %v2635, 7
        %v2637 = vsub.s32 0, %v2636
        %v2638 = vrot.slane %v2600, %v2637
        %v2639 = vlaneseq
        %v2640 = vshrl.u32 %v2639, 7
        %v2641 = vsub.s32 0, %v2640
        %v2642 = vrot.slane %v2614, %v2641
        %v2643 = vlaneseq
        %v2644 = vshrl.u32 %v2643, 7
        %v2645 = vsub.s32 0, %v2644
        %v2646 = vrot.slane %v2616, %v2645
        %v2647 = vlaneseq
        %v2648 = vshrl.u32 %v2647, 7
        %v2649 = vsub.s32 0, %v2648
        %v2650 = vrot.slane %v2618, %v2649
        %2651 = vrot.lane.b32.xlu0 %v2622, 64
        %v2652 = vpop.permute.xlu0 %2651
        %2653 = vrot.lane.b32.xlu0 %v2626, 64
        %v2654 = vpop.permute.xlu0 %2653
        %2655 = vrot.lane.b32.xlu0 %v2630, 64
        %v2656 = vpop.permute.xlu0 %2655
        %2657 = vrot.lane.b32.xlu0 %v2634, 64
        %v2658 = vpop.permute.xlu0 %2657
        %2659 = vrot.lane.b32.xlu0 %v2638, 64
        %v2660 = vpop.permute.xlu0 %2659
        %2661 = vrot.lane.b32.xlu0 %v2642, 64
        %v2662 = vpop.permute.xlu0 %2661
        %2663 = vrot.lane.b32.xlu0 %v2646, 64
        %v2664 = vpop.permute.xlu0 %2663
        %2665 = vrot.lane.b32.xlu0 %v2650, 64
        %v2666 = vpop.permute.xlu0 %2665
        %2675 = vst.msk [vmem:[%s215 + $0xc] sm:$0x1] %vm645, %v2652
        %2676 = vst.msk [vmem:[%s215 + $0x1c] sm:$0x1] %vm645, %v2654
        %2677 = vst.msk [vmem:[%s215 + $0x2c] sm:$0x1] %vm645, %v2656
        %2678 = vst.msk [vmem:[%s215 + $0x3c] sm:$0x1] %vm645, %v2658
        %2679 = vst.msk [vmem:[%s215 + $0x4c] sm:$0x1] %vm645, %v2660
        %2680 = vst.msk [vmem:[%s215 + $0x5c] sm:$0x1] %vm645, %v2662
        %2681 = vst.msk [vmem:[%s215 + $0x6c] sm:$0x1] %vm645, %v2664
        %2682 = vst.msk [vmem:[%s215 + $0x7c] sm:$0x1] %vm645, %v2666
        %v2683 = vld [vmem:[%s186 + $0x4] sm:$0xf]
        %v2686 = vunpack.c.l.s4 1966171168
        %v2687 = vunpack.c.0.s8 %v2686
        %v2688 = vlaneseq
        %v2689 = vshrl.u32 %v2688, 7
        %v2690 = vsub.s32 %v2687, %v2689
        %v2691 = vrot.slane %v2683, %v2690
        %v2692 = vcombine.high %v2691, %v2691
        %v2694 = vunpack.c.l.s4 1966171168
        %v2695 = vunpack.c.0.s8 %v2694
        %v2696 = vlaneseq
        %v2697 = vshrl.u32 %v2696, 7
        %v2698 = vsub.s32 %v2695, %v2697
        %v2699 = vrot.slane %v2691, %v2698
        %v2701 = vunpack.c.l.s4 1966171168
        %v2702 = vunpack.c.0.s8 %v2701
        %v2703 = vlaneseq
        %v2704 = vshrl.u32 %v2703, 7
        %v2705 = vsub.s32 %v2702, %v2704
        %v2706 = vrot.slane %v2692, %v2705
        %v2707 = vcombine.high %v2699, %v2699
        %v2708 = vcombine.high %v2706, %v2706
        %v2709 = vlaneseq
        %v2710 = vshrl.u32 %v2709, 7
        %v2711 = vsub.s32 0, %v2710
        %v2712 = vrot.slane %v2699, %v2711
        %v2713 = vlaneseq
        %v2714 = vshrl.u32 %v2713, 7
        %v2715 = vsub.s32 0, %v2714
        %v2716 = vrot.slane %v2706, %v2715
        %v2717 = vlaneseq
        %v2718 = vshrl.u32 %v2717, 7
        %v2719 = vsub.s32 0, %v2718
        %v2720 = vrot.slane %v2707, %v2719
        %v2721 = vlaneseq
        %v2722 = vshrl.u32 %v2721, 7
        %v2723 = vsub.s32 0, %v2722
        %v2724 = vrot.slane %v2708, %v2723
        %2725 = vrot.lane.b32.xlu0 %v2712, 47
        %v2726 = vpop.permute.xlu0 %2725
        %2727 = vrot.lane.b32.xlu0 %v2716, 47
        %v2728 = vpop.permute.xlu0 %2727
        %2729 = vrot.lane.b32.xlu0 %v2720, 47
        %v2730 = vpop.permute.xlu0 %2729
        %2731 = vrot.lane.b32.xlu0 %v2724, 47
        %v2732 = vpop.permute.xlu0 %2731
        %2737 = vst.msk [vmem:[%s708 + $0xc] sm:$0x1] %vm645, %v2726
        %2738 = vst.msk [vmem:[%s708 + $0x1c] sm:$0x1] %vm645, %v2728
        %2739 = vst.msk [vmem:[%s708 + $0x2c] sm:$0x1] %vm645, %v2730
        %2740 = vst.msk [vmem:[%s708 + $0x3c] sm:$0x1] %vm645, %v2732
        %v2741 = vld [vmem:[#allocation3 + $0x8] sm:$0xff]
        %v2743 = vcombine.high %v2741, %v2741
        %v2745 = vunpack.c.l.s4 1966171168
        %v2746 = vunpack.c.0.s8 %v2745
        %v2747 = vlaneseq
        %v2748 = vshrl.u32 %v2747, 7
        %v2749 = vsub.s32 %v2746, %v2748
        %v2750 = vrot.slane %v2741, %v2749
        %v2752 = vunpack.c.l.s4 1966171168
        %v2753 = vunpack.c.0.s8 %v2752
        %v2754 = vlaneseq
        %v2755 = vshrl.u32 %v2754, 7
        %v2756 = vsub.s32 %v2753, %v2755
        %v2757 = vrot.slane %v2743, %v2756
        %v2758 = vcombine.high %v2750, %v2750
        %v2759 = vcombine.high %v2757, %v2757
        %v2761 = vunpack.c.l.s4 1966171168
        %v2762 = vunpack.c.0.s8 %v2761
        %v2763 = vlaneseq
        %v2764 = vshrl.u32 %v2763, 7
        %v2765 = vsub.s32 %v2762, %v2764
        %v2766 = vrot.slane %v2750, %v2765
        %v2768 = vunpack.c.l.s4 1966171168
        %v2769 = vunpack.c.0.s8 %v2768
        %v2770 = vlaneseq
        %v2771 = vshrl.u32 %v2770, 7
        %v2772 = vsub.s32 %v2769, %v2771
        %v2773 = vrot.slane %v2757, %v2772
        %v2775 = vunpack.c.l.s4 1966171168
        %v2776 = vunpack.c.0.s8 %v2775
        %v2777 = vlaneseq
        %v2778 = vshrl.u32 %v2777, 7
        %v2779 = vsub.s32 %v2776, %v2778
        %v2780 = vrot.slane %v2758, %v2779
        %v2782 = vunpack.c.l.s4 1966171168
        %v2783 = vunpack.c.0.s8 %v2782
        %v2784 = vlaneseq
        %v2785 = vshrl.u32 %v2784, 7
        %v2786 = vsub.s32 %v2783, %v2785
        %v2787 = vrot.slane %v2759, %v2786
        %v2788 = vcombine.high %v2766, %v2766
        %v2789 = vcombine.high %v2773, %v2773
        %v2790 = vcombine.high %v2780, %v2780
        %v2791 = vcombine.high %v2787, %v2787
        %v2792 = vlaneseq
        %v2793 = vshrl.u32 %v2792, 7
        %v2794 = vsub.s32 0, %v2793
        %v2795 = vrot.slane %v2766, %v2794
        %v2796 = vlaneseq
        %v2797 = vshrl.u32 %v2796, 7
        %v2798 = vsub.s32 0, %v2797
        %v2799 = vrot.slane %v2780, %v2798
        %v2800 = vlaneseq
        %v2801 = vshrl.u32 %v2800, 7
        %v2802 = vsub.s32 0, %v2801
        %v2803 = vrot.slane %v2788, %v2802
        %v2804 = vlaneseq
        %v2805 = vshrl.u32 %v2804, 7
        %v2806 = vsub.s32 0, %v2805
        %v2807 = vrot.slane %v2790, %v2806
        %v2808 = vlaneseq
        %v2809 = vshrl.u32 %v2808, 7
        %v2810 = vsub.s32 0, %v2809
        %v2811 = vrot.slane %v2773, %v2810
        %v2812 = vlaneseq
        %v2813 = vshrl.u32 %v2812, 7
        %v2814 = vsub.s32 0, %v2813
        %v2815 = vrot.slane %v2787, %v2814
        %v2816 = vlaneseq
        %v2817 = vshrl.u32 %v2816, 7
        %v2818 = vsub.s32 0, %v2817
        %v2819 = vrot.slane %v2789, %v2818
        %v2820 = vlaneseq
        %v2821 = vshrl.u32 %v2820, 7
        %v2822 = vsub.s32 0, %v2821
        %v2823 = vrot.slane %v2791, %v2822
        %2824 = vrot.lane.b32.xlu0 %v2795, 48
        %v2825 = vpop.permute.xlu0 %2824
        %2826 = vrot.lane.b32.xlu0 %v2799, 48
        %v2827 = vpop.permute.xlu0 %2826
        %2828 = vrot.lane.b32.xlu0 %v2803, 48
        %v2829 = vpop.permute.xlu0 %2828
        %2830 = vrot.lane.b32.xlu0 %v2807, 48
        %v2831 = vpop.permute.xlu0 %2830
        %2832 = vrot.lane.b32.xlu0 %v2811, 48
        %v2833 = vpop.permute.xlu0 %2832
        %2834 = vrot.lane.b32.xlu0 %v2815, 48
        %v2835 = vpop.permute.xlu0 %2834
        %2836 = vrot.lane.b32.xlu0 %v2819, 48
        %v2837 = vpop.permute.xlu0 %2836
        %2838 = vrot.lane.b32.xlu0 %v2823, 48
        %v2839 = vpop.permute.xlu0 %2838
        %2848 = vst.msk [vmem:[%s215 + $0xd] sm:$0x1] %vm645, %v2825
        %2849 = vst.msk [vmem:[%s215 + $0x1d] sm:$0x1] %vm645, %v2827
        %2850 = vst.msk [vmem:[%s215 + $0x2d] sm:$0x1] %vm645, %v2829
        %2851 = vst.msk [vmem:[%s215 + $0x3d] sm:$0x1] %vm645, %v2831
        %2852 = vst.msk [vmem:[%s215 + $0x4d] sm:$0x1] %vm645, %v2833
        %2853 = vst.msk [vmem:[%s215 + $0x5d] sm:$0x1] %vm645, %v2835
        %2854 = vst.msk [vmem:[%s215 + $0x6d] sm:$0x1] %vm645, %v2837
        %2855 = vst.msk [vmem:[%s215 + $0x7d] sm:$0x1] %vm645, %v2839
        %v2856 = vld [vmem:[%s186 + $0x4] sm:$0xf]
        %v2859 = vunpack.c.l.s4 1966171168
        %v2860 = vunpack.c.0.s8 %v2859
        %v2861 = vlaneseq
        %v2862 = vshrl.u32 %v2861, 7
        %v2863 = vsub.s32 %v2860, %v2862
        %v2864 = vrot.slane %v2856, %v2863
        %v2865 = vcombine.high %v2864, %v2864
        %v2867 = vunpack.c.l.s4 1966171168
        %v2868 = vunpack.c.0.s8 %v2867
        %v2869 = vlaneseq
        %v2870 = vshrl.u32 %v2869, 7
        %v2871 = vsub.s32 %v2868, %v2870
        %v2872 = vrot.slane %v2864, %v2871
        %v2874 = vunpack.c.l.s4 1966171168
        %v2875 = vunpack.c.0.s8 %v2874
        %v2876 = vlaneseq
        %v2877 = vshrl.u32 %v2876, 7
        %v2878 = vsub.s32 %v2875, %v2877
        %v2879 = vrot.slane %v2865, %v2878
        %v2880 = vcombine.high %v2872, %v2872
        %v2881 = vcombine.high %v2879, %v2879
        %v2882 = vlaneseq
        %v2883 = vshrl.u32 %v2882, 7
        %v2884 = vsub.s32 0, %v2883
        %v2885 = vrot.slane %v2872, %v2884
        %v2886 = vlaneseq
        %v2887 = vshrl.u32 %v2886, 7
        %v2888 = vsub.s32 0, %v2887
        %v2889 = vrot.slane %v2879, %v2888
        %v2890 = vlaneseq
        %v2891 = vshrl.u32 %v2890, 7
        %v2892 = vsub.s32 0, %v2891
        %v2893 = vrot.slane %v2880, %v2892
        %v2894 = vlaneseq
        %v2895 = vshrl.u32 %v2894, 7
        %v2896 = vsub.s32 0, %v2895
        %v2897 = vrot.slane %v2881, %v2896
        %2898 = vrot.lane.b32.xlu0 %v2885, 31
        %v2899 = vpop.permute.xlu0 %2898
        %2900 = vrot.lane.b32.xlu0 %v2889, 31
        %v2901 = vpop.permute.xlu0 %2900
        %2902 = vrot.lane.b32.xlu0 %v2893, 31
        %v2903 = vpop.permute.xlu0 %2902
        %2904 = vrot.lane.b32.xlu0 %v2897, 31
        %v2905 = vpop.permute.xlu0 %2904
        %2910 = vst.msk [vmem:[%s708 + $0xd] sm:$0x1] %vm645, %v2899
        %2911 = vst.msk [vmem:[%s708 + $0x1d] sm:$0x1] %vm645, %v2901
        %2912 = vst.msk [vmem:[%s708 + $0x2d] sm:$0x1] %vm645, %v2903
        %2913 = vst.msk [vmem:[%s708 + $0x3d] sm:$0x1] %vm645, %v2905
        %p2914 = scmp.lt.s32.totalorder %s18, 1
        %s2915 = scalar_select %p2914, %s18, 1
        %s2916 = smul.addr %s2915, 24
        %s2917 = smul.addr %s2916, 8
        %s2918 = scalar_lea.vmem %s4, %s2917
        // Predicated region
        $region41: #{tpu_custom_call.1} parent=35 // pred_check
          %p2919 = pneg %p125
        $region42: #{tpu_custom_call.1} parent=35 // pred_check_branch
          %2921 = sbr.rel (%p2919) target = $region44
        $region43: #{tpu_custom_call.1} parent=35 // pred_region
          _
        $region44: #{tpu_custom_call.1} parent=35 // pred_fallthru
          _
      $region36: #{tpu_custom_call.1} parent=5 // pred_fallthru
        _
      %p2922 = scmp.le.s32.totalorder 2, %s13
      // Predicated region
      $region45: #{tpu_custom_call.1} parent=5 // pred_check
        %p2923 = pneg %p2922
      $region46: #{tpu_custom_call.1} parent=5 // pred_check_branch
        %2925 = sbr.rel (%p2923) target = $region48
      $region47: #{tpu_custom_call.1} parent=5 // pred_region
        %s2926 = ssub.s32 %s13, 2
        // Predicated region
        $region49: #{tpu_custom_call.1} parent=47 // pred_check
          %p2927 = pneg %p131
        $region50: #{tpu_custom_call.1} parent=47 // pred_check_branch
          %2929 = sbr.rel (%p2927) target = $region52
        $region51: #{tpu_custom_call.1} parent=47 // pred_region
          %p2930 = scmp.lt.s32.totalorder %s19, 1
          %s2931 = scalar_select %p2930, %s19, 1
          %s2932 = smul.addr %s2931, 24
          %s2933 = smul.addr %s2932, 8
          %s2934 = scalar_lea.vmem %s4, %s2933
        $region52: #{tpu_custom_call.1} parent=47 // pred_fallthru
          _
      $region48: #{tpu_custom_call.1} parent=5 // pred_fallthru
        _
    $region6: #{tpu_custom_call.1} parent=1 // loop_footer
      %s17 = sadd.s32 1, %s13
    $region7: #{tpu_custom_call.1} parent=1 // loop_footer_branch
      %12 = sbr.rel target = $region3
    $region8: #{tpu_custom_call.1} parent=1 // loop_exit
      _
    %2935 = vsyncpa [#allocation6], 1
    %s2936 = scalar_lea.sflag [#allocation6], 1
    %2937 = vsyncpa %s2936, 1

</llo_original>
